<compile_context>
chip_gen: v7x
topology: tpu7x:2x2x1
jax: 0.10.0
libtpu: 0.0.40
codegen_flags: <defaults>
</compile_context>

<pallas_src>
import functools

import jax
import jax.numpy as jnp
from jax import lax
from jax.experimental import pallas as pl
from jax.experimental.pallas import tpu as pltpu

LANES = 128          # conv/fc output channels zero-padded to this (lane-dense)
_TM_MAX = 1024       # max rows per grid step (multiple of 8)
_VMEM_LIMIT = 32 * 1024 * 1024


def _round_up(x, m):
    return (x + m - 1) // m * m


def _tile_rows(m):
    """Row tile: full block if small, else _TM_MAX with zero-padding of M."""
    if m <= _TM_MAX:
        return m, m
    return _TM_MAX, _round_up(m, _TM_MAX)


def _compiler_params():
    return pltpu.CompilerParams(
        dimension_semantics=("parallel",),      # shard M-tiles across TCs (v7x)
        vmem_limit_bytes=_VMEM_LIMIT,
    )


# ------------------------------ Pallas kernels ------------------------------

def _gemm_bias_act_kernel(x_ref, w_ref, b_ref, o_ref, *, relu):
    # x: (TM, K), w: (K, 128), b: (1, 128) -> o: (TM, 128)  (lane-dense out)
    acc = jnp.dot(x_ref[...], w_ref[...], preferred_element_type=jnp.float32)
    acc = acc + b_ref[...]
    if relu:
        acc = jnp.maximum(acc, 0.0)
    o_ref[...] = acc.astype(o_ref.dtype)


def _mlp_head_kernel(x_ref, w1_ref, b1_ref, w2_ref, b2_ref, w3_ref, b3_ref,
                     o_ref):
    # Fused fc1 -> ReLU -> fc2 -> ReLU -> fc3 (all weights VMEM resident).
    h = jnp.dot(x_ref[...], w1_ref[...], preferred_element_type=jnp.float32)
    h = jnp.maximum(h + b1_ref[...], 0.0)
    h = jnp.dot(h, w2_ref[...], preferred_element_type=jnp.float32)
    h = jnp.maximum(h + b2_ref[...], 0.0)
    h = jnp.dot(h, w3_ref[...], preferred_element_type=jnp.float32)
    o_ref[...] = (h + b3_ref[...]).astype(o_ref.dtype)


def _max4_kernel(a_ref, b_ref, c_ref, d_ref, o_ref):
    o_ref[...] = jnp.maximum(jnp.maximum(a_ref[...], b_ref[...]),
                             jnp.maximum(c_ref[...], d_ref[...]))


# ------------------------------- wrappers -----------------------------------

def gemm_bias_act(x, w, b, *, relu):
    """y = relu?(x @ w + b); M tiled over a parallel 1-D grid."""
    M, K = x.shape
    Kw, Np = w.shape
    assert K == Kw and Np % LANES == 0
    tm, Mp = _tile_rows(M)
    if Mp != M:
        x = jnp.pad(x, ((0, Mp - M), (0, 0)))
    out = pl.pallas_call(
        functools.partial(_gemm_bias_act_kernel, relu=relu),
        out_shape=jax.ShapeDtypeStruct((Mp, Np), jnp.float32),
        grid=(Mp // tm,),
        in_specs=[
            pl.BlockSpec((tm, K), lambda i: (i, 0)),
            pl.BlockSpec((K, Np), lambda i: (0, 0)),
            pl.BlockSpec((1, Np), lambda i: (0, 0)),
        ],
        out_specs=pl.BlockSpec((tm, Np), lambda i: (i, 0)),
        compiler_params=_compiler_params(),
        cost_estimate=pl.CostEstimate(
            flops=2 * Mp * K * Np,
            transcendentals=0,
            bytes_accessed=4 * (Mp * K + K * Np + Mp * Np),
        ),
    )(x, w, b)
    return out[:M] if Mp != M else out


def maxpool2x2_nhwc(y):
    """2x2 / stride-2 max pool on NHWC; C (=128, padded) is the lane dim."""
    N, H, W, C = y.shape
    Ho, Wo = H // 2, W // 2
    M = N * Ho * Wo
    # Four strided sub-grids (XLA glue over non-lane dims); kernel is lane-dense.
    parts = [y[:, dh::2, dw::2, :].reshape(M, C)
             for dh in (0, 1) for dw in (0, 1)]
    tm, Mp = _tile_rows(M)
    if Mp != M:
        parts = [jnp.pad(a, ((0, Mp - M), (0, 0))) for a in parts]
    out = pl.pallas_call(
        _max4_kernel,
        out_shape=jax.ShapeDtypeStruct((Mp, C), jnp.float32),
        grid=(Mp // tm,),
        in_specs=[pl.BlockSpec((tm, C), lambda i: (i, 0))] * 4,
        out_specs=pl.BlockSpec((tm, C), lambda i: (i, 0)),
        compiler_params=_compiler_params(),
    )(*parts)
    if Mp != M:
        out = out[:M]
    return out.reshape(N, Ho, Wo, C)


def mlp_head(x, w1, b1, w2, b2, w3, b3):
    """Single pallas_call for fc1->ReLU->fc2->ReLU->fc3 (padded to 128 lanes)."""
    M, K = x.shape
    tm, Mp = _tile_rows(M)
    if Mp != M:
        x = jnp.pad(x, ((0, Mp - M), (0, 0)))
    Np = w3.shape[1]
    out = pl.pallas_call(
        _mlp_head_kernel,
        out_shape=jax.ShapeDtypeStruct((Mp, Np), jnp.float32),
        grid=(Mp // tm,),
        in_specs=[
            pl.BlockSpec((tm, K), lambda i: (i, 0)),
            pl.BlockSpec(w1.shape, lambda i: (0, 0)),
            pl.BlockSpec(b1.shape, lambda i: (0, 0)),
            pl.BlockSpec(w2.shape, lambda i: (0, 0)),
            pl.BlockSpec(b2.shape, lambda i: (0, 0)),
            pl.BlockSpec(w3.shape, lambda i: (0, 0)),
            pl.BlockSpec(b3.shape, lambda i: (0, 0)),
        ],
        out_specs=pl.BlockSpec((tm, Np), lambda i: (i, 0)),
        compiler_params=_compiler_params(),
    )(x, w1, b1, w2, b2, w3, b3)
    return out[:M] if Mp != M else out


# ---------------------------- conv layer (NHWC) ------------------------------

def conv5x5_relu_pool(x_nhwc, w_torch, b, in_ch):
    """'valid' 5x5 conv (stride 1) + bias + ReLU + 2x2 maxpool, NHWC in/out.
    Output keeps a zero-padded 128-channel lane dimension."""
    N, H, W, C = x_nhwc.shape
    assert C == in_ch
    k = w_torch.shape[-1]
    OH, OW = H - k + 1, W - k + 1
    K = in_ch * k * k
    Kp = _round_up(K, 8)

    # Single fused patch extraction. Output feature order is (ic, kh, kw),
    # which matches the PyTorch (OC, IC, kh, kw) weight reshape below.
    patches = lax.conv_general_dilated_patches(
        x_nhwc, (k, k), (1, 1), "VALID",
        dimension_numbers=("NHWC", "HWIO", "NHWC"))        # (N, OH, OW, K)
    patches = patches.reshape(N * OH * OW, K)
    if Kp != K:
        patches = jnp.pad(patches, ((0, 0), (0, Kp - K)))

    OC = w_torch.shape[0]
    w2d = w_torch.reshape(OC, K).T                          # (K, OC)
    w2d = jnp.pad(w2d, ((0, Kp - K), (0, LANES - OC)))      # (Kp, 128)
    b2d = jnp.pad(b, (0, LANES - OC)).reshape(1, LANES)

    y = gemm_bias_act(patches, w2d, b2d, relu=True)         # (N*OH*OW, 128)
    y = y.reshape(N, OH, OW, LANES)
    return maxpool2x2_nhwc(y)                               # (N, OH//2, OW//2, 128)


# ------------------------------ parameters -----------------------------------

def _uniform(key, shape, fan_in):
    bound = 1.0 / jnp.sqrt(jnp.float32(fan_in))
    return jax.random.uniform(key, shape, jnp.float32, -bound, bound)


def init_params(key):
    ks = jax.random.split(key, 10)
    p = {}
    p["conv1_w"] = _uniform(ks[0], (6, 3, 5, 5), 3 * 5 * 5)
    p["conv1_b"] = _uniform(ks[1], (6,), 3 * 5 * 5)
    p["conv2_w"] = _uniform(ks[2], (16, 6, 5, 5), 6 * 5 * 5)
    p["conv2_b"] = _uniform(ks[3], (16,), 6 * 5 * 5)
    # fc weights stored as (in_features, out_features); fc1 rows in (c,h,w) order
    # (same convention as torch's x.view(-1, 400) flatten).
    p["fc1_w"] = _uniform(ks[4], (400, 120), 400)
    p["fc1_b"] = _uniform(ks[5], (120,), 400)
    p["fc2_w"] = _uniform(ks[6], (120, 84), 120)
    p["fc2_b"] = _uniform(ks[7], (84,), 120)
    p["fc3_w"] = _uniform(ks[8], (84, 10), 84)
    p["fc3_b"] = _uniform(ks[9], (10,), 84)
    return p


# -------------------------------- forward ------------------------------------

@jax.jit
def cnn_forward(x, p):
    # x: (N, 3, 32, 32) NCHW float32 (PyTorch layout at the model boundary).
    N = x.shape[0]
    x = jnp.transpose(x, (0, 2, 3, 1))                       # one boundary transpose -> NHWC

    y = conv5x5_relu_pool(x, p["conv1_w"], p["conv1_b"], 3)          # (N,14,14,128)
    y = conv5x5_relu_pool(y[..., :6], p["conv2_w"], p["conv2_b"], 6)  # (N, 5, 5,128)

    # Flatten in (h, w, c) order; fold the torch (c,h,w) flatten permutation
    # into the fc1 weight instead of transposing the activation.
    feat = y[..., :16].reshape(N, 5 * 5 * 16)                # (N, 400)
    w_fc1 = (p["fc1_w"].reshape(16, 5, 5, 120)
             .transpose(1, 2, 0, 3).reshape(400, 120))
    w1 = jnp.pad(w_fc1, ((0, 0), (0, LANES - 120)))
    b1 = jnp.pad(p["fc1_b"], (0, LANES - 120)).reshape(1, LANES)
    w2 = jnp.pad(p["fc2_w"], ((0, LANES - 120), (0, LANES - 84)))
    b2 = jnp.pad(p["fc2_b"], (0, LANES - 84)).reshape(1, LANES)
    w3 = jnp.pad(p["fc3_w"], ((0, LANES - 84), (0, LANES - 10)))
    b3 = jnp.pad(p["fc3_b"], (0, LANES - 10)).reshape(1, LANES)

    out = mlp_head(feat, w1, b1, w2, b2, w3, b3)             # (N, 128)
    return out[:, :10]


# --------------------------- pure-JAX reference -------------------------------

def cnn_reference(x, p):
    """Independent NCHW reference (lax conv / reduce_window / dot)."""
    hi = lax.Precision.HIGHEST
    y = lax.conv_general_dilated(x, p["conv1_w"], (1, 1), "VALID",
                                 dimension_numbers=("NCHW", "OIHW", "NCHW"),
                                 precision=hi)
    y = jnp.maximum(y + p["conv1_b"][None, :, None, None], 0.0)
    y = lax.reduce_window(y, -jnp.inf, lax.max, (1, 1, 2, 2), (1, 1, 2, 2), "VALID")
    y = lax.conv_general_dilated(y, p["conv2_w"], (1, 1), "VALID",
                                 dimension_numbers=("NCHW", "OIHW", "NCHW"),
                                 precision=hi)
    y = jnp.maximum(y + p["conv2_b"][None, :, None, None], 0.0)
    y = lax.reduce_window(y, -jnp.inf, lax.max, (1, 1, 2, 2), (1, 1, 2, 2), "VALID")
    y = y.reshape(y.shape[0], -1)                            # NCHW flatten == torch .view
    y = jnp.maximum(jnp.dot(y, p["fc1_w"], precision=hi) + p["fc1_b"], 0.0)
    y = jnp.maximum(jnp.dot(y, p["fc2_w"], precision=hi) + p["fc2_b"], 0.0)
    return jnp.dot(y, p["fc3_w"], precision=hi) + p["fc3_b"]


if __name__ == "__main__":
    key = jax.random.PRNGKey(0)
    xkey, pkey = jax.random.split(key)
    x = jax.random.normal(xkey, (2, 3, 32, 32), jnp.float32)
    params = init_params(pkey)

    out = cnn_forward(x, params)
    jax.block_until_ready(out)
    assert out.shape == (2, 10) and out.dtype == jnp.float32

    ref = cnn_reference(x, params)
    err = float(jnp.max(jnp.abs(out - ref)))
    assert err < 5e-2, f"mismatch vs pure-JAX reference: max abs err = {err}"
    print("KERNEL_OK")
</pallas_src>

<mosaic_0001>
module attributes {stable_mosaic.version = 11 : i64} {
  func.func @_gemm_bias_act_kernel(%arg0: i32, %arg1: memref<1024x80xf32, #tpu.memory_space<vmem>>, %arg2: memref<80x128xf32, #tpu.memory_space<vmem>>, %arg3: memref<1x128xf32, #tpu.memory_space<vmem>>, %arg4: memref<1024x128xf32, #tpu.memory_space<vmem>>) attributes {dimension_semantics = [#tpu.dimension_semantics<parallel>], iteration_bounds = array<i64: 2>, scalar_prefetch = 0 : i64, scratch_operands = 0 : i64, tpu.core_type = #tpu.core_type<tc>, window_params = [{transform_indices = @transform_0, window_bounds = array<i64: 1024, 80>}, {pipeline_mode = #tpu.pipeline_mode<synchronous>, transform_indices = @transform_1, window_bounds = array<i64: 80, 128>}, {pipeline_mode = #tpu.pipeline_mode<synchronous>, transform_indices = @transform_2, window_bounds = array<i64: 1, 128>}, {transform_indices = @transform_3, window_bounds = array<i64: 1024, 128>}]} {
    %c0 = arith.constant 0 : index
    %c0_0 = arith.constant 0 : index
    %0 = vector.load %arg1[%c0, %c0_0] : memref<1024x80xf32, #tpu.memory_space<vmem>>, vector<1024x80xf32>
    %c0_1 = arith.constant 0 : index
    %c0_2 = arith.constant 0 : index
    %1 = vector.load %arg2[%c0_1, %c0_2] : memref<80x128xf32, #tpu.memory_space<vmem>>, vector<80x128xf32>
    %cst = arith.constant dense<0.000000e+00> : vector<1024x128xf32>
    %2 = tpu.matmul %0, %1, %cst {dimension_numbers = #tpu.dot_dimension_numbers<[1], [0], [0], [1], [0, 0, 1, 1], [], []>} : vector<1024x80xf32>, vector<80x128xf32>, vector<1024x128xf32> -> vector<1024x128xf32>
    %c0_3 = arith.constant 0 : index
    %c0_4 = arith.constant 0 : index
    %3 = vector.load %arg3[%c0_3, %c0_4] : memref<1x128xf32, #tpu.memory_space<vmem>>, vector<1x128xf32>
    %4 = vector.broadcast %3 : vector<1x128xf32> to vector<1024x128xf32>
    %5 = arith.addf %2, %4 : vector<1024x128xf32>
    %cst_5 = arith.constant 0.000000e+00 : f32
    %6 = vector.broadcast %cst_5 : f32 to vector<1024x128xf32>
    %7 = arith.maximumf %5, %6 : vector<1024x128xf32>
    %c0_6 = arith.constant 0 : index
    %c0_7 = arith.constant 0 : index
    %8 = vector.load %arg4[%c0_6, %c0_7] : memref<1024x128xf32, #tpu.memory_space<vmem>>, vector<1024x128xf32>
    tpu.vector_store %arg4[%c0_6, %c0_7], %7 {strides = array<i32>} : memref<1024x128xf32, #tpu.memory_space<vmem>>, vector<1024x128xf32>,
    return
  }
  func.func @transform_0(%arg0: i32) -> (i32, i32) {
    %c0_i32 = arith.constant 0 : i32
    %c0_i32_0 = arith.constant 0 : i32
    return %arg0, %c0_i32 : i32, i32
  }
  func.func @transform_1(%arg0: i32) -> (i32, i32) {
    %c0_i32 = arith.constant 0 : i32
    %c0_i32_0 = arith.constant 0 : i32
    %c0_i32_1 = arith.constant 0 : i32
    return %c0_i32, %c0_i32_0 : i32, i32
  }
  func.func @transform_2(%arg0: i32) -> (i32, i32) {
    %c0_i32 = arith.constant 0 : i32
    %c0_i32_0 = arith.constant 0 : i32
    %c0_i32_1 = arith.constant 0 : i32
    return %c0_i32, %c0_i32_0 : i32, i32
  }
  func.func @transform_3(%arg0: i32) -> (i32, i32) {
    %c0_i32 = arith.constant 0 : i32
    %c0_i32_0 = arith.constant 0 : i32
    return %arg0, %c0_i32 : i32, i32
  }
}

module attributes {stable_mosaic.version = 11 : i64} {
  func.func @_max4_kernel(%arg0: i32, %arg1: memref<392x128xf32, #tpu.memory_space<vmem>>, %arg2: memref<392x128xf32, #tpu.memory_space<vmem>>, %arg3: memref<392x128xf32, #tpu.memory_space<vmem>>, %arg4: memref<392x128xf32, #tpu.memory_space<vmem>>, %arg5: memref<392x128xf32, #tpu.memory_space<vmem>>) attributes {dimension_semantics = [#tpu.dimension_semantics<parallel>], iteration_bounds = array<i64: 1>, scalar_prefetch = 0 : i64, scratch_operands = 0 : i64, tpu.core_type = #tpu.core_type<tc>, window_params = [{transform_indices = @transform_0, window_bounds = array<i64: 392, 128>}, {transform_indices = @transform_1, window_bounds = array<i64: 392, 128>}, {transform_indices = @transform_2, window_bounds = array<i64: 392, 128>}, {transform_indices = @transform_3, window_bounds = array<i64: 392, 128>}, {transform_indices = @transform_4, window_bounds = array<i64: 392, 128>}]} {
    %c0 = arith.constant 0 : index
    %c0_0 = arith.constant 0 : index
    %0 = vector.load %arg1[%c0, %c0_0] : memref<392x128xf32, #tpu.memory_space<vmem>>, vector<392x128xf32>
    %c0_1 = arith.constant 0 : index
    %c0_2 = arith.constant 0 : index
    %1 = vector.load %arg2[%c0_1, %c0_2] : memref<392x128xf32, #tpu.memory_space<vmem>>, vector<392x128xf32>
    %2 = arith.maximumf %0, %1 : vector<392x128xf32>
    %c0_3 = arith.constant 0 : index
    %c0_4 = arith.constant 0 : index
    %3 = vector.load %arg3[%c0_3, %c0_4] : memref<392x128xf32, #tpu.memory_space<vmem>>, vector<392x128xf32>
    %c0_5 = arith.constant 0 : index
    %c0_6 = arith.constant 0 : index
    %4 = vector.load %arg4[%c0_5, %c0_6] : memref<392x128xf32, #tpu.memory_space<vmem>>, vector<392x128xf32>
    %5 = arith.maximumf %3, %4 : vector<392x128xf32>
    %6 = arith.maximumf %2, %5 : vector<392x128xf32>
    %c0_7 = arith.constant 0 : index
    %c0_8 = arith.constant 0 : index
    %7 = vector.load %arg5[%c0_7, %c0_8] : memref<392x128xf32, #tpu.memory_space<vmem>>, vector<392x128xf32>
    tpu.vector_store %arg5[%c0_7, %c0_8], %6 {strides = array<i32>} : memref<392x128xf32, #tpu.memory_space<vmem>>, vector<392x128xf32>,
    return
  }
  func.func @transform_0(%arg0: i32) -> (i32, i32) {
    %c0_i32 = arith.constant 0 : i32
    %c0_i32_0 = arith.constant 0 : i32
    return %arg0, %c0_i32 : i32, i32
  }
  func.func @transform_1(%arg0: i32) -> (i32, i32) {
    %c0_i32 = arith.constant 0 : i32
    %c0_i32_0 = arith.constant 0 : i32
    return %arg0, %c0_i32 : i32, i32
  }
  func.func @transform_2(%arg0: i32) -> (i32, i32) {
    %c0_i32 = arith.constant 0 : i32
    %c0_i32_0 = arith.constant 0 : i32
    return %arg0, %c0_i32 : i32, i32
  }
  func.func @transform_3(%arg0: i32) -> (i32, i32) {
    %c0_i32 = arith.constant 0 : i32
    %c0_i32_0 = arith.constant 0 : i32
    return %arg0, %c0_i32 : i32, i32
  }
  func.func @transform_4(%arg0: i32) -> (i32, i32) {
    %c0_i32 = arith.constant 0 : i32
    %c0_i32_0 = arith.constant 0 : i32
    return %arg0, %c0_i32 : i32, i32
  }
}

module attributes {stable_mosaic.version = 11 : i64} {
  func.func @_gemm_bias_act_kernel(%arg0: i32, %arg1: memref<200x152xf32, #tpu.memory_space<vmem>>, %arg2: memref<152x128xf32, #tpu.memory_space<vmem>>, %arg3: memref<1x128xf32, #tpu.memory_space<vmem>>, %arg4: memref<200x128xf32, #tpu.memory_space<vmem>>) attributes {dimension_semantics = [#tpu.dimension_semantics<parallel>], iteration_bounds = array<i64: 1>, scalar_prefetch = 0 : i64, scratch_operands = 0 : i64, tpu.core_type = #tpu.core_type<tc>, window_params = [{transform_indices = @transform_0, window_bounds = array<i64: 200, 152>}, {pipeline_mode = #tpu.pipeline_mode<synchronous>, transform_indices = @transform_1, window_bounds = array<i64: 152, 128>}, {pipeline_mode = #tpu.pipeline_mode<synchronous>, transform_indices = @transform_2, window_bounds = array<i64: 1, 128>}, {transform_indices = @transform_3, window_bounds = array<i64: 200, 128>}]} {
    %c0 = arith.constant 0 : index
    %c0_0 = arith.constant 0 : index
    %0 = vector.load %arg1[%c0, %c0_0] : memref<200x152xf32, #tpu.memory_space<vmem>>, vector<200x152xf32>
    %c0_1 = arith.constant 0 : index
    %c0_2 = arith.constant 0 : index
    %1 = vector.load %arg2[%c0_1, %c0_2] : memref<152x128xf32, #tpu.memory_space<vmem>>, vector<152x128xf32>
    %cst = arith.constant dense<0.000000e+00> : vector<200x128xf32>
    %2 = tpu.matmul %0, %1, %cst {dimension_numbers = #tpu.dot_dimension_numbers<[1], [0], [0], [1], [0, 0, 1, 1], [], []>} : vector<200x152xf32>, vector<152x128xf32>, vector<200x128xf32> -> vector<200x128xf32>
    %c0_3 = arith.constant 0 : index
    %c0_4 = arith.constant 0 : index
    %3 = vector.load %arg3[%c0_3, %c0_4] : memref<1x128xf32, #tpu.memory_space<vmem>>, vector<1x128xf32>
    %4 = vector.broadcast %3 : vector<1x128xf32> to vector<200x128xf32>
    %5 = arith.addf %2, %4 : vector<200x128xf32>
    %cst_5 = arith.constant 0.000000e+00 : f32
    %6 = vector.broadcast %cst_5 : f32 to vector<200x128xf32>
    %7 = arith.maximumf %5, %6 : vector<200x128xf32>
    %c0_6 = arith.constant 0 : index
    %c0_7 = arith.constant 0 : index
    %8 = vector.load %arg4[%c0_6, %c0_7] : memref<200x128xf32, #tpu.memory_space<vmem>>, vector<200x128xf32>
    tpu.vector_store %arg4[%c0_6, %c0_7], %7 {strides = array<i32>} : memref<200x128xf32, #tpu.memory_space<vmem>>, vector<200x128xf32>,
    return
  }
  func.func @transform_0(%arg0: i32) -> (i32, i32) {
    %c0_i32 = arith.constant 0 : i32
    %c0_i32_0 = arith.constant 0 : i32
    return %arg0, %c0_i32 : i32, i32
  }
  func.func @transform_1(%arg0: i32) -> (i32, i32) {
    %c0_i32 = arith.constant 0 : i32
    %c0_i32_0 = arith.constant 0 : i32
    %c0_i32_1 = arith.constant 0 : i32
    return %c0_i32, %c0_i32_0 : i32, i32
  }
  func.func @transform_2(%arg0: i32) -> (i32, i32) {
    %c0_i32 = arith.constant 0 : i32
    %c0_i32_0 = arith.constant 0 : i32
    %c0_i32_1 = arith.constant 0 : i32
    return %c0_i32, %c0_i32_0 : i32, i32
  }
  func.func @transform_3(%arg0: i32) -> (i32, i32) {
    %c0_i32 = arith.constant 0 : i32
    %c0_i32_0 = arith.constant 0 : i32
    return %arg0, %c0_i32 : i32, i32
  }
}

module attributes {stable_mosaic.version = 11 : i64} {
  func.func @_max4_kernel(%arg0: i32, %arg1: memref<50x128xf32, #tpu.memory_space<vmem>>, %arg2: memref<50x128xf32, #tpu.memory_space<vmem>>, %arg3: memref<50x128xf32, #tpu.memory_space<vmem>>, %arg4: memref<50x128xf32, #tpu.memory_space<vmem>>, %arg5: memref<50x128xf32, #tpu.memory_space<vmem>>) attributes {dimension_semantics = [#tpu.dimension_semantics<parallel>], iteration_bounds = array<i64: 1>, scalar_prefetch = 0 : i64, scratch_operands = 0 : i64, tpu.core_type = #tpu.core_type<tc>, window_params = [{transform_indices = @transform_0, window_bounds = array<i64: 50, 128>}, {transform_indices = @transform_1, window_bounds = array<i64: 50, 128>}, {transform_indices = @transform_2, window_bounds = array<i64: 50, 128>}, {transform_indices = @transform_3, window_bounds = array<i64: 50, 128>}, {transform_indices = @transform_4, window_bounds = array<i64: 50, 128>}]} {
    %c0 = arith.constant 0 : index
    %c0_0 = arith.constant 0 : index
    %0 = vector.load %arg1[%c0, %c0_0] : memref<50x128xf32, #tpu.memory_space<vmem>>, vector<50x128xf32>
    %c0_1 = arith.constant 0 : index
    %c0_2 = arith.constant 0 : index
    %1 = vector.load %arg2[%c0_1, %c0_2] : memref<50x128xf32, #tpu.memory_space<vmem>>, vector<50x128xf32>
    %2 = arith.maximumf %0, %1 : vector<50x128xf32>
    %c0_3 = arith.constant 0 : index
    %c0_4 = arith.constant 0 : index
    %3 = vector.load %arg3[%c0_3, %c0_4] : memref<50x128xf32, #tpu.memory_space<vmem>>, vector<50x128xf32>
    %c0_5 = arith.constant 0 : index
    %c0_6 = arith.constant 0 : index
    %4 = vector.load %arg4[%c0_5, %c0_6] : memref<50x128xf32, #tpu.memory_space<vmem>>, vector<50x128xf32>
    %5 = arith.maximumf %3, %4 : vector<50x128xf32>
    %6 = arith.maximumf %2, %5 : vector<50x128xf32>
    %c0_7 = arith.constant 0 : index
    %c0_8 = arith.constant 0 : index
    %7 = vector.load %arg5[%c0_7, %c0_8] : memref<50x128xf32, #tpu.memory_space<vmem>>, vector<50x128xf32>
    tpu.vector_store %arg5[%c0_7, %c0_8], %6 {strides = array<i32>} : memref<50x128xf32, #tpu.memory_space<vmem>>, vector<50x128xf32>,
    return
  }
  func.func @transform_0(%arg0: i32) -> (i32, i32) {
    %c0_i32 = arith.constant 0 : i32
    %c0_i32_0 = arith.constant 0 : i32
    return %arg0, %c0_i32 : i32, i32
  }
  func.func @transform_1(%arg0: i32) -> (i32, i32) {
    %c0_i32 = arith.constant 0 : i32
    %c0_i32_0 = arith.constant 0 : i32
    return %arg0, %c0_i32 : i32, i32
  }
  func.func @transform_2(%arg0: i32) -> (i32, i32) {
    %c0_i32 = arith.constant 0 : i32
    %c0_i32_0 = arith.constant 0 : i32
    return %arg0, %c0_i32 : i32, i32
  }
  func.func @transform_3(%arg0: i32) -> (i32, i32) {
    %c0_i32 = arith.constant 0 : i32
    %c0_i32_0 = arith.constant 0 : i32
    return %arg0, %c0_i32 : i32, i32
  }
  func.func @transform_4(%arg0: i32) -> (i32, i32) {
    %c0_i32 = arith.constant 0 : i32
    %c0_i32_0 = arith.constant 0 : i32
    return %arg0, %c0_i32 : i32, i32
  }
}

module attributes {stable_mosaic.version = 11 : i64} {
  func.func @_mlp_head_kernel(%arg0: i32, %arg1: memref<2x400xf32, #tpu.memory_space<vmem>>, %arg2: memref<400x128xf32, #tpu.memory_space<vmem>>, %arg3: memref<1x128xf32, #tpu.memory_space<vmem>>, %arg4: memref<128x128xf32, #tpu.memory_space<vmem>>, %arg5: memref<1x128xf32, #tpu.memory_space<vmem>>, %arg6: memref<128x128xf32, #tpu.memory_space<vmem>>, %arg7: memref<1x128xf32, #tpu.memory_space<vmem>>, %arg8: memref<2x128xf32, #tpu.memory_space<vmem>>) attributes {dimension_semantics = [#tpu.dimension_semantics<parallel>], iteration_bounds = array<i64: 1>, scalar_prefetch = 0 : i64, scratch_operands = 0 : i64, tpu.core_type = #tpu.core_type<tc>, window_params = [{transform_indices = @transform_0, window_bounds = array<i64: 2, 400>}, {pipeline_mode = #tpu.pipeline_mode<synchronous>, transform_indices = @transform_1, window_bounds = array<i64: 400, 128>}, {pipeline_mode = #tpu.pipeline_mode<synchronous>, transform_indices = @transform_2, window_bounds = array<i64: 1, 128>}, {pipeline_mode = #tpu.pipeline_mode<synchronous>, transform_indices = @transform_3, window_bounds = array<i64: 128, 128>}, {pipeline_mode = #tpu.pipeline_mode<synchronous>, transform_indices = @transform_4, window_bounds = array<i64: 1, 128>}, {pipeline_mode = #tpu.pipeline_mode<synchronous>, transform_indices = @transform_5, window_bounds = array<i64: 128, 128>}, {pipeline_mode = #tpu.pipeline_mode<synchronous>, transform_indices = @transform_6, window_bounds = array<i64: 1, 128>}, {transform_indices = @transform_7, window_bounds = array<i64: 2, 128>}]} {
    %c0 = arith.constant 0 : index
    %c0_0 = arith.constant 0 : index
    %0 = vector.load %arg1[%c0, %c0_0] : memref<2x400xf32, #tpu.memory_space<vmem>>, vector<2x400xf32>
    %c0_1 = arith.constant 0 : index
    %c0_2 = arith.constant 0 : index
    %1 = vector.load %arg2[%c0_1, %c0_2] : memref<400x128xf32, #tpu.memory_space<vmem>>, vector<400x128xf32>
    %cst = arith.constant dense<0.000000e+00> : vector<2x128xf32>
    %2 = tpu.matmul %0, %1, %cst {dimension_numbers = #tpu.dot_dimension_numbers<[1], [0], [0], [1], [0, 0, 1, 1], [], []>} : vector<2x400xf32>, vector<400x128xf32>, vector<2x128xf32> -> vector<2x128xf32>
    %c0_3 = arith.constant 0 : index
    %c0_4 = arith.constant 0 : index
    %3 = vector.load %arg3[%c0_3, %c0_4] : memref<1x128xf32, #tpu.memory_space<vmem>>, vector<1x128xf32>
    %4 = vector.broadcast %3 : vector<1x128xf32> to vector<2x128xf32>
    %5 = arith.addf %2, %4 : vector<2x128xf32>
    %cst_5 = arith.constant 0.000000e+00 : f32
    %6 = vector.broadcast %cst_5 : f32 to vector<2x128xf32>
    %7 = arith.maximumf %5, %6 : vector<2x128xf32>
    %c0_6 = arith.constant 0 : index
    %c0_7 = arith.constant 0 : index
    %8 = vector.load %arg4[%c0_6, %c0_7] : memref<128x128xf32, #tpu.memory_space<vmem>>, vector<128x128xf32>
    %cst_8 = arith.constant dense<0.000000e+00> : vector<2x128xf32>
    %9 = tpu.matmul %7, %8, %cst_8 {dimension_numbers = #tpu.dot_dimension_numbers<[1], [0], [0], [1], [0, 0, 1, 1], [], []>} : vector<2x128xf32>, vector<128x128xf32>, vector<2x128xf32> -> vector<2x128xf32>
    %c0_9 = arith.constant 0 : index
    %c0_10 = arith.constant 0 : index
    %10 = vector.load %arg5[%c0_9, %c0_10] : memref<1x128xf32, #tpu.memory_space<vmem>>, vector<1x128xf32>
    %11 = vector.broadcast %10 : vector<1x128xf32> to vector<2x128xf32>
    %12 = arith.addf %9, %11 : vector<2x128xf32>
    %cst_11 = arith.constant 0.000000e+00 : f32
    %13 = vector.broadcast %cst_11 : f32 to vector<2x128xf32>
    %14 = arith.maximumf %12, %13 : vector<2x128xf32>
    %c0_12 = arith.constant 0 : index
    %c0_13 = arith.constant 0 : index
    %15 = vector.load %arg6[%c0_12, %c0_13] : memref<128x128xf32, #tpu.memory_space<vmem>>, vector<128x128xf32>
    %cst_14 = arith.constant dense<0.000000e+00> : vector<2x128xf32>
    %16 = tpu.matmul %14, %15, %cst_14 {dimension_numbers = #tpu.dot_dimension_numbers<[1], [0], [0], [1], [0, 0, 1, 1], [], []>} : vector<2x128xf32>, vector<128x128xf32>, vector<2x128xf32> -> vector<2x128xf32>
    %c0_15 = arith.constant 0 : index
    %c0_16 = arith.constant 0 : index
    %17 = vector.load %arg7[%c0_15, %c0_16] : memref<1x128xf32, #tpu.memory_space<vmem>>, vector<1x128xf32>
    %18 = vector.broadcast %17 : vector<1x128xf32> to vector<2x128xf32>
    %19 = arith.addf %16, %18 : vector<2x128xf32>
    %c0_17 = arith.constant 0 : index
    %c0_18 = arith.constant 0 : index
    %20 = vector.load %arg8[%c0_17, %c0_18] : memref<2x128xf32, #tpu.memory_space<vmem>>, vector<2x128xf32>
    tpu.vector_store %arg8[%c0_17, %c0_18], %19 {strides = array<i32>} : memref<2x128xf32, #tpu.memory_space<vmem>>, vector<2x128xf32>,
    return
  }
  func.func @transform_0(%arg0: i32) -> (i32, i32) {
    %c0_i32 = arith.constant 0 : i32
    %c0_i32_0 = arith.constant 0 : i32
    return %arg0, %c0_i32 : i32, i32
  }
  func.func @transform_1(%arg0: i32) -> (i32, i32) {
    %c0_i32 = arith.constant 0 : i32
    %c0_i32_0 = arith.constant 0 : i32
    %c0_i32_1 = arith.constant 0 : i32
    return %c0_i32, %c0_i32_0 : i32, i32
  }
  func.func @transform_2(%arg0: i32) -> (i32, i32) {
    %c0_i32 = arith.constant 0 : i32
    %c0_i32_0 = arith.constant 0 : i32
    %c0_i32_1 = arith.constant 0 : i32
    return %c0_i32, %c0_i32_0 : i32, i32
  }
  func.func @transform_3(%arg0: i32) -> (i32, i32) {
    %c0_i32 = arith.constant 0 : i32
    %c0_i32_0 = arith.constant 0 : i32
    %c0_i32_1 = arith.constant 0 : i32
    return %c0_i32, %c0_i32_0 : i32, i32
  }
  func.func @transform_4(%arg0: i32) -> (i32, i32) {
    %c0_i32 = arith.constant 0 : i32
    %c0_i32_0 = arith.constant 0 : i32
    %c0_i32_1 = arith.constant 0 : i32
    return %c0_i32, %c0_i32_0 : i32, i32
  }
  func.func @transform_5(%arg0: i32) -> (i32, i32) {
    %c0_i32 = arith.constant 0 : i32
    %c0_i32_0 = arith.constant 0 : i32
    %c0_i32_1 = arith.constant 0 : i32
    return %c0_i32, %c0_i32_0 : i32, i32
  }
  func.func @transform_6(%arg0: i32) -> (i32, i32) {
    %c0_i32 = arith.constant 0 : i32
    %c0_i32_0 = arith.constant 0 : i32
    %c0_i32_1 = arith.constant 0 : i32
    return %c0_i32, %c0_i32_0 : i32, i32
  }
  func.func @transform_7(%arg0: i32) -> (i32, i32) {
    %c0_i32 = arith.constant 0 : i32
    %c0_i32_0 = arith.constant 0 : i32
    return %arg0, %c0_i32 : i32, i32
  }
}

</mosaic_0001>

<llo_original>
// kernel: cnn_forward.6
$region0: #{cnn_forward.6}
  #allocation0 [shape = 'u32[]', space=smem, size = 0x4, offset = 0x4, fixed_abs, tag = 'smem constant byte address 0x4 - core index']
  #allocation1 [shape = 'u32[144,128]{1,0:T(1,128)}', space=vmem, size = 0x12000, scoped, tag = 'internal scratch']
  %s0 = inlined_call_operand.vmem [shape: f32[392,128], index: 0, kind: input, shape index: {}]
  %s1 = inlined_call_operand.vmem [shape: f32[392,128], index: 1, kind: input, shape index: {}]
  %s2 = inlined_call_operand.vmem [shape: f32[392,128], index: 2, kind: input, shape index: {}]
  %s3 = inlined_call_operand.vmem [shape: f32[392,128], index: 3, kind: input, shape index: {}]
  %s4 = inlined_call_operand.vmem [shape: f32[392,128], index: 4, kind: output, shape index: {}]
  %s5 = sld [smem:[#allocation0]]
  $region26: #{cnn_forward.6} parent=0
    _
  %s7 = ssub.s32 1, %s5
  %s8 = scalar_select 0, %s7, %s5
  // Predicated region
  $region2: #{cnn_forward.6} parent=0 // pred_check
    _
  $region3: #{cnn_forward.6} parent=0 // pred_check_branch
    %10 = sbr.rel (0) target = $region5
  $region4: #{cnn_forward.6} parent=0 // pred_region
    _
  $region5: #{cnn_forward.6} parent=0 // pred_fallthru
    _
  // Predicated region
  $region6: #{cnn_forward.6} parent=0 // pred_check
    _
  $region7: #{cnn_forward.6} parent=0 // pred_check_branch
    %12 = sbr.rel (0) target = $region9
  $region8: #{cnn_forward.6} parent=0 // pred_region
    _
  $region9: #{cnn_forward.6} parent=0 // pred_fallthru
    _
  // Predicated region
  $region10: #{cnn_forward.6} parent=0 // pred_check
    _
  $region11: #{cnn_forward.6} parent=0 // pred_check_branch
    %14 = sbr.rel (0) target = $region13
  $region12: #{cnn_forward.6} parent=0 // pred_region
    _
  $region13: #{cnn_forward.6} parent=0 // pred_fallthru
    _
  // Predicated region
  $region14: #{cnn_forward.6} parent=0 // pred_check
    _
  $region15: #{cnn_forward.6} parent=0 // pred_check_branch
    %16 = sbr.rel (0) target = $region17
  $region16: #{cnn_forward.6} parent=0 // pred_region
    _
  $region17: #{cnn_forward.6} parent=0 // pred_fallthru
    _
  %v17 = vld [vmem:[%s0] sm:$0xff]
  %v18 = vld [vmem:[%s0 + $0x8] sm:$0xff]
  %v19 = vld [vmem:[%s0 + $0x10] sm:$0xff]
  %v20 = vld [vmem:[%s0 + $0x18] sm:$0xff]
  %v21 = vld [vmem:[%s0 + $0x20] sm:$0xff]
  %v22 = vld [vmem:[%s0 + $0x28] sm:$0xff]
  %v23 = vld [vmem:[%s0 + $0x30] sm:$0xff]
  %v24 = vld [vmem:[%s0 + $0x38] sm:$0xff]
  %v25 = vld [vmem:[%s0 + $0x40] sm:$0xff]
  %v26 = vld [vmem:[%s0 + $0x48] sm:$0xff]
  %v27 = vld [vmem:[%s0 + $0x50] sm:$0xff]
  %v28 = vld [vmem:[%s0 + $0x58] sm:$0xff]
  %v29 = vld [vmem:[%s0 + $0x60] sm:$0xff]
  %v30 = vld [vmem:[%s0 + $0x68] sm:$0xff]
  %v31 = vld [vmem:[%s0 + $0x70] sm:$0xff]
  %v32 = vld [vmem:[%s0 + $0x78] sm:$0xff]
  %v33 = vld [vmem:[%s0 + $0x80] sm:$0xff]
  %v34 = vld [vmem:[%s0 + $0x88] sm:$0xff]
  %v35 = vld [vmem:[%s0 + $0x90] sm:$0xff]
  %v36 = vld [vmem:[%s0 + $0x98] sm:$0xff]
  %v37 = vld [vmem:[%s0 + $0xa0] sm:$0xff]
  %v38 = vld [vmem:[%s0 + $0xa8] sm:$0xff]
  %v39 = vld [vmem:[%s0 + $0xb0] sm:$0xff]
  %v40 = vld [vmem:[%s0 + $0xb8] sm:$0xff]
  %v41 = vld [vmem:[%s0 + $0xc0] sm:$0xff]
  %v42 = vld [vmem:[%s0 + $0xc8] sm:$0xff]
  %v43 = vld [vmem:[%s0 + $0xd0] sm:$0xff]
  %v44 = vld [vmem:[%s0 + $0xd8] sm:$0xff]
  %v45 = vld [vmem:[%s0 + $0xe0] sm:$0xff]
  %v46 = vld [vmem:[%s0 + $0xe8] sm:$0xff]
  %v47 = vld [vmem:[%s0 + $0xf0] sm:$0xff]
  %v48 = vld [vmem:[%s0 + $0xf8] sm:$0xff]
  %v49 = vld [vmem:[%s0 + $0x100] sm:$0xff]
  %v50 = vld [vmem:[%s0 + $0x108] sm:$0xff]
  %v51 = vld [vmem:[%s0 + $0x110] sm:$0xff]
  %v52 = vld [vmem:[%s0 + $0x118] sm:$0xff]
  %v53 = vld [vmem:[%s0 + $0x120] sm:$0xff]
  %v54 = vld [vmem:[%s0 + $0x128] sm:$0xff]
  %v55 = vld [vmem:[%s0 + $0x130] sm:$0xff]
  %v56 = vld [vmem:[%s0 + $0x138] sm:$0xff]
  %v57 = vld [vmem:[%s0 + $0x140] sm:$0xff]
  %v58 = vld [vmem:[%s0 + $0x148] sm:$0xff]
  %v59 = vld [vmem:[%s0 + $0x150] sm:$0xff]
  %v60 = vld [vmem:[%s0 + $0x158] sm:$0xff]
  %v61 = vld [vmem:[%s0 + $0x160] sm:$0xff]
  %v62 = vld [vmem:[%s0 + $0x168] sm:$0xff]
  %v63 = vld [vmem:[%s0 + $0x170] sm:$0xff]
  %v64 = vld [vmem:[%s0 + $0x178] sm:$0xff]
  %v65 = vld [vmem:[%s0 + $0x180] sm:$0xff]
  %v66 = vld [vmem:[%s1] sm:$0xff]
  %v67 = vld [vmem:[%s1 + $0x8] sm:$0xff]
  %v68 = vld [vmem:[%s1 + $0x10] sm:$0xff]
  %v69 = vld [vmem:[%s1 + $0x18] sm:$0xff]
  %v70 = vld [vmem:[%s1 + $0x20] sm:$0xff]
  %v71 = vld [vmem:[%s1 + $0x28] sm:$0xff]
  %v72 = vld [vmem:[%s1 + $0x30] sm:$0xff]
  %v73 = vld [vmem:[%s1 + $0x38] sm:$0xff]
  %v74 = vld [vmem:[%s1 + $0x40] sm:$0xff]
  %v75 = vld [vmem:[%s1 + $0x48] sm:$0xff]
  %v76 = vld [vmem:[%s1 + $0x50] sm:$0xff]
  %v77 = vld [vmem:[%s1 + $0x58] sm:$0xff]
  %v78 = vld [vmem:[%s1 + $0x60] sm:$0xff]
  %v79 = vld [vmem:[%s1 + $0x68] sm:$0xff]
  %v80 = vld [vmem:[%s1 + $0x70] sm:$0xff]
  %v81 = vld [vmem:[%s1 + $0x78] sm:$0xff]
  %v82 = vld [vmem:[%s1 + $0x80] sm:$0xff]
  %v83 = vld [vmem:[%s1 + $0x88] sm:$0xff]
  %v84 = vld [vmem:[%s1 + $0x90] sm:$0xff]
  %v85 = vld [vmem:[%s1 + $0x98] sm:$0xff]
  %v86 = vld [vmem:[%s1 + $0xa0] sm:$0xff]
  %v87 = vld [vmem:[%s1 + $0xa8] sm:$0xff]
  %v88 = vld [vmem:[%s1 + $0xb0] sm:$0xff]
  %v89 = vld [vmem:[%s1 + $0xb8] sm:$0xff]
  %v90 = vld [vmem:[%s1 + $0xc0] sm:$0xff]
  %v91 = vld [vmem:[%s1 + $0xc8] sm:$0xff]
  %v92 = vld [vmem:[%s1 + $0xd0] sm:$0xff]
  %v93 = vld [vmem:[%s1 + $0xd8] sm:$0xff]
  %v94 = vld [vmem:[%s1 + $0xe0] sm:$0xff]
  %v95 = vld [vmem:[%s1 + $0xe8] sm:$0xff]
  %v96 = vld [vmem:[%s1 + $0xf0] sm:$0xff]
  %v97 = vld [vmem:[%s1 + $0xf8] sm:$0xff]
  %v98 = vld [vmem:[%s1 + $0x100] sm:$0xff]
  %v99 = vld [vmem:[%s1 + $0x108] sm:$0xff]
  %v100 = vld [vmem:[%s1 + $0x110] sm:$0xff]
  %v101 = vld [vmem:[%s1 + $0x118] sm:$0xff]
  %v102 = vld [vmem:[%s1 + $0x120] sm:$0xff]
  %v103 = vld [vmem:[%s1 + $0x128] sm:$0xff]
  %v104 = vld [vmem:[%s1 + $0x130] sm:$0xff]
  %v105 = vld [vmem:[%s1 + $0x138] sm:$0xff]
  %v106 = vld [vmem:[%s1 + $0x140] sm:$0xff]
  %v107 = vld [vmem:[%s1 + $0x148] sm:$0xff]
  %v108 = vld [vmem:[%s1 + $0x150] sm:$0xff]
  %v109 = vld [vmem:[%s1 + $0x158] sm:$0xff]
  %v110 = vld [vmem:[%s1 + $0x160] sm:$0xff]
  %v111 = vld [vmem:[%s1 + $0x168] sm:$0xff]
  %v112 = vld [vmem:[%s1 + $0x170] sm:$0xff]
  %v113 = vld [vmem:[%s1 + $0x178] sm:$0xff]
  %v114 = vld [vmem:[%s1 + $0x180] sm:$0xff]
  %v115 = vmax.f32 %v17, %v66
  %v116 = vmax.f32 %v18, %v67
  %v117 = vmax.f32 %v19, %v68
  %v118 = vmax.f32 %v20, %v69
  %v119 = vmax.f32 %v21, %v70
  %v120 = vmax.f32 %v22, %v71
  %v121 = vmax.f32 %v23, %v72
  %v122 = vmax.f32 %v24, %v73
  %v123 = vmax.f32 %v25, %v74
  %v124 = vmax.f32 %v26, %v75
  %v125 = vmax.f32 %v27, %v76
  %v126 = vmax.f32 %v28, %v77
  %v127 = vmax.f32 %v29, %v78
  %v128 = vmax.f32 %v30, %v79
  %v129 = vmax.f32 %v31, %v80
  %v130 = vmax.f32 %v32, %v81
  %v131 = vmax.f32 %v33, %v82
  %v132 = vmax.f32 %v34, %v83
  %v133 = vmax.f32 %v35, %v84
  %v134 = vmax.f32 %v36, %v85
  %v135 = vmax.f32 %v37, %v86
  %v136 = vmax.f32 %v38, %v87
  %v137 = vmax.f32 %v39, %v88
  %v138 = vmax.f32 %v40, %v89
  %v139 = vmax.f32 %v41, %v90
  %v140 = vmax.f32 %v42, %v91
  %v141 = vmax.f32 %v43, %v92
  %v142 = vmax.f32 %v44, %v93
  %v143 = vmax.f32 %v45, %v94
  %v144 = vmax.f32 %v46, %v95
  %v145 = vmax.f32 %v47, %v96
  %v146 = vmax.f32 %v48, %v97
  %v147 = vmax.f32 %v49, %v98
  %v148 = vmax.f32 %v50, %v99
  %v149 = vmax.f32 %v51, %v100
  %v150 = vmax.f32 %v52, %v101
  %v151 = vmax.f32 %v53, %v102
  %v152 = vmax.f32 %v54, %v103
  %v153 = vmax.f32 %v55, %v104
  %v154 = vmax.f32 %v56, %v105
  %v155 = vmax.f32 %v57, %v106
  %v156 = vmax.f32 %v58, %v107
  %v157 = vmax.f32 %v59, %v108
  %v158 = vmax.f32 %v60, %v109
  %v159 = vmax.f32 %v61, %v110
  %v160 = vmax.f32 %v62, %v111
  %v161 = vmax.f32 %v63, %v112
  %v162 = vmax.f32 %v64, %v113
  %v163 = vmax.f32 %v65, %v114
  %v164 = vld [vmem:[%s2] sm:$0xff]
  %v165 = vld [vmem:[%s2 + $0x8] sm:$0xff]
  %v166 = vld [vmem:[%s2 + $0x10] sm:$0xff]
  %v167 = vld [vmem:[%s2 + $0x18] sm:$0xff]
  %v168 = vld [vmem:[%s2 + $0x20] sm:$0xff]
  %v169 = vld [vmem:[%s2 + $0x28] sm:$0xff]
  %v170 = vld [vmem:[%s2 + $0x30] sm:$0xff]
  %v171 = vld [vmem:[%s2 + $0x38] sm:$0xff]
  %v172 = vld [vmem:[%s2 + $0x40] sm:$0xff]
  %v173 = vld [vmem:[%s2 + $0x48] sm:$0xff]
  %v174 = vld [vmem:[%s2 + $0x50] sm:$0xff]
  %v175 = vld [vmem:[%s2 + $0x58] sm:$0xff]
  %v176 = vld [vmem:[%s2 + $0x60] sm:$0xff]
  %v177 = vld [vmem:[%s2 + $0x68] sm:$0xff]
  %v178 = vld [vmem:[%s2 + $0x70] sm:$0xff]
  %v179 = vld [vmem:[%s2 + $0x78] sm:$0xff]
  %v180 = vld [vmem:[%s2 + $0x80] sm:$0xff]
  %v181 = vld [vmem:[%s2 + $0x88] sm:$0xff]
  %v182 = vld [vmem:[%s2 + $0x90] sm:$0xff]
  %v183 = vld [vmem:[%s2 + $0x98] sm:$0xff]
  %v184 = vld [vmem:[%s2 + $0xa0] sm:$0xff]
  %v185 = vld [vmem:[%s2 + $0xa8] sm:$0xff]
  %v186 = vld [vmem:[%s2 + $0xb0] sm:$0xff]
  %v187 = vld [vmem:[%s2 + $0xb8] sm:$0xff]
  %v188 = vld [vmem:[%s2 + $0xc0] sm:$0xff]
  %v189 = vld [vmem:[%s2 + $0xc8] sm:$0xff]
  %v190 = vld [vmem:[%s2 + $0xd0] sm:$0xff]
  %v191 = vld [vmem:[%s2 + $0xd8] sm:$0xff]
  %v192 = vld [vmem:[%s2 + $0xe0] sm:$0xff]
  %v193 = vld [vmem:[%s2 + $0xe8] sm:$0xff]
  %v194 = vld [vmem:[%s2 + $0xf0] sm:$0xff]
  %v195 = vld [vmem:[%s2 + $0xf8] sm:$0xff]
  %v196 = vld [vmem:[%s2 + $0x100] sm:$0xff]
  %v197 = vld [vmem:[%s2 + $0x108] sm:$0xff]
  %v198 = vld [vmem:[%s2 + $0x110] sm:$0xff]
  %v199 = vld [vmem:[%s2 + $0x118] sm:$0xff]
  %v200 = vld [vmem:[%s2 + $0x120] sm:$0xff]
  %v201 = vld [vmem:[%s2 + $0x128] sm:$0xff]
  %v202 = vld [vmem:[%s2 + $0x130] sm:$0xff]
  %v203 = vld [vmem:[%s2 + $0x138] sm:$0xff]
  %v204 = vld [vmem:[%s2 + $0x140] sm:$0xff]
  %v205 = vld [vmem:[%s2 + $0x148] sm:$0xff]
  %v206 = vld [vmem:[%s2 + $0x150] sm:$0xff]
  %v207 = vld [vmem:[%s2 + $0x158] sm:$0xff]
  %v208 = vld [vmem:[%s2 + $0x160] sm:$0xff]
  %v209 = vld [vmem:[%s2 + $0x168] sm:$0xff]
  %v210 = vld [vmem:[%s2 + $0x170] sm:$0xff]
  %v211 = vld [vmem:[%s2 + $0x178] sm:$0xff]
  %v212 = vld [vmem:[%s2 + $0x180] sm:$0xff]
  %v213 = vld [vmem:[%s3] sm:$0xff]
  %v214 = vld [vmem:[%s3 + $0x8] sm:$0xff]
  %v215 = vld [vmem:[%s3 + $0x10] sm:$0xff]
  %v216 = vld [vmem:[%s3 + $0x18] sm:$0xff]
  %v217 = vld [vmem:[%s3 + $0x20] sm:$0xff]
  %v218 = vld [vmem:[%s3 + $0x28] sm:$0xff]
  %v219 = vld [vmem:[%s3 + $0x30] sm:$0xff]
  %v220 = vld [vmem:[%s3 + $0x38] sm:$0xff]
  %v221 = vld [vmem:[%s3 + $0x40] sm:$0xff]
  %v222 = vld [vmem:[%s3 + $0x48] sm:$0xff]
  %v223 = vld [vmem:[%s3 + $0x50] sm:$0xff]
  %v224 = vld [vmem:[%s3 + $0x58] sm:$0xff]
  %v225 = vld [vmem:[%s3 + $0x60] sm:$0xff]
  %v226 = vld [vmem:[%s3 + $0x68] sm:$0xff]
  %v227 = vld [vmem:[%s3 + $0x70] sm:$0xff]
  %v228 = vld [vmem:[%s3 + $0x78] sm:$0xff]
  %v229 = vld [vmem:[%s3 + $0x80] sm:$0xff]
  %v230 = vld [vmem:[%s3 + $0x88] sm:$0xff]
  %v231 = vld [vmem:[%s3 + $0x90] sm:$0xff]
  %v232 = vld [vmem:[%s3 + $0x98] sm:$0xff]
  %v233 = vld [vmem:[%s3 + $0xa0] sm:$0xff]
  %v234 = vld [vmem:[%s3 + $0xa8] sm:$0xff]
  %v235 = vld [vmem:[%s3 + $0xb0] sm:$0xff]
  %v236 = vld [vmem:[%s3 + $0xb8] sm:$0xff]
  %v237 = vld [vmem:[%s3 + $0xc0] sm:$0xff]
  %v238 = vld [vmem:[%s3 + $0xc8] sm:$0xff]
  %v239 = vld [vmem:[%s3 + $0xd0] sm:$0xff]
  %v240 = vld [vmem:[%s3 + $0xd8] sm:$0xff]
  %v241 = vld [vmem:[%s3 + $0xe0] sm:$0xff]
  %v242 = vld [vmem:[%s3 + $0xe8] sm:$0xff]
  %v243 = vld [vmem:[%s3 + $0xf0] sm:$0xff]
  %v244 = vld [vmem:[%s3 + $0xf8] sm:$0xff]
  %v245 = vld [vmem:[%s3 + $0x100] sm:$0xff]
  %v246 = vld [vmem:[%s3 + $0x108] sm:$0xff]
  %v247 = vld [vmem:[%s3 + $0x110] sm:$0xff]
  %v248 = vld [vmem:[%s3 + $0x118] sm:$0xff]
  %v249 = vld [vmem:[%s3 + $0x120] sm:$0xff]
  %v250 = vld [vmem:[%s3 + $0x128] sm:$0xff]
  %v251 = vld [vmem:[%s3 + $0x130] sm:$0xff]
  %v252 = vld [vmem:[%s3 + $0x138] sm:$0xff]
  %v253 = vld [vmem:[%s3 + $0x140] sm:$0xff]
  %v254 = vld [vmem:[%s3 + $0x148] sm:$0xff]
  %v255 = vld [vmem:[%s3 + $0x150] sm:$0xff]
  %v256 = vld [vmem:[%s3 + $0x158] sm:$0xff]
  %v257 = vld [vmem:[%s3 + $0x160] sm:$0xff]
  %v258 = vld [vmem:[%s3 + $0x168] sm:$0xff]
  %v259 = vld [vmem:[%s3 + $0x170] sm:$0xff]
  %v260 = vld [vmem:[%s3 + $0x178] sm:$0xff]
  %v261 = vld [vmem:[%s3 + $0x180] sm:$0xff]
  %v262 = vmax.f32 %v164, %v213
  %v263 = vmax.f32 %v165, %v214
  %v264 = vmax.f32 %v166, %v215
  %v265 = vmax.f32 %v167, %v216
  %v266 = vmax.f32 %v168, %v217
  %v267 = vmax.f32 %v169, %v218
  %v268 = vmax.f32 %v170, %v219
  %v269 = vmax.f32 %v171, %v220
  %v270 = vmax.f32 %v172, %v221
  %v271 = vmax.f32 %v173, %v222
  %v272 = vmax.f32 %v174, %v223
  %v273 = vmax.f32 %v175, %v224
  %v274 = vmax.f32 %v176, %v225
  %v275 = vmax.f32 %v177, %v226
  %v276 = vmax.f32 %v178, %v227
  %v277 = vmax.f32 %v179, %v228
  %v278 = vmax.f32 %v180, %v229
  %v279 = vmax.f32 %v181, %v230
  %v280 = vmax.f32 %v182, %v231
  %v281 = vmax.f32 %v183, %v232
  %v282 = vmax.f32 %v184, %v233
  %v283 = vmax.f32 %v185, %v234
  %v284 = vmax.f32 %v186, %v235
  %v285 = vmax.f32 %v187, %v236
  %v286 = vmax.f32 %v188, %v237
  %v287 = vmax.f32 %v189, %v238
  %v288 = vmax.f32 %v190, %v239
  %v289 = vmax.f32 %v191, %v240
  %v290 = vmax.f32 %v192, %v241
  %v291 = vmax.f32 %v193, %v242
  %v292 = vmax.f32 %v194, %v243
  %v293 = vmax.f32 %v195, %v244
  %v294 = vmax.f32 %v196, %v245
  %v295 = vmax.f32 %v197, %v246
  %v296 = vmax.f32 %v198, %v247
  %v297 = vmax.f32 %v199, %v248
  %v298 = vmax.f32 %v200, %v249
  %v299 = vmax.f32 %v201, %v250
  %v300 = vmax.f32 %v202, %v251
  %v301 = vmax.f32 %v203, %v252
  %v302 = vmax.f32 %v204, %v253
  %v303 = vmax.f32 %v205, %v254
  %v304 = vmax.f32 %v206, %v255
  %v305 = vmax.f32 %v207, %v256
  %v306 = vmax.f32 %v208, %v257
  %v307 = vmax.f32 %v209, %v258
  %v308 = vmax.f32 %v210, %v259
  %v309 = vmax.f32 %v211, %v260
  %v310 = vmax.f32 %v212, %v261
  %v311 = vmax.f32 %v115, %v262
  %v312 = vmax.f32 %v116, %v263
  %v313 = vmax.f32 %v117, %v264
  %v314 = vmax.f32 %v118, %v265
  %v315 = vmax.f32 %v119, %v266
  %v316 = vmax.f32 %v120, %v267
  %v317 = vmax.f32 %v121, %v268
  %v318 = vmax.f32 %v122, %v269
  %v319 = vmax.f32 %v123, %v270
  %v320 = vmax.f32 %v124, %v271
  %v321 = vmax.f32 %v125, %v272
  %v322 = vmax.f32 %v126, %v273
  %v323 = vmax.f32 %v127, %v274
  %v324 = vmax.f32 %v128, %v275
  %v325 = vmax.f32 %v129, %v276
  %v326 = vmax.f32 %v130, %v277
  %v327 = vmax.f32 %v131, %v278
  %v328 = vmax.f32 %v132, %v279
  %v329 = vmax.f32 %v133, %v280
  %v330 = vmax.f32 %v134, %v281
  %v331 = vmax.f32 %v135, %v282
  %v332 = vmax.f32 %v136, %v283
  %v333 = vmax.f32 %v137, %v284
  %v334 = vmax.f32 %v138, %v285
  %v335 = vmax.f32 %v139, %v286
  %v336 = vmax.f32 %v140, %v287
  %v337 = vmax.f32 %v141, %v288
  %v338 = vmax.f32 %v142, %v289
  %v339 = vmax.f32 %v143, %v290
  %v340 = vmax.f32 %v144, %v291
  %v341 = vmax.f32 %v145, %v292
  %v342 = vmax.f32 %v146, %v293
  %v343 = vmax.f32 %v147, %v294
  %v344 = vmax.f32 %v148, %v295
  %v345 = vmax.f32 %v149, %v296
  %v346 = vmax.f32 %v150, %v297
  %v347 = vmax.f32 %v151, %v298
  %v348 = vmax.f32 %v152, %v299
  %v349 = vmax.f32 %v153, %v300
  %v350 = vmax.f32 %v154, %v301
  %v351 = vmax.f32 %v155, %v302
  %v352 = vmax.f32 %v156, %v303
  %v353 = vmax.f32 %v157, %v304
  %v354 = vmax.f32 %v158, %v305
  %v355 = vmax.f32 %v159, %v306
  %v356 = vmax.f32 %v160, %v307
  %v357 = vmax.f32 %v161, %v308
  %v358 = vmax.f32 %v162, %v309
  %v359 = vmax.f32 %v163, %v310
  %360 = vst [vmem:[%s4] sm:$0xff] %v311
  %361 = vst [vmem:[%s4 + $0x8] sm:$0xff] %v312
  %362 = vst [vmem:[%s4 + $0x10] sm:$0xff] %v313
  %363 = vst [vmem:[%s4 + $0x18] sm:$0xff] %v314
  %364 = vst [vmem:[%s4 + $0x20] sm:$0xff] %v315
  %365 = vst [vmem:[%s4 + $0x28] sm:$0xff] %v316
  %366 = vst [vmem:[%s4 + $0x30] sm:$0xff] %v317
  %367 = vst [vmem:[%s4 + $0x38] sm:$0xff] %v318
  %368 = vst [vmem:[%s4 + $0x40] sm:$0xff] %v319
  %369 = vst [vmem:[%s4 + $0x48] sm:$0xff] %v320
  %370 = vst [vmem:[%s4 + $0x50] sm:$0xff] %v321
  %371 = vst [vmem:[%s4 + $0x58] sm:$0xff] %v322
  %372 = vst [vmem:[%s4 + $0x60] sm:$0xff] %v323
  %373 = vst [vmem:[%s4 + $0x68] sm:$0xff] %v324
  %374 = vst [vmem:[%s4 + $0x70] sm:$0xff] %v325
  %375 = vst [vmem:[%s4 + $0x78] sm:$0xff] %v326
  %376 = vst [vmem:[%s4 + $0x80] sm:$0xff] %v327
  %377 = vst [vmem:[%s4 + $0x88] sm:$0xff] %v328
  %378 = vst [vmem:[%s4 + $0x90] sm:$0xff] %v329
  %379 = vst [vmem:[%s4 + $0x98] sm:$0xff] %v330
  %380 = vst [vmem:[%s4 + $0xa0] sm:$0xff] %v331
  %381 = vst [vmem:[%s4 + $0xa8] sm:$0xff] %v332
  %382 = vst [vmem:[%s4 + $0xb0] sm:$0xff] %v333
  %383 = vst [vmem:[%s4 + $0xb8] sm:$0xff] %v334
  %384 = vst [vmem:[%s4 + $0xc0] sm:$0xff] %v335
  %385 = vst [vmem:[%s4 + $0xc8] sm:$0xff] %v336
  %386 = vst [vmem:[%s4 + $0xd0] sm:$0xff] %v337
  %387 = vst [vmem:[%s4 + $0xd8] sm:$0xff] %v338
  %388 = vst [vmem:[%s4 + $0xe0] sm:$0xff] %v339
  %389 = vst [vmem:[%s4 + $0xe8] sm:$0xff] %v340
  %390 = vst [vmem:[%s4 + $0xf0] sm:$0xff] %v341
  %391 = vst [vmem:[%s4 + $0xf8] sm:$0xff] %v342
  %392 = vst [vmem:[%s4 + $0x100] sm:$0xff] %v343
  %393 = vst [vmem:[%s4 + $0x108] sm:$0xff] %v344
  %394 = vst [vmem:[%s4 + $0x110] sm:$0xff] %v345
  %395 = vst [vmem:[%s4 + $0x118] sm:$0xff] %v346
  %396 = vst [vmem:[%s4 + $0x120] sm:$0xff] %v347
  %397 = vst [vmem:[%s4 + $0x128] sm:$0xff] %v348
  %398 = vst [vmem:[%s4 + $0x130] sm:$0xff] %v349
  %399 = vst [vmem:[%s4 + $0x138] sm:$0xff] %v350
  %400 = vst [vmem:[%s4 + $0x140] sm:$0xff] %v351
  %401 = vst [vmem:[%s4 + $0x148] sm:$0xff] %v352
  %402 = vst [vmem:[%s4 + $0x150] sm:$0xff] %v353
  %403 = vst [vmem:[%s4 + $0x158] sm:$0xff] %v354
  %404 = vst [vmem:[%s4 + $0x160] sm:$0xff] %v355
  %405 = vst [vmem:[%s4 + $0x168] sm:$0xff] %v356
  %406 = vst [vmem:[%s4 + $0x170] sm:$0xff] %v357
  %407 = vst [vmem:[%s4 + $0x178] sm:$0xff] %v358
  %408 = vst [vmem:[%s4 + $0x180] sm:$0xff] %v359
  // Predicated region
  $region18: #{cnn_forward.6} parent=0 // pred_check
    _
  $region19: #{cnn_forward.6} parent=0 // pred_check_branch
    %410 = sbr.rel (0) target = $region21
  $region20: #{cnn_forward.6} parent=0 // pred_region
    _
  $region21: #{cnn_forward.6} parent=0 // pred_fallthru
    _
  // Predicated region
  $region22: #{cnn_forward.6} parent=0 // pred_check
    _
  $region23: #{cnn_forward.6} parent=0 // pred_check_branch
    %412 = sbr.rel (0) target = $region25
  $region24: #{cnn_forward.6} parent=0 // pred_region
    _
  $region25: #{cnn_forward.6} parent=0 // pred_fallthru
    _

// kernel: cnn_forward.5
$region0: #{cnn_forward.5}
  #allocation0 [shape = 'u32[]', space=smem, size = 0x4, offset = 0x4, fixed_abs, tag = 'smem constant byte address 0x4 - core index']
  #allocation1 [shape = 'u32[144,128]{1,0:T(1,128)}', space=vmem, size = 0x12000, scoped, tag = 'internal scratch']
  %s0 = inlined_call_operand.vmem [shape: f32[2048,80], index: 0, kind: input, shape index: {}]
  %s1 = inlined_call_operand.vmem [shape: f32[80,128], index: 1, kind: input, shape index: {}]
  %s2 = inlined_call_operand.vmem [shape: f32[1,128], index: 2, kind: input, shape index: {}]
  %s3 = inlined_call_operand.vmem [shape: f32[2048,128], index: 3, kind: output, shape index: {}]
  %s4 = sld [smem:[#allocation0]]
  $region45: #{cnn_forward.5} parent=0
    _
  %s6 = ssub.s32 1, %s4
  %s7 = scalar_select 0, %s6, %s4
  loop: start=0, step=1, limit=4
  $region2: #{cnn_forward.5} parent=0 // loop_pre_header
    _
  $region3: #{cnn_forward.5} parent=0 // loop_header
    %s9 = sphi 0, %s13
    %p10 = scmp.ge.s32.totalorder %s9, 4
    %s19 = sphi 0, %s21
    %s22 = sphi 0, %s19
    %s23 = sphi 0, %s22
    %s39 = sphi 0, %s23
    %s43 = sphi 0, %s43
    %s45 = sphi 0, %s43
    %s46 = sphi 0, %s45
    %s60 = sphi 0, %s46
    %s64 = sphi 0, %s64
    %s66 = sphi 0, %s64
    %s67 = sphi 0, %s66
    %s81 = sphi 0, %s67
    %s87 = sphi 0, %s89
    %s90 = sphi 0, %s87
    %s91 = sphi 0, %s90
    %s107 = sphi 0, %s91
  $region4: #{cnn_forward.5} parent=0 // loop_header_branch
    %12 = sbr.rel (%p10) target = $region8
  $region5: #{cnn_forward.5} parent=0 // loop_body
    %s14 = ssub.s32 %s9, 1
    %s15 = ssub.s32 %s9, 2
    %s16 = sadd.s32 %s9, 1
    %s17 = ssub.s32 %s9, %s16
    %p18 = scmp.eq.s32.totalorder %s17, 0
    %s20 = sadd.s32 %s19, 1
    %s21 = scalar_select %p18, %s19, %s20
    %p24 = pneg %p18
    %p25 = scmp.eq.s32.totalorder %s9, 1
    %p26 = por %p24, %p25
    %p27 = scmp.ne.s32.totalorder %s19, %s22
    %p28 = scmp.eq.s32.totalorder %s9, 0
    %p29 = por %p27, %p28
    %p30 = scmp.ne.s32.totalorder %s19, %s22
    %p31 = scmp.eq.s32.totalorder %s14, 1
    %p32 = por %p30, %p31
    %p33 = scmp.ne.s32.totalorder %s22, %s23
    %p34 = scmp.eq.s32.totalorder %s14, 0
    %p35 = por %p33, %p34
    %p36 = scmp.ne.s32.totalorder %s22, %s23
    %p37 = scmp.eq.s32.totalorder %s15, 1
    %p38 = por %p36, %p37
    %p40 = scmp.ne.s32.totalorder %s23, %s39
    %p41 = scmp.eq.s32.totalorder %s15, 0
    %p42 = por %p40, %p41
    %s44 = sadd.s32 %s43, 1
    %p47 = scmp.eq.s32.totalorder %s9, 1
    %p48 = scmp.ne.s32.totalorder %s43, %s45
    %p49 = scmp.eq.s32.totalorder %s9, 0
    %p50 = por %p48, %p49
    %p51 = scmp.ne.s32.totalorder %s43, %s45
    %p52 = scmp.eq.s32.totalorder %s14, 1
    %p53 = por %p51, %p52
    %p54 = scmp.ne.s32.totalorder %s45, %s46
    %p55 = scmp.eq.s32.totalorder %s14, 0
    %p56 = por %p54, %p55
    %p57 = scmp.ne.s32.totalorder %s45, %s46
    %p58 = scmp.eq.s32.totalorder %s15, 1
    %p59 = por %p57, %p58
    %p61 = scmp.ne.s32.totalorder %s46, %s60
    %p62 = scmp.eq.s32.totalorder %s15, 0
    %p63 = por %p61, %p62
    %s65 = sadd.s32 %s64, 1
    %p68 = scmp.eq.s32.totalorder %s9, 1
    %p69 = scmp.ne.s32.totalorder %s64, %s66
    %p70 = scmp.eq.s32.totalorder %s9, 0
    %p71 = por %p69, %p70
    %p72 = scmp.ne.s32.totalorder %s64, %s66
    %p73 = scmp.eq.s32.totalorder %s14, 1
    %p74 = por %p72, %p73
    %p75 = scmp.ne.s32.totalorder %s66, %s67
    %p76 = scmp.eq.s32.totalorder %s14, 0
    %p77 = por %p75, %p76
    %p78 = scmp.ne.s32.totalorder %s66, %s67
    %p79 = scmp.eq.s32.totalorder %s15, 1
    %p80 = por %p78, %p79
    %p82 = scmp.ne.s32.totalorder %s67, %s81
    %p83 = scmp.eq.s32.totalorder %s15, 0
    %p84 = por %p82, %p83
    %s85 = ssub.s32 %s9, %s16
    %p86 = scmp.eq.s32.totalorder %s85, 0
    %s88 = sadd.s32 %s87, 1
    %s89 = scalar_select %p86, %s87, %s88
    %p92 = pneg %p86
    %p93 = scmp.eq.s32.totalorder %s9, 1
    %p94 = por %p92, %p93
    %p95 = scmp.ne.s32.totalorder %s87, %s90
    %p96 = scmp.eq.s32.totalorder %s9, 0
    %p97 = por %p95, %p96
    %p98 = scmp.ne.s32.totalorder %s87, %s90
    %p99 = scmp.eq.s32.totalorder %s14, 1
    %p100 = por %p98, %p99
    %p101 = scmp.ne.s32.totalorder %s90, %s91
    %p102 = scmp.eq.s32.totalorder %s14, 0
    %p103 = por %p101, %p102
    %p104 = scmp.ne.s32.totalorder %s90, %s91
    %p105 = scmp.eq.s32.totalorder %s15, 1
    %p106 = por %p104, %p105
    %p108 = scmp.ne.s32.totalorder %s91, %s107
    %p109 = scmp.eq.s32.totalorder %s15, 0
    %p110 = por %p108, %p109
    %p111 = scmp.le.s32.totalorder 1, %s9
    %p112 = scmp.lt.s32.totalorder %s9, 3
    %p113 = pnand %p111, %p112
    %p114 = pneg %p113
    // Predicated region
    $region9: #{cnn_forward.5} parent=5 // pred_check
      _
    $region10: #{cnn_forward.5} parent=5 // pred_check_branch
      %116 = sbr.rel (%p113) target = $region12
    $region11: #{cnn_forward.5} parent=5 // pred_region
      %s117 = ssub.s32 %s9, 1
      // Predicated region
      $region13: #{cnn_forward.5} parent=11 // pred_check
        %p118 = pneg %p56
      $region14: #{cnn_forward.5} parent=11 // pred_check_branch
        %120 = sbr.rel (%p118) target = $region16
      $region15: #{cnn_forward.5} parent=11 // pred_region
        _
      $region16: #{cnn_forward.5} parent=11 // pred_fallthru
        _
      // Predicated region
      $region17: #{cnn_forward.5} parent=11 // pred_check
        %p121 = pneg %p77
      $region18: #{cnn_forward.5} parent=11 // pred_check_branch
        %123 = sbr.rel (%p121) target = $region20
      $region19: #{cnn_forward.5} parent=11 // pred_region
        _
      $region20: #{cnn_forward.5} parent=11 // pred_fallthru
        _
    $region12: #{cnn_forward.5} parent=5 // pred_fallthru
      _
    %p124 = scmp.lt.s32.totalorder %s9, 2
    // Predicated region
    $region21: #{cnn_forward.5} parent=5 // pred_check
      %p125 = pneg %p124
    $region22: #{cnn_forward.5} parent=5 // pred_check_branch
      %127 = sbr.rel (%p125) target = $region24
    $region23: #{cnn_forward.5} parent=5 // pred_region
      // Predicated region
      $region25: #{cnn_forward.5} parent=23 // pred_check
        %p128 = pneg %p29
      $region26: #{cnn_forward.5} parent=23 // pred_check_branch
        %130 = sbr.rel (%p128) target = $region28
      $region27: #{cnn_forward.5} parent=23 // pred_region
        %s131 = smul.u32 128, %s9
        %p132 = scmp.lt.s32.totalorder %s131, 255
        %s133 = scalar_select %p132, %s131, 255
        %s134 = smul.addr %s133, 8
        %s135 = scalar_lea.vmem %s0, %s134
        %s136 = smul.u32 128, %s9
      $region28: #{cnn_forward.5} parent=23 // pred_fallthru
        _
    $region24: #{cnn_forward.5} parent=5 // pred_fallthru
      _
    %p137 = scmp.le.s32.totalorder 1, %s9
    %p138 = scmp.lt.s32.totalorder %s9, 3
    %p139 = pnand %p137, %p138
    %p140 = pneg %p139
    // Predicated region
    $region29: #{cnn_forward.5} parent=5 // pred_check
      _
    $region30: #{cnn_forward.5} parent=5 // pred_check_branch
      %142 = sbr.rel (%p139) target = $region32
    $region31: #{cnn_forward.5} parent=5 // pred_region
      %s143 = ssub.s32 %s9, 1
      %s144 = smul.u32 128, %s14
      %p145 = scmp.lt.s32.totalorder %s144, 255
      %s146 = scalar_select %p145, %s144, 255
      %s147 = smul.addr %s146, 8
      %s148 = scalar_lea.vmem %s0, %s147
      %p149 = pneg %p35
      %p150 = pneg %p32
      %p151 = pneg %p56
      %p152 = pneg %p53
      %p153 = pneg %p77
      %p154 = pneg %p74
      %p155 = pneg %p103
      %p156 = pneg %p100
      %s157 = smul.u32 128, %s14
      %p158 = scmp.lt.s32.totalorder %s157, 255
      %s159 = scalar_select %p158, %s157, 255
      %s160 = smul.addr %s159, 8
      %s161 = scalar_lea.vmem %s3, %s160
      %s162 = smul.u32 128, %s14
      %p163 = scmp.lt.s32.totalorder %s162, 255
      %s164 = scalar_select %p163, %s162, 255
      %s165 = smul.addr %s164, 8
      %s166 = scalar_lea.vmem %s0, %s165
      %s167 = smul.u32 128, %s14
      %s168 = smul.u32 128, %s14
      %p169 = scmp.lt.s32.totalorder %s168, 255
      %s170 = scalar_select %p169, %s168, 255
      %s171 = smul.addr %s170, 8
      %s172 = scalar_lea.vmem %s3, %s171
      %s173 = smul.u32 128, %s14
      %v174 = vld [vmem:[%s166] sm:$0xff]
      %v175 = vld [vmem:[%s166 + $0x8] sm:$0xff]
      %v176 = vld [vmem:[%s166 + $0x10] sm:$0xff]
      %v177 = vld [vmem:[%s166 + $0x18] sm:$0xff]
      %v178 = vld [vmem:[%s166 + $0x20] sm:$0xff]
      %v179 = vld [vmem:[%s166 + $0x28] sm:$0xff]
      %v180 = vld [vmem:[%s166 + $0x30] sm:$0xff]
      %v181 = vld [vmem:[%s166 + $0x38] sm:$0xff]
      %v182 = vld [vmem:[%s166 + $0x40] sm:$0xff]
      %v183 = vld [vmem:[%s166 + $0x48] sm:$0xff]
      %v184 = vld [vmem:[%s166 + $0x50] sm:$0xff]
      %v185 = vld [vmem:[%s166 + $0x58] sm:$0xff]
      %v186 = vld [vmem:[%s166 + $0x60] sm:$0xff]
      %v187 = vld [vmem:[%s166 + $0x68] sm:$0xff]
      %v188 = vld [vmem:[%s166 + $0x70] sm:$0xff]
      %v189 = vld [vmem:[%s166 + $0x78] sm:$0xff]
      %v190 = vld [vmem:[%s166 + $0x80] sm:$0xff]
      %v191 = vld [vmem:[%s166 + $0x88] sm:$0xff]
      %v192 = vld [vmem:[%s166 + $0x90] sm:$0xff]
      %v193 = vld [vmem:[%s166 + $0x98] sm:$0xff]
      %v194 = vld [vmem:[%s166 + $0xa0] sm:$0xff]
      %v195 = vld [vmem:[%s166 + $0xa8] sm:$0xff]
      %v196 = vld [vmem:[%s166 + $0xb0] sm:$0xff]
      %v197 = vld [vmem:[%s166 + $0xb8] sm:$0xff]
      %v198 = vld [vmem:[%s166 + $0xc0] sm:$0xff]
      %v199 = vld [vmem:[%s166 + $0xc8] sm:$0xff]
      %v200 = vld [vmem:[%s166 + $0xd0] sm:$0xff]
      %v201 = vld [vmem:[%s166 + $0xd8] sm:$0xff]
      %v202 = vld [vmem:[%s166 + $0xe0] sm:$0xff]
      %v203 = vld [vmem:[%s166 + $0xe8] sm:$0xff]
      %v204 = vld [vmem:[%s166 + $0xf0] sm:$0xff]
      %v205 = vld [vmem:[%s166 + $0xf8] sm:$0xff]
      %v206 = vld [vmem:[%s166 + $0x100] sm:$0xff]
      %v207 = vld [vmem:[%s166 + $0x108] sm:$0xff]
      %v208 = vld [vmem:[%s166 + $0x110] sm:$0xff]
      %v209 = vld [vmem:[%s166 + $0x118] sm:$0xff]
      %v210 = vld [vmem:[%s166 + $0x120] sm:$0xff]
      %v211 = vld [vmem:[%s166 + $0x128] sm:$0xff]
      %v212 = vld [vmem:[%s166 + $0x130] sm:$0xff]
      %v213 = vld [vmem:[%s166 + $0x138] sm:$0xff]
      %v214 = vld [vmem:[%s166 + $0x140] sm:$0xff]
      %v215 = vld [vmem:[%s166 + $0x148] sm:$0xff]
      %v216 = vld [vmem:[%s166 + $0x150] sm:$0xff]
      %v217 = vld [vmem:[%s166 + $0x158] sm:$0xff]
      %v218 = vld [vmem:[%s166 + $0x160] sm:$0xff]
      %v219 = vld [vmem:[%s166 + $0x168] sm:$0xff]
      %v220 = vld [vmem:[%s166 + $0x170] sm:$0xff]
      %v221 = vld [vmem:[%s166 + $0x178] sm:$0xff]
      %v222 = vld [vmem:[%s166 + $0x180] sm:$0xff]
      %v223 = vld [vmem:[%s166 + $0x188] sm:$0xff]
      %v224 = vld [vmem:[%s166 + $0x190] sm:$0xff]
      %v225 = vld [vmem:[%s166 + $0x198] sm:$0xff]
      %v226 = vld [vmem:[%s166 + $0x1a0] sm:$0xff]
      %v227 = vld [vmem:[%s166 + $0x1a8] sm:$0xff]
      %v228 = vld [vmem:[%s166 + $0x1b0] sm:$0xff]
      %v229 = vld [vmem:[%s166 + $0x1b8] sm:$0xff]
      %v230 = vld [vmem:[%s166 + $0x1c0] sm:$0xff]
      %v231 = vld [vmem:[%s166 + $0x1c8] sm:$0xff]
      %v232 = vld [vmem:[%s166 + $0x1d0] sm:$0xff]
      %v233 = vld [vmem:[%s166 + $0x1d8] sm:$0xff]
      %v234 = vld [vmem:[%s166 + $0x1e0] sm:$0xff]
      %v235 = vld [vmem:[%s166 + $0x1e8] sm:$0xff]
      %v236 = vld [vmem:[%s166 + $0x1f0] sm:$0xff]
      %v237 = vld [vmem:[%s166 + $0x1f8] sm:$0xff]
      %v238 = vld [vmem:[%s166 + $0x200] sm:$0xff]
      %v239 = vld [vmem:[%s166 + $0x208] sm:$0xff]
      %v240 = vld [vmem:[%s166 + $0x210] sm:$0xff]
      %v241 = vld [vmem:[%s166 + $0x218] sm:$0xff]
      %v242 = vld [vmem:[%s166 + $0x220] sm:$0xff]
      %v243 = vld [vmem:[%s166 + $0x228] sm:$0xff]
      %v244 = vld [vmem:[%s166 + $0x230] sm:$0xff]
      %v245 = vld [vmem:[%s166 + $0x238] sm:$0xff]
      %v246 = vld [vmem:[%s166 + $0x240] sm:$0xff]
      %v247 = vld [vmem:[%s166 + $0x248] sm:$0xff]
      %v248 = vld [vmem:[%s166 + $0x250] sm:$0xff]
      %v249 = vld [vmem:[%s166 + $0x258] sm:$0xff]
      %v250 = vld [vmem:[%s166 + $0x260] sm:$0xff]
      %v251 = vld [vmem:[%s166 + $0x268] sm:$0xff]
      %v252 = vld [vmem:[%s166 + $0x270] sm:$0xff]
      %v253 = vld [vmem:[%s166 + $0x278] sm:$0xff]
      %v254 = vld [vmem:[%s166 + $0x280] sm:$0xff]
      %v255 = vld [vmem:[%s166 + $0x288] sm:$0xff]
      %v256 = vld [vmem:[%s166 + $0x290] sm:$0xff]
      %v257 = vld [vmem:[%s166 + $0x298] sm:$0xff]
      %v258 = vld [vmem:[%s166 + $0x2a0] sm:$0xff]
      %v259 = vld [vmem:[%s166 + $0x2a8] sm:$0xff]
      %v260 = vld [vmem:[%s166 + $0x2b0] sm:$0xff]
      %v261 = vld [vmem:[%s166 + $0x2b8] sm:$0xff]
      %v262 = vld [vmem:[%s166 + $0x2c0] sm:$0xff]
      %v263 = vld [vmem:[%s166 + $0x2c8] sm:$0xff]
      %v264 = vld [vmem:[%s166 + $0x2d0] sm:$0xff]
      %v265 = vld [vmem:[%s166 + $0x2d8] sm:$0xff]
      %v266 = vld [vmem:[%s166 + $0x2e0] sm:$0xff]
      %v267 = vld [vmem:[%s166 + $0x2e8] sm:$0xff]
      %v268 = vld [vmem:[%s166 + $0x2f0] sm:$0xff]
      %v269 = vld [vmem:[%s166 + $0x2f8] sm:$0xff]
      %v270 = vld [vmem:[%s166 + $0x300] sm:$0xff]
      %v271 = vld [vmem:[%s166 + $0x308] sm:$0xff]
      %v272 = vld [vmem:[%s166 + $0x310] sm:$0xff]
      %v273 = vld [vmem:[%s166 + $0x318] sm:$0xff]
      %v274 = vld [vmem:[%s166 + $0x320] sm:$0xff]
      %v275 = vld [vmem:[%s166 + $0x328] sm:$0xff]
      %v276 = vld [vmem:[%s166 + $0x330] sm:$0xff]
      %v277 = vld [vmem:[%s166 + $0x338] sm:$0xff]
      %v278 = vld [vmem:[%s166 + $0x340] sm:$0xff]
      %v279 = vld [vmem:[%s166 + $0x348] sm:$0xff]
      %v280 = vld [vmem:[%s166 + $0x350] sm:$0xff]
      %v281 = vld [vmem:[%s166 + $0x358] sm:$0xff]
      %v282 = vld [vmem:[%s166 + $0x360] sm:$0xff]
      %v283 = vld [vmem:[%s166 + $0x368] sm:$0xff]
      %v284 = vld [vmem:[%s166 + $0x370] sm:$0xff]
      %v285 = vld [vmem:[%s166 + $0x378] sm:$0xff]
      %v286 = vld [vmem:[%s166 + $0x380] sm:$0xff]
      %v287 = vld [vmem:[%s166 + $0x388] sm:$0xff]
      %v288 = vld [vmem:[%s166 + $0x390] sm:$0xff]
      %v289 = vld [vmem:[%s166 + $0x398] sm:$0xff]
      %v290 = vld [vmem:[%s166 + $0x3a0] sm:$0xff]
      %v291 = vld [vmem:[%s166 + $0x3a8] sm:$0xff]
      %v292 = vld [vmem:[%s166 + $0x3b0] sm:$0xff]
      %v293 = vld [vmem:[%s166 + $0x3b8] sm:$0xff]
      %v294 = vld [vmem:[%s166 + $0x3c0] sm:$0xff]
      %v295 = vld [vmem:[%s166 + $0x3c8] sm:$0xff]
      %v296 = vld [vmem:[%s166 + $0x3d0] sm:$0xff]
      %v297 = vld [vmem:[%s166 + $0x3d8] sm:$0xff]
      %v298 = vld [vmem:[%s166 + $0x3e0] sm:$0xff]
      %v299 = vld [vmem:[%s166 + $0x3e8] sm:$0xff]
      %v300 = vld [vmem:[%s166 + $0x3f0] sm:$0xff]
      %v301 = vld [vmem:[%s166 + $0x3f8] sm:$0xff]
      %v302 = vld [vmem:[%s1] sm:$0xff]
      %v303 = vld [vmem:[%s1 + $0x8] sm:$0xff]
      %v304 = vld [vmem:[%s1 + $0x10] sm:$0xff]
      %v305 = vld [vmem:[%s1 + $0x18] sm:$0xff]
      %v306 = vld [vmem:[%s1 + $0x20] sm:$0xff]
      %v307 = vld [vmem:[%s1 + $0x28] sm:$0xff]
      %v308 = vld [vmem:[%s1 + $0x30] sm:$0xff]
      %v309 = vld [vmem:[%s1 + $0x38] sm:$0xff]
      %v310 = vld [vmem:[%s1 + $0x40] sm:$0xff]
      %v311 = vld [vmem:[%s1 + $0x48] sm:$0xff]
      %v312 = vld [vmem:[%s2] sm:$0x1]
      %v314 = vlaneseq
      %v315 = vshrl.u32 %v314, 7
      %v316 = vsub.s32 0, %v315
      %v317 = vrot.slane %v312, %v316
      %vm319 = vcmask 654336
      %v321 = vsel %vm319, %v174, 0
      %v324 = vsel %vm319, %v175, 0
      %v327 = vsel %vm319, %v176, 0
      %v330 = vsel %vm319, %v177, 0
      %v333 = vsel %vm319, %v178, 0
      %v336 = vsel %vm319, %v179, 0
      %v339 = vsel %vm319, %v180, 0
      %v342 = vsel %vm319, %v181, 0
      %v345 = vsel %vm319, %v182, 0
      %v348 = vsel %vm319, %v183, 0
      %v351 = vsel %vm319, %v184, 0
      %v354 = vsel %vm319, %v185, 0
      %v357 = vsel %vm319, %v186, 0
      %v360 = vsel %vm319, %v187, 0
      %v363 = vsel %vm319, %v188, 0
      %v366 = vsel %vm319, %v189, 0
      %v369 = vsel %vm319, %v190, 0
      %v372 = vsel %vm319, %v191, 0
      %v375 = vsel %vm319, %v192, 0
      %v378 = vsel %vm319, %v193, 0
      %v381 = vsel %vm319, %v194, 0
      %v384 = vsel %vm319, %v195, 0
      %v387 = vsel %vm319, %v196, 0
      %v390 = vsel %vm319, %v197, 0
      %v393 = vsel %vm319, %v198, 0
      %v396 = vsel %vm319, %v199, 0
      %v399 = vsel %vm319, %v200, 0
      %v402 = vsel %vm319, %v201, 0
      %v405 = vsel %vm319, %v202, 0
      %v408 = vsel %vm319, %v203, 0
      %v411 = vsel %vm319, %v204, 0
      %v414 = vsel %vm319, %v205, 0
      %v417 = vsel %vm319, %v206, 0
      %v420 = vsel %vm319, %v207, 0
      %v423 = vsel %vm319, %v208, 0
      %v426 = vsel %vm319, %v209, 0
      %v429 = vsel %vm319, %v210, 0
      %v432 = vsel %vm319, %v211, 0
      %v435 = vsel %vm319, %v212, 0
      %v438 = vsel %vm319, %v213, 0
      %v441 = vsel %vm319, %v214, 0
      %v444 = vsel %vm319, %v215, 0
      %v447 = vsel %vm319, %v216, 0
      %v450 = vsel %vm319, %v217, 0
      %v453 = vsel %vm319, %v218, 0
      %v456 = vsel %vm319, %v219, 0
      %v459 = vsel %vm319, %v220, 0
      %v462 = vsel %vm319, %v221, 0
      %v465 = vsel %vm319, %v222, 0
      %v468 = vsel %vm319, %v223, 0
      %v471 = vsel %vm319, %v224, 0
      %v474 = vsel %vm319, %v225, 0
      %v477 = vsel %vm319, %v226, 0
      %v480 = vsel %vm319, %v227, 0
      %v483 = vsel %vm319, %v228, 0
      %v486 = vsel %vm319, %v229, 0
      %v489 = vsel %vm319, %v230, 0
      %v492 = vsel %vm319, %v231, 0
      %v495 = vsel %vm319, %v232, 0
      %v498 = vsel %vm319, %v233, 0
      %v501 = vsel %vm319, %v234, 0
      %v504 = vsel %vm319, %v235, 0
      %v507 = vsel %vm319, %v236, 0
      %v510 = vsel %vm319, %v237, 0
      %v513 = vsel %vm319, %v238, 0
      %v516 = vsel %vm319, %v239, 0
      %v519 = vsel %vm319, %v240, 0
      %v522 = vsel %vm319, %v241, 0
      %v525 = vsel %vm319, %v242, 0
      %v528 = vsel %vm319, %v243, 0
      %v531 = vsel %vm319, %v244, 0
      %v534 = vsel %vm319, %v245, 0
      %v537 = vsel %vm319, %v246, 0
      %v540 = vsel %vm319, %v247, 0
      %v543 = vsel %vm319, %v248, 0
      %v546 = vsel %vm319, %v249, 0
      %v549 = vsel %vm319, %v250, 0
      %v552 = vsel %vm319, %v251, 0
      %v555 = vsel %vm319, %v252, 0
      %v558 = vsel %vm319, %v253, 0
      %v561 = vsel %vm319, %v254, 0
      %v564 = vsel %vm319, %v255, 0
      %v567 = vsel %vm319, %v256, 0
      %v570 = vsel %vm319, %v257, 0
      %v573 = vsel %vm319, %v258, 0
      %v576 = vsel %vm319, %v259, 0
      %v579 = vsel %vm319, %v260, 0
      %v582 = vsel %vm319, %v261, 0
      %v585 = vsel %vm319, %v262, 0
      %v588 = vsel %vm319, %v263, 0
      %v591 = vsel %vm319, %v264, 0
      %v594 = vsel %vm319, %v265, 0
      %v597 = vsel %vm319, %v266, 0
      %v600 = vsel %vm319, %v267, 0
      %v603 = vsel %vm319, %v268, 0
      %v606 = vsel %vm319, %v269, 0
      %v609 = vsel %vm319, %v270, 0
      %v612 = vsel %vm319, %v271, 0
      %v615 = vsel %vm319, %v272, 0
      %v618 = vsel %vm319, %v273, 0
      %v621 = vsel %vm319, %v274, 0
      %v624 = vsel %vm319, %v275, 0
      %v627 = vsel %vm319, %v276, 0
      %v630 = vsel %vm319, %v277, 0
      %v633 = vsel %vm319, %v278, 0
      %v636 = vsel %vm319, %v279, 0
      %v639 = vsel %vm319, %v280, 0
      %v642 = vsel %vm319, %v281, 0
      %v645 = vsel %vm319, %v282, 0
      %v648 = vsel %vm319, %v283, 0
      %v651 = vsel %vm319, %v284, 0
      %v654 = vsel %vm319, %v285, 0
      %v657 = vsel %vm319, %v286, 0
      %v660 = vsel %vm319, %v287, 0
      %v663 = vsel %vm319, %v288, 0
      %v666 = vsel %vm319, %v289, 0
      %v669 = vsel %vm319, %v290, 0
      %v672 = vsel %vm319, %v291, 0
      %v675 = vsel %vm319, %v292, 0
      %v678 = vsel %vm319, %v293, 0
      %v681 = vsel %vm319, %v294, 0
      %v684 = vsel %vm319, %v295, 0
      %v687 = vsel %vm319, %v296, 0
      %v690 = vsel %vm319, %v297, 0
      %v693 = vsel %vm319, %v298, 0
      %v696 = vsel %vm319, %v299, 0
      %v699 = vsel %vm319, %v300, 0
      %v702 = vsel %vm319, %v301, 0
      %704 = vmatprep.subr.mxu0 0.0
      %705 = vmatpush1.msra.mxu0 %v302
      %706 = vmatprep.subr.mxu0 0.0
      %707 = vmatpush1.msra.mxu0 %v303
      %708 = vmatprep.subr.mxu0 0.0
      %709 = vmatpush1.msra.mxu0 %v304
      %710 = vmatprep.subr.mxu0 0.0
      %711 = vmatpush1.msra.mxu0 %v305
      %712 = vmatprep.subr.mxu0 0.0
      %713 = vmatpush1.msra.mxu0 %v306
      %714 = vmatprep.subr.mxu0 0.0
      %715 = vmatpush1.msra.mxu0 %v307
      %716 = vmatprep.subr.mxu0 0.0
      %717 = vmatpush1.msra.mxu0 %v308
      %718 = vmatprep.subr.mxu0 0.0
      %719 = vmatpush1.msra.mxu0 %v309
      %720 = vmatprep.subr.mxu0 0.0
      %721 = vmatpush1.msra.mxu0 %v310
      %722 = vmatprep.subr.mxu0 0.0
      %723 = vmatpush1.msra.mxu0 %v311
      %724 = vmatprep.subr.mxu0 0.0
      %725 = vmatpush1.msra.mxu0 0.0
      %726 = vmatprep.subr.mxu0 0.0
      %727 = vmatpush1.msra.mxu0 0.0
      %728 = vmatprep.subr.mxu0 0.0
      %729 = vmatpush1.msra.mxu0 0.0
      %730 = vmatprep.subr.mxu0 0.0
      %731 = vmatpush1.msra.mxu0 0.0
      %732 = vmatprep.subr.mxu0 0.0
      %733 = vmatpush1.msra.mxu0 0.0
      %734 = vmatprep.subr.mxu0 0.0
      %735 = vmatpush1.msra.mxu0 0.0
      %736 = vmatprep.subr.mxu0 0.0
      %737 = vmatpush1.msra.mxu0 0.0
      %738 = vmatprep.subr.mxu0 0.0
      %739 = vmatpush1.msra.mxu0 0.0
      %740 = vmatprep.subr.mxu0 0.0
      %741 = vmatpush1.msra.mxu0 0.0
      %742 = vmatprep.subr.mxu0 0.0
      %743 = vmatpush1.msra.mxu0 0.0
      %744 = vmatprep.subr.mxu0 0.0
      %745 = vmatpush1.msra.mxu0 0.0
      %746 = vmatprep.subr.mxu0 0.0
      %747 = vmatpush1.msra.mxu0 0.0
      %748 = vmatprep.subr.mxu0 0.0
      %749 = vmatpush1.msra.mxu0 0.0
      %750 = vmatprep.subr.mxu0 0.0
      %751 = vmatpush1.msra.mxu0 0.0
      %752 = vmatprep.subr.mxu0 0.0
      %753 = vmatpush1.msra.mxu0 0.0
      %754 = vmatprep.subr.mxu0 0.0
      %755 = vmatpush1.msra.mxu0 0.0
      %756 = vmatprep.subr.mxu0 0.0
      %757 = vmatpush1.msra.mxu0 0.0
      %758 = vmatprep.subr.mxu0 0.0
      %759 = vmatpush1.msra.mxu0 0.0
      %760 = vmatprep.subr.mxu0 0.0
      %761 = vmatpush1.msra.mxu0 0.0
      %762 = vmatprep.subr.mxu0 0.0
      %763 = vmatpush1.msra.mxu0 0.0
      %764 = vmatprep.subr.mxu0 0.0
      %765 = vmatpush1.msra.mxu0 0.0
      %766 = vmatprep.subr.mxu0 0.0
      %767 = vmatpush1.msra.mxu0 0.0
      %768 = vmatprep.mubr.f32.mxu0 0.0
      %769 = vmatmul.mubr.f32.gmra.mrb[0].mxu0 %v321
      %v770 = vpop.f32.mrb[0].mxu0
      %v771 = vadd.f32 %v317, %v770
      %v772 = vpop.f32.mrb[0].mxu0
      %773 = vmatprep.mubr.f32.mxu0 0.0
      %774 = vmatmul.mubr.f32.gmra.mrb[0].mxu0 %v324
      %v775 = vpop.f32.mrb[0].mxu0
      %v776 = vadd.f32 %v317, %v775
      %v777 = vpop.f32.mrb[0].mxu0
      %778 = vmatprep.mubr.f32.mxu0 0.0
      %779 = vmatmul.mubr.f32.gmra.mrb[0].mxu0 %v327
      %v780 = vpop.f32.mrb[0].mxu0
      %v781 = vadd.f32 %v317, %v780
      %v782 = vpop.f32.mrb[0].mxu0
      %783 = vmatprep.mubr.f32.mxu0 0.0
      %784 = vmatmul.mubr.f32.gmra.mrb[0].mxu0 %v330
      %v785 = vpop.f32.mrb[0].mxu0
      %v786 = vadd.f32 %v317, %v785
      %v787 = vpop.f32.mrb[0].mxu0
      %788 = vmatprep.mubr.f32.mxu0 0.0
      %789 = vmatmul.mubr.f32.gmra.mrb[0].mxu0 %v333
      %v790 = vpop.f32.mrb[0].mxu0
      %v791 = vadd.f32 %v317, %v790
      %v792 = vpop.f32.mrb[0].mxu0
      %793 = vmatprep.mubr.f32.mxu0 0.0
      %794 = vmatmul.mubr.f32.gmra.mrb[0].mxu0 %v336
      %v795 = vpop.f32.mrb[0].mxu0
      %v796 = vadd.f32 %v317, %v795
      %v797 = vpop.f32.mrb[0].mxu0
      %798 = vmatprep.mubr.f32.mxu0 0.0
      %799 = vmatmul.mubr.f32.gmra.mrb[0].mxu0 %v339
      %v800 = vpop.f32.mrb[0].mxu0
      %v801 = vadd.f32 %v317, %v800
      %v802 = vpop.f32.mrb[0].mxu0
      %803 = vmatprep.mubr.f32.mxu0 0.0
      %804 = vmatmul.mubr.f32.gmra.mrb[0].mxu0 %v342
      %v805 = vpop.f32.mrb[0].mxu0
      %v806 = vadd.f32 %v317, %v805
      %v807 = vpop.f32.mrb[0].mxu0
      %808 = vmatprep.mubr.f32.mxu0 0.0
      %809 = vmatmul.mubr.f32.gmra.mrb[0].mxu0 %v345
      %v810 = vpop.f32.mrb[0].mxu0
      %v811 = vadd.f32 %v317, %v810
      %v812 = vpop.f32.mrb[0].mxu0
      %813 = vmatprep.mubr.f32.mxu0 0.0
      %814 = vmatmul.mubr.f32.gmra.mrb[0].mxu0 %v348
      %v815 = vpop.f32.mrb[0].mxu0
      %v816 = vadd.f32 %v317, %v815
      %v817 = vpop.f32.mrb[0].mxu0
      %818 = vmatprep.mubr.f32.mxu0 0.0
      %819 = vmatmul.mubr.f32.gmra.mrb[0].mxu0 %v351
      %v820 = vpop.f32.mrb[0].mxu0
      %v821 = vadd.f32 %v317, %v820
      %v822 = vpop.f32.mrb[0].mxu0
      %823 = vmatprep.mubr.f32.mxu0 0.0
      %824 = vmatmul.mubr.f32.gmra.mrb[0].mxu0 %v354
      %v825 = vpop.f32.mrb[0].mxu0
      %v826 = vadd.f32 %v317, %v825
      %v827 = vpop.f32.mrb[0].mxu0
      %828 = vmatprep.mubr.f32.mxu0 0.0
      %829 = vmatmul.mubr.f32.gmra.mrb[0].mxu0 %v357
      %v830 = vpop.f32.mrb[0].mxu0
      %v831 = vadd.f32 %v317, %v830
      %v832 = vpop.f32.mrb[0].mxu0
      %833 = vmatprep.mubr.f32.mxu0 0.0
      %834 = vmatmul.mubr.f32.gmra.mrb[0].mxu0 %v360
      %v835 = vpop.f32.mrb[0].mxu0
      %v836 = vadd.f32 %v317, %v835
      %v837 = vpop.f32.mrb[0].mxu0
      %838 = vmatprep.mubr.f32.mxu0 0.0
      %839 = vmatmul.mubr.f32.gmra.mrb[0].mxu0 %v363
      %v840 = vpop.f32.mrb[0].mxu0
      %v841 = vadd.f32 %v317, %v840
      %v842 = vpop.f32.mrb[0].mxu0
      %843 = vmatprep.mubr.f32.mxu0 0.0
      %844 = vmatmul.mubr.f32.gmra.mrb[0].mxu0 %v366
      %v845 = vpop.f32.mrb[0].mxu0
      %v846 = vadd.f32 %v317, %v845
      %v847 = vpop.f32.mrb[0].mxu0
      %848 = vmatprep.mubr.f32.mxu0 0.0
      %849 = vmatmul.mubr.f32.gmra.mrb[0].mxu0 %v369
      %v850 = vpop.f32.mrb[0].mxu0
      %v851 = vadd.f32 %v317, %v850
      %v852 = vpop.f32.mrb[0].mxu0
      %853 = vmatprep.mubr.f32.mxu0 0.0
      %854 = vmatmul.mubr.f32.gmra.mrb[0].mxu0 %v372
      %v855 = vpop.f32.mrb[0].mxu0
      %v856 = vadd.f32 %v317, %v855
      %v857 = vpop.f32.mrb[0].mxu0
      %858 = vmatprep.mubr.f32.mxu0 0.0
      %859 = vmatmul.mubr.f32.gmra.mrb[0].mxu0 %v375
      %v860 = vpop.f32.mrb[0].mxu0
      %v861 = vadd.f32 %v317, %v860
      %v862 = vpop.f32.mrb[0].mxu0
      %863 = vmatprep.mubr.f32.mxu0 0.0
      %864 = vmatmul.mubr.f32.gmra.mrb[0].mxu0 %v378
      %v865 = vpop.f32.mrb[0].mxu0
      %v866 = vadd.f32 %v317, %v865
      %v867 = vpop.f32.mrb[0].mxu0
      %868 = vmatprep.mubr.f32.mxu0 0.0
      %869 = vmatmul.mubr.f32.gmra.mrb[0].mxu0 %v381
      %v870 = vpop.f32.mrb[0].mxu0
      %v871 = vadd.f32 %v317, %v870
      %v872 = vpop.f32.mrb[0].mxu0
      %873 = vmatprep.mubr.f32.mxu0 0.0
      %874 = vmatmul.mubr.f32.gmra.mrb[0].mxu0 %v384
      %v875 = vpop.f32.mrb[0].mxu0
      %v876 = vadd.f32 %v317, %v875
      %v877 = vpop.f32.mrb[0].mxu0
      %878 = vmatprep.mubr.f32.mxu0 0.0
      %879 = vmatmul.mubr.f32.gmra.mrb[0].mxu0 %v387
      %v880 = vpop.f32.mrb[0].mxu0
      %v881 = vadd.f32 %v317, %v880
      %v882 = vpop.f32.mrb[0].mxu0
      %883 = vmatprep.mubr.f32.mxu0 0.0
      %884 = vmatmul.mubr.f32.gmra.mrb[0].mxu0 %v390
      %v885 = vpop.f32.mrb[0].mxu0
      %v886 = vadd.f32 %v317, %v885
      %v887 = vpop.f32.mrb[0].mxu0
      %888 = vmatprep.mubr.f32.mxu0 0.0
      %889 = vmatmul.mubr.f32.gmra.mrb[0].mxu0 %v393
      %v890 = vpop.f32.mrb[0].mxu0
      %v891 = vadd.f32 %v317, %v890
      %v892 = vpop.f32.mrb[0].mxu0
      %893 = vmatprep.mubr.f32.mxu0 0.0
      %894 = vmatmul.mubr.f32.gmra.mrb[0].mxu0 %v396
      %v895 = vpop.f32.mrb[0].mxu0
      %v896 = vadd.f32 %v317, %v895
      %v897 = vpop.f32.mrb[0].mxu0
      %898 = vmatprep.mubr.f32.mxu0 0.0
      %899 = vmatmul.mubr.f32.gmra.mrb[0].mxu0 %v399
      %v900 = vpop.f32.mrb[0].mxu0
      %v901 = vadd.f32 %v317, %v900
      %v902 = vpop.f32.mrb[0].mxu0
      %903 = vmatprep.mubr.f32.mxu0 0.0
      %904 = vmatmul.mubr.f32.gmra.mrb[0].mxu0 %v402
      %v905 = vpop.f32.mrb[0].mxu0
      %v906 = vadd.f32 %v317, %v905
      %v907 = vpop.f32.mrb[0].mxu0
      %908 = vmatprep.mubr.f32.mxu0 0.0
      %909 = vmatmul.mubr.f32.gmra.mrb[0].mxu0 %v405
      %v910 = vpop.f32.mrb[0].mxu0
      %v911 = vadd.f32 %v317, %v910
      %v912 = vpop.f32.mrb[0].mxu0
      %913 = vmatprep.mubr.f32.mxu0 0.0
      %914 = vmatmul.mubr.f32.gmra.mrb[0].mxu0 %v408
      %v915 = vpop.f32.mrb[0].mxu0
      %v916 = vadd.f32 %v317, %v915
      %v917 = vpop.f32.mrb[0].mxu0
      %918 = vmatprep.mubr.f32.mxu0 0.0
      %919 = vmatmul.mubr.f32.gmra.mrb[0].mxu0 %v411
      %v920 = vpop.f32.mrb[0].mxu0
      %v921 = vadd.f32 %v317, %v920
      %v922 = vpop.f32.mrb[0].mxu0
      %923 = vmatprep.mubr.f32.mxu0 0.0
      %924 = vmatmul.mubr.f32.gmra.mrb[0].mxu0 %v414
      %v925 = vpop.f32.mrb[0].mxu0
      %v926 = vadd.f32 %v317, %v925
      %v927 = vpop.f32.mrb[0].mxu0
      %928 = vmatprep.mubr.f32.mxu0 0.0
      %929 = vmatmul.mubr.f32.gmra.mrb[0].mxu0 %v417
      %v930 = vpop.f32.mrb[0].mxu0
      %v931 = vadd.f32 %v317, %v930
      %v932 = vpop.f32.mrb[0].mxu0
      %933 = vmatprep.mubr.f32.mxu0 0.0
      %934 = vmatmul.mubr.f32.gmra.mrb[0].mxu0 %v420
      %v935 = vpop.f32.mrb[0].mxu0
      %v936 = vadd.f32 %v317, %v935
      %v937 = vpop.f32.mrb[0].mxu0
      %938 = vmatprep.mubr.f32.mxu0 0.0
      %939 = vmatmul.mubr.f32.gmra.mrb[0].mxu0 %v423
      %v940 = vpop.f32.mrb[0].mxu0
      %v941 = vadd.f32 %v317, %v940
      %v942 = vpop.f32.mrb[0].mxu0
      %943 = vmatprep.mubr.f32.mxu0 0.0
      %944 = vmatmul.mubr.f32.gmra.mrb[0].mxu0 %v426
      %v945 = vpop.f32.mrb[0].mxu0
      %v946 = vadd.f32 %v317, %v945
      %v947 = vpop.f32.mrb[0].mxu0
      %948 = vmatprep.mubr.f32.mxu0 0.0
      %949 = vmatmul.mubr.f32.gmra.mrb[0].mxu0 %v429
      %v950 = vpop.f32.mrb[0].mxu0
      %v951 = vadd.f32 %v317, %v950
      %v952 = vpop.f32.mrb[0].mxu0
      %953 = vmatprep.mubr.f32.mxu0 0.0
      %954 = vmatmul.mubr.f32.gmra.mrb[0].mxu0 %v432
      %v955 = vpop.f32.mrb[0].mxu0
      %v956 = vadd.f32 %v317, %v955
      %v957 = vpop.f32.mrb[0].mxu0
      %958 = vmatprep.mubr.f32.mxu0 0.0
      %959 = vmatmul.mubr.f32.gmra.mrb[0].mxu0 %v435
      %v960 = vpop.f32.mrb[0].mxu0
      %v961 = vadd.f32 %v317, %v960
      %v962 = vpop.f32.mrb[0].mxu0
      %963 = vmatprep.mubr.f32.mxu0 0.0
      %964 = vmatmul.mubr.f32.gmra.mrb[0].mxu0 %v438
      %v965 = vpop.f32.mrb[0].mxu0
      %v966 = vadd.f32 %v317, %v965
      %v967 = vpop.f32.mrb[0].mxu0
      %968 = vmatprep.mubr.f32.mxu0 0.0
      %969 = vmatmul.mubr.f32.gmra.mrb[0].mxu0 %v441
      %v970 = vpop.f32.mrb[0].mxu0
      %v971 = vadd.f32 %v317, %v970
      %v972 = vpop.f32.mrb[0].mxu0
      %973 = vmatprep.mubr.f32.mxu0 0.0
      %974 = vmatmul.mubr.f32.gmra.mrb[0].mxu0 %v444
      %v975 = vpop.f32.mrb[0].mxu0
      %v976 = vadd.f32 %v317, %v975
      %v977 = vpop.f32.mrb[0].mxu0
      %978 = vmatprep.mubr.f32.mxu0 0.0
      %979 = vmatmul.mubr.f32.gmra.mrb[0].mxu0 %v447
      %v980 = vpop.f32.mrb[0].mxu0
      %v981 = vadd.f32 %v317, %v980
      %v982 = vpop.f32.mrb[0].mxu0
      %983 = vmatprep.mubr.f32.mxu0 0.0
      %984 = vmatmul.mubr.f32.gmra.mrb[0].mxu0 %v450
      %v985 = vpop.f32.mrb[0].mxu0
      %v986 = vadd.f32 %v317, %v985
      %v987 = vpop.f32.mrb[0].mxu0
      %988 = vmatprep.mubr.f32.mxu0 0.0
      %989 = vmatmul.mubr.f32.gmra.mrb[0].mxu0 %v453
      %v990 = vpop.f32.mrb[0].mxu0
      %v991 = vadd.f32 %v317, %v990
      %v992 = vpop.f32.mrb[0].mxu0
      %993 = vmatprep.mubr.f32.mxu0 0.0
      %994 = vmatmul.mubr.f32.gmra.mrb[0].mxu0 %v456
      %v995 = vpop.f32.mrb[0].mxu0
      %v996 = vadd.f32 %v317, %v995
      %v997 = vpop.f32.mrb[0].mxu0
      %998 = vmatprep.mubr.f32.mxu0 0.0
      %999 = vmatmul.mubr.f32.gmra.mrb[0].mxu0 %v459
      %v1000 = vpop.f32.mrb[0].mxu0
      %v1001 = vadd.f32 %v317, %v1000
      %v1002 = vpop.f32.mrb[0].mxu0
      %1003 = vmatprep.mubr.f32.mxu0 0.0
      %1004 = vmatmul.mubr.f32.gmra.mrb[0].mxu0 %v462
      %v1005 = vpop.f32.mrb[0].mxu0
      %v1006 = vadd.f32 %v317, %v1005
      %v1007 = vpop.f32.mrb[0].mxu0
      %1008 = vmatprep.mubr.f32.mxu0 0.0
      %1009 = vmatmul.mubr.f32.gmra.mrb[0].mxu0 %v465
      %v1010 = vpop.f32.mrb[0].mxu0
      %v1011 = vadd.f32 %v317, %v1010
      %v1012 = vpop.f32.mrb[0].mxu0
      %1013 = vmatprep.mubr.f32.mxu0 0.0
      %1014 = vmatmul.mubr.f32.gmra.mrb[0].mxu0 %v468
      %v1015 = vpop.f32.mrb[0].mxu0
      %v1016 = vadd.f32 %v317, %v1015
      %v1017 = vpop.f32.mrb[0].mxu0
      %1018 = vmatprep.mubr.f32.mxu0 0.0
      %1019 = vmatmul.mubr.f32.gmra.mrb[0].mxu0 %v471
      %v1020 = vpop.f32.mrb[0].mxu0
      %v1021 = vadd.f32 %v317, %v1020
      %v1022 = vpop.f32.mrb[0].mxu0
      %1023 = vmatprep.mubr.f32.mxu0 0.0
      %1024 = vmatmul.mubr.f32.gmra.mrb[0].mxu0 %v474
      %v1025 = vpop.f32.mrb[0].mxu0
      %v1026 = vadd.f32 %v317, %v1025
      %v1027 = vpop.f32.mrb[0].mxu0
      %1028 = vmatprep.mubr.f32.mxu0 0.0
      %1029 = vmatmul.mubr.f32.gmra.mrb[0].mxu0 %v477
      %v1030 = vpop.f32.mrb[0].mxu0
      %v1031 = vadd.f32 %v317, %v1030
      %v1032 = vpop.f32.mrb[0].mxu0
      %1033 = vmatprep.mubr.f32.mxu0 0.0
      %1034 = vmatmul.mubr.f32.gmra.mrb[0].mxu0 %v480
      %v1035 = vpop.f32.mrb[0].mxu0
      %v1036 = vadd.f32 %v317, %v1035
      %v1037 = vpop.f32.mrb[0].mxu0
      %1038 = vmatprep.mubr.f32.mxu0 0.0
      %1039 = vmatmul.mubr.f32.gmra.mrb[0].mxu0 %v483
      %v1040 = vpop.f32.mrb[0].mxu0
      %v1041 = vadd.f32 %v317, %v1040
      %v1042 = vpop.f32.mrb[0].mxu0
      %1043 = vmatprep.mubr.f32.mxu0 0.0
      %1044 = vmatmul.mubr.f32.gmra.mrb[0].mxu0 %v486
      %v1045 = vpop.f32.mrb[0].mxu0
      %v1046 = vadd.f32 %v317, %v1045
      %v1047 = vpop.f32.mrb[0].mxu0
      %1048 = vmatprep.mubr.f32.mxu0 0.0
      %1049 = vmatmul.mubr.f32.gmra.mrb[0].mxu0 %v489
      %v1050 = vpop.f32.mrb[0].mxu0
      %v1051 = vadd.f32 %v317, %v1050
      %v1052 = vpop.f32.mrb[0].mxu0
      %1053 = vmatprep.mubr.f32.mxu0 0.0
      %1054 = vmatmul.mubr.f32.gmra.mrb[0].mxu0 %v492
      %v1055 = vpop.f32.mrb[0].mxu0
      %v1056 = vadd.f32 %v317, %v1055
      %v1057 = vpop.f32.mrb[0].mxu0
      %1058 = vmatprep.mubr.f32.mxu0 0.0
      %1059 = vmatmul.mubr.f32.gmra.mrb[0].mxu0 %v495
      %v1060 = vpop.f32.mrb[0].mxu0
      %v1061 = vadd.f32 %v317, %v1060
      %v1062 = vpop.f32.mrb[0].mxu0
      %1063 = vmatprep.mubr.f32.mxu0 0.0
      %1064 = vmatmul.mubr.f32.gmra.mrb[0].mxu0 %v498
      %v1065 = vpop.f32.mrb[0].mxu0
      %v1066 = vadd.f32 %v317, %v1065
      %v1067 = vpop.f32.mrb[0].mxu0
      %1068 = vmatprep.mubr.f32.mxu0 0.0
      %1069 = vmatmul.mubr.f32.gmra.mrb[0].mxu0 %v501
      %v1070 = vpop.f32.mrb[0].mxu0
      %v1071 = vadd.f32 %v317, %v1070
      %v1072 = vpop.f32.mrb[0].mxu0
      %1073 = vmatprep.mubr.f32.mxu0 0.0
      %1074 = vmatmul.mubr.f32.gmra.mrb[0].mxu0 %v504
      %v1075 = vpop.f32.mrb[0].mxu0
      %v1076 = vadd.f32 %v317, %v1075
      %v1077 = vpop.f32.mrb[0].mxu0
      %1078 = vmatprep.mubr.f32.mxu0 0.0
      %1079 = vmatmul.mubr.f32.gmra.mrb[0].mxu0 %v507
      %v1080 = vpop.f32.mrb[0].mxu0
      %v1081 = vadd.f32 %v317, %v1080
      %v1082 = vpop.f32.mrb[0].mxu0
      %1083 = vmatprep.mubr.f32.mxu0 0.0
      %1084 = vmatmul.mubr.f32.gmra.mrb[0].mxu0 %v510
      %v1085 = vpop.f32.mrb[0].mxu0
      %v1086 = vadd.f32 %v317, %v1085
      %v1087 = vpop.f32.mrb[0].mxu0
      %1088 = vmatprep.mubr.f32.mxu0 0.0
      %1089 = vmatmul.mubr.f32.gmra.mrb[0].mxu0 %v513
      %v1090 = vpop.f32.mrb[0].mxu0
      %v1091 = vadd.f32 %v317, %v1090
      %v1092 = vpop.f32.mrb[0].mxu0
      %1093 = vmatprep.mubr.f32.mxu0 0.0
      %1094 = vmatmul.mubr.f32.gmra.mrb[0].mxu0 %v516
      %v1095 = vpop.f32.mrb[0].mxu0
      %v1096 = vadd.f32 %v317, %v1095
      %v1097 = vpop.f32.mrb[0].mxu0
      %1098 = vmatprep.mubr.f32.mxu0 0.0
      %1099 = vmatmul.mubr.f32.gmra.mrb[0].mxu0 %v519
      %v1100 = vpop.f32.mrb[0].mxu0
      %v1101 = vadd.f32 %v317, %v1100
      %v1102 = vpop.f32.mrb[0].mxu0
      %1103 = vmatprep.mubr.f32.mxu0 0.0
      %1104 = vmatmul.mubr.f32.gmra.mrb[0].mxu0 %v522
      %v1105 = vpop.f32.mrb[0].mxu0
      %v1106 = vadd.f32 %v317, %v1105
      %v1107 = vpop.f32.mrb[0].mxu0
      %1108 = vmatprep.mubr.f32.mxu0 0.0
      %1109 = vmatmul.mubr.f32.gmra.mrb[0].mxu0 %v525
      %v1110 = vpop.f32.mrb[0].mxu0
      %v1111 = vadd.f32 %v317, %v1110
      %v1112 = vpop.f32.mrb[0].mxu0
      %1113 = vmatprep.mubr.f32.mxu0 0.0
      %1114 = vmatmul.mubr.f32.gmra.mrb[0].mxu0 %v528
      %v1115 = vpop.f32.mrb[0].mxu0
      %v1116 = vadd.f32 %v317, %v1115
      %v1117 = vpop.f32.mrb[0].mxu0
      %1118 = vmatprep.mubr.f32.mxu0 0.0
      %1119 = vmatmul.mubr.f32.gmra.mrb[0].mxu0 %v531
      %v1120 = vpop.f32.mrb[0].mxu0
      %v1121 = vadd.f32 %v317, %v1120
      %v1122 = vpop.f32.mrb[0].mxu0
      %1123 = vmatprep.mubr.f32.mxu0 0.0
      %1124 = vmatmul.mubr.f32.gmra.mrb[0].mxu0 %v534
      %v1125 = vpop.f32.mrb[0].mxu0
      %v1126 = vadd.f32 %v317, %v1125
      %v1127 = vpop.f32.mrb[0].mxu0
      %1128 = vmatprep.mubr.f32.mxu0 0.0
      %1129 = vmatmul.mubr.f32.gmra.mrb[0].mxu0 %v537
      %v1130 = vpop.f32.mrb[0].mxu0
      %v1131 = vadd.f32 %v317, %v1130
      %v1132 = vpop.f32.mrb[0].mxu0
      %1133 = vmatprep.mubr.f32.mxu0 0.0
      %1134 = vmatmul.mubr.f32.gmra.mrb[0].mxu0 %v540
      %v1135 = vpop.f32.mrb[0].mxu0
      %v1136 = vadd.f32 %v317, %v1135
      %v1137 = vpop.f32.mrb[0].mxu0
      %1138 = vmatprep.mubr.f32.mxu0 0.0
      %1139 = vmatmul.mubr.f32.gmra.mrb[0].mxu0 %v543
      %v1140 = vpop.f32.mrb[0].mxu0
      %v1141 = vadd.f32 %v317, %v1140
      %v1142 = vpop.f32.mrb[0].mxu0
      %1143 = vmatprep.mubr.f32.mxu0 0.0
      %1144 = vmatmul.mubr.f32.gmra.mrb[0].mxu0 %v546
      %v1145 = vpop.f32.mrb[0].mxu0
      %v1146 = vadd.f32 %v317, %v1145
      %v1147 = vpop.f32.mrb[0].mxu0
      %1148 = vmatprep.mubr.f32.mxu0 0.0
      %1149 = vmatmul.mubr.f32.gmra.mrb[0].mxu0 %v549
      %v1150 = vpop.f32.mrb[0].mxu0
      %v1151 = vadd.f32 %v317, %v1150
      %v1152 = vpop.f32.mrb[0].mxu0
      %1153 = vmatprep.mubr.f32.mxu0 0.0
      %1154 = vmatmul.mubr.f32.gmra.mrb[0].mxu0 %v552
      %v1155 = vpop.f32.mrb[0].mxu0
      %v1156 = vadd.f32 %v317, %v1155
      %v1157 = vpop.f32.mrb[0].mxu0
      %1158 = vmatprep.mubr.f32.mxu0 0.0
      %1159 = vmatmul.mubr.f32.gmra.mrb[0].mxu0 %v555
      %v1160 = vpop.f32.mrb[0].mxu0
      %v1161 = vadd.f32 %v317, %v1160
      %v1162 = vpop.f32.mrb[0].mxu0
      %1163 = vmatprep.mubr.f32.mxu0 0.0
      %1164 = vmatmul.mubr.f32.gmra.mrb[0].mxu0 %v558
      %v1165 = vpop.f32.mrb[0].mxu0
      %v1166 = vadd.f32 %v317, %v1165
      %v1167 = vpop.f32.mrb[0].mxu0
      %1168 = vmatprep.mubr.f32.mxu0 0.0
      %1169 = vmatmul.mubr.f32.gmra.mrb[0].mxu0 %v561
      %v1170 = vpop.f32.mrb[0].mxu0
      %v1171 = vadd.f32 %v317, %v1170
      %v1172 = vpop.f32.mrb[0].mxu0
      %1173 = vmatprep.mubr.f32.mxu0 0.0
      %1174 = vmatmul.mubr.f32.gmra.mrb[0].mxu0 %v564
      %v1175 = vpop.f32.mrb[0].mxu0
      %v1176 = vadd.f32 %v317, %v1175
      %v1177 = vpop.f32.mrb[0].mxu0
      %1178 = vmatprep.mubr.f32.mxu0 0.0
      %1179 = vmatmul.mubr.f32.gmra.mrb[0].mxu0 %v567
      %v1180 = vpop.f32.mrb[0].mxu0
      %v1181 = vadd.f32 %v317, %v1180
      %v1182 = vpop.f32.mrb[0].mxu0
      %1183 = vmatprep.mubr.f32.mxu0 0.0
      %1184 = vmatmul.mubr.f32.gmra.mrb[0].mxu0 %v570
      %v1185 = vpop.f32.mrb[0].mxu0
      %v1186 = vadd.f32 %v317, %v1185
      %v1187 = vpop.f32.mrb[0].mxu0
      %1188 = vmatprep.mubr.f32.mxu0 0.0
      %1189 = vmatmul.mubr.f32.gmra.mrb[0].mxu0 %v573
      %v1190 = vpop.f32.mrb[0].mxu0
      %v1191 = vadd.f32 %v317, %v1190
      %v1192 = vpop.f32.mrb[0].mxu0
      %1193 = vmatprep.mubr.f32.mxu0 0.0
      %1194 = vmatmul.mubr.f32.gmra.mrb[0].mxu0 %v576
      %v1195 = vpop.f32.mrb[0].mxu0
      %v1196 = vadd.f32 %v317, %v1195
      %v1197 = vpop.f32.mrb[0].mxu0
      %1198 = vmatprep.mubr.f32.mxu0 0.0
      %1199 = vmatmul.mubr.f32.gmra.mrb[0].mxu0 %v579
      %v1200 = vpop.f32.mrb[0].mxu0
      %v1201 = vadd.f32 %v317, %v1200
      %v1202 = vpop.f32.mrb[0].mxu0
      %1203 = vmatprep.mubr.f32.mxu0 0.0
      %1204 = vmatmul.mubr.f32.gmra.mrb[0].mxu0 %v582
      %v1205 = vpop.f32.mrb[0].mxu0
      %v1206 = vadd.f32 %v317, %v1205
      %v1207 = vpop.f32.mrb[0].mxu0
      %1208 = vmatprep.mubr.f32.mxu0 0.0
      %1209 = vmatmul.mubr.f32.gmra.mrb[0].mxu0 %v585
      %v1210 = vpop.f32.mrb[0].mxu0
      %v1211 = vadd.f32 %v317, %v1210
      %v1212 = vpop.f32.mrb[0].mxu0
      %1213 = vmatprep.mubr.f32.mxu0 0.0
      %1214 = vmatmul.mubr.f32.gmra.mrb[0].mxu0 %v588
      %v1215 = vpop.f32.mrb[0].mxu0
      %v1216 = vadd.f32 %v317, %v1215
      %v1217 = vpop.f32.mrb[0].mxu0
      %1218 = vmatprep.mubr.f32.mxu0 0.0
      %1219 = vmatmul.mubr.f32.gmra.mrb[0].mxu0 %v591
      %v1220 = vpop.f32.mrb[0].mxu0
      %v1221 = vadd.f32 %v317, %v1220
      %v1222 = vpop.f32.mrb[0].mxu0
      %1223 = vmatprep.mubr.f32.mxu0 0.0
      %1224 = vmatmul.mubr.f32.gmra.mrb[0].mxu0 %v594
      %v1225 = vpop.f32.mrb[0].mxu0
      %v1226 = vadd.f32 %v317, %v1225
      %v1227 = vpop.f32.mrb[0].mxu0
      %1228 = vmatprep.mubr.f32.mxu0 0.0
      %1229 = vmatmul.mubr.f32.gmra.mrb[0].mxu0 %v597
      %v1230 = vpop.f32.mrb[0].mxu0
      %v1231 = vadd.f32 %v317, %v1230
      %v1232 = vpop.f32.mrb[0].mxu0
      %1233 = vmatprep.mubr.f32.mxu0 0.0
      %1234 = vmatmul.mubr.f32.gmra.mrb[0].mxu0 %v600
      %v1235 = vpop.f32.mrb[0].mxu0
      %v1236 = vadd.f32 %v317, %v1235
      %v1237 = vpop.f32.mrb[0].mxu0
      %1238 = vmatprep.mubr.f32.mxu0 0.0
      %1239 = vmatmul.mubr.f32.gmra.mrb[0].mxu0 %v603
      %v1240 = vpop.f32.mrb[0].mxu0
      %v1241 = vadd.f32 %v317, %v1240
      %v1242 = vpop.f32.mrb[0].mxu0
      %1243 = vmatprep.mubr.f32.mxu0 0.0
      %1244 = vmatmul.mubr.f32.gmra.mrb[0].mxu0 %v606
      %v1245 = vpop.f32.mrb[0].mxu0
      %v1246 = vadd.f32 %v317, %v1245
      %v1247 = vpop.f32.mrb[0].mxu0
      %1248 = vmatprep.mubr.f32.mxu0 0.0
      %1249 = vmatmul.mubr.f32.gmra.mrb[0].mxu0 %v609
      %v1250 = vpop.f32.mrb[0].mxu0
      %v1251 = vadd.f32 %v317, %v1250
      %v1252 = vpop.f32.mrb[0].mxu0
      %1253 = vmatprep.mubr.f32.mxu0 0.0
      %1254 = vmatmul.mubr.f32.gmra.mrb[0].mxu0 %v612
      %v1255 = vpop.f32.mrb[0].mxu0
      %v1256 = vadd.f32 %v317, %v1255
      %v1257 = vpop.f32.mrb[0].mxu0
      %1258 = vmatprep.mubr.f32.mxu0 0.0
      %1259 = vmatmul.mubr.f32.gmra.mrb[0].mxu0 %v615
      %v1260 = vpop.f32.mrb[0].mxu0
      %v1261 = vadd.f32 %v317, %v1260
      %v1262 = vpop.f32.mrb[0].mxu0
      %1263 = vmatprep.mubr.f32.mxu0 0.0
      %1264 = vmatmul.mubr.f32.gmra.mrb[0].mxu0 %v618
      %v1265 = vpop.f32.mrb[0].mxu0
      %v1266 = vadd.f32 %v317, %v1265
      %v1267 = vpop.f32.mrb[0].mxu0
      %1268 = vmatprep.mubr.f32.mxu0 0.0
      %1269 = vmatmul.mubr.f32.gmra.mrb[0].mxu0 %v621
      %v1270 = vpop.f32.mrb[0].mxu0
      %v1271 = vadd.f32 %v317, %v1270
      %v1272 = vpop.f32.mrb[0].mxu0
      %1273 = vmatprep.mubr.f32.mxu0 0.0
      %1274 = vmatmul.mubr.f32.gmra.mrb[0].mxu0 %v624
      %v1275 = vpop.f32.mrb[0].mxu0
      %v1276 = vadd.f32 %v317, %v1275
      %v1277 = vpop.f32.mrb[0].mxu0
      %1278 = vmatprep.mubr.f32.mxu0 0.0
      %1279 = vmatmul.mubr.f32.gmra.mrb[0].mxu0 %v627
      %v1280 = vpop.f32.mrb[0].mxu0
      %v1281 = vadd.f32 %v317, %v1280
      %v1282 = vpop.f32.mrb[0].mxu0
      %1283 = vmatprep.mubr.f32.mxu0 0.0
      %1284 = vmatmul.mubr.f32.gmra.mrb[0].mxu0 %v630
      %v1285 = vpop.f32.mrb[0].mxu0
      %v1286 = vadd.f32 %v317, %v1285
      %v1287 = vpop.f32.mrb[0].mxu0
      %1288 = vmatprep.mubr.f32.mxu0 0.0
      %1289 = vmatmul.mubr.f32.gmra.mrb[0].mxu0 %v633
      %v1290 = vpop.f32.mrb[0].mxu0
      %v1291 = vadd.f32 %v317, %v1290
      %v1292 = vpop.f32.mrb[0].mxu0
      %1293 = vmatprep.mubr.f32.mxu0 0.0
      %1294 = vmatmul.mubr.f32.gmra.mrb[0].mxu0 %v636
      %v1295 = vpop.f32.mrb[0].mxu0
      %v1296 = vadd.f32 %v317, %v1295
      %v1297 = vpop.f32.mrb[0].mxu0
      %1298 = vmatprep.mubr.f32.mxu0 0.0
      %1299 = vmatmul.mubr.f32.gmra.mrb[0].mxu0 %v639
      %v1300 = vpop.f32.mrb[0].mxu0
      %v1301 = vadd.f32 %v317, %v1300
      %v1302 = vpop.f32.mrb[0].mxu0
      %1303 = vmatprep.mubr.f32.mxu0 0.0
      %1304 = vmatmul.mubr.f32.gmra.mrb[0].mxu0 %v642
      %v1305 = vpop.f32.mrb[0].mxu0
      %v1306 = vadd.f32 %v317, %v1305
      %v1307 = vpop.f32.mrb[0].mxu0
      %1308 = vmatprep.mubr.f32.mxu0 0.0
      %1309 = vmatmul.mubr.f32.gmra.mrb[0].mxu0 %v645
      %v1310 = vpop.f32.mrb[0].mxu0
      %v1311 = vadd.f32 %v317, %v1310
      %v1312 = vpop.f32.mrb[0].mxu0
      %1313 = vmatprep.mubr.f32.mxu0 0.0
      %1314 = vmatmul.mubr.f32.gmra.mrb[0].mxu0 %v648
      %v1315 = vpop.f32.mrb[0].mxu0
      %v1316 = vadd.f32 %v317, %v1315
      %v1317 = vpop.f32.mrb[0].mxu0
      %1318 = vmatprep.mubr.f32.mxu0 0.0
      %1319 = vmatmul.mubr.f32.gmra.mrb[0].mxu0 %v651
      %v1320 = vpop.f32.mrb[0].mxu0
      %v1321 = vadd.f32 %v317, %v1320
      %v1322 = vpop.f32.mrb[0].mxu0
      %1323 = vmatprep.mubr.f32.mxu0 0.0
      %1324 = vmatmul.mubr.f32.gmra.mrb[0].mxu0 %v654
      %v1325 = vpop.f32.mrb[0].mxu0
      %v1326 = vadd.f32 %v317, %v1325
      %v1327 = vpop.f32.mrb[0].mxu0
      %1328 = vmatprep.mubr.f32.mxu0 0.0
      %1329 = vmatmul.mubr.f32.gmra.mrb[0].mxu0 %v657
      %v1330 = vpop.f32.mrb[0].mxu0
      %v1331 = vadd.f32 %v317, %v1330
      %v1332 = vpop.f32.mrb[0].mxu0
      %1333 = vmatprep.mubr.f32.mxu0 0.0
      %1334 = vmatmul.mubr.f32.gmra.mrb[0].mxu0 %v660
      %v1335 = vpop.f32.mrb[0].mxu0
      %v1336 = vadd.f32 %v317, %v1335
      %v1337 = vpop.f32.mrb[0].mxu0
      %1338 = vmatprep.mubr.f32.mxu0 0.0
      %1339 = vmatmul.mubr.f32.gmra.mrb[0].mxu0 %v663
      %v1340 = vpop.f32.mrb[0].mxu0
      %v1341 = vadd.f32 %v317, %v1340
      %v1342 = vpop.f32.mrb[0].mxu0
      %1343 = vmatprep.mubr.f32.mxu0 0.0
      %1344 = vmatmul.mubr.f32.gmra.mrb[0].mxu0 %v666
      %v1345 = vpop.f32.mrb[0].mxu0
      %v1346 = vadd.f32 %v317, %v1345
      %v1347 = vpop.f32.mrb[0].mxu0
      %1348 = vmatprep.mubr.f32.mxu0 0.0
      %1349 = vmatmul.mubr.f32.gmra.mrb[0].mxu0 %v669
      %v1350 = vpop.f32.mrb[0].mxu0
      %v1351 = vadd.f32 %v317, %v1350
      %v1352 = vpop.f32.mrb[0].mxu0
      %1353 = vmatprep.mubr.f32.mxu0 0.0
      %1354 = vmatmul.mubr.f32.gmra.mrb[0].mxu0 %v672
      %v1355 = vpop.f32.mrb[0].mxu0
      %v1356 = vadd.f32 %v317, %v1355
      %v1357 = vpop.f32.mrb[0].mxu0
      %1358 = vmatprep.mubr.f32.mxu0 0.0
      %1359 = vmatmul.mubr.f32.gmra.mrb[0].mxu0 %v675
      %v1360 = vpop.f32.mrb[0].mxu0
      %v1361 = vadd.f32 %v317, %v1360
      %v1362 = vpop.f32.mrb[0].mxu0
      %1363 = vmatprep.mubr.f32.mxu0 0.0
      %1364 = vmatmul.mubr.f32.gmra.mrb[0].mxu0 %v678
      %v1365 = vpop.f32.mrb[0].mxu0
      %v1366 = vadd.f32 %v317, %v1365
      %v1367 = vpop.f32.mrb[0].mxu0
      %1368 = vmatprep.mubr.f32.mxu0 0.0
      %1369 = vmatmul.mubr.f32.gmra.mrb[0].mxu0 %v681
      %v1370 = vpop.f32.mrb[0].mxu0
      %v1371 = vadd.f32 %v317, %v1370
      %v1372 = vpop.f32.mrb[0].mxu0
      %1373 = vmatprep.mubr.f32.mxu0 0.0
      %1374 = vmatmul.mubr.f32.gmra.mrb[0].mxu0 %v684
      %v1375 = vpop.f32.mrb[0].mxu0
      %v1376 = vadd.f32 %v317, %v1375
      %v1377 = vpop.f32.mrb[0].mxu0
      %1378 = vmatprep.mubr.f32.mxu0 0.0
      %1379 = vmatmul.mubr.f32.gmra.mrb[0].mxu0 %v687
      %v1380 = vpop.f32.mrb[0].mxu0
      %v1381 = vadd.f32 %v317, %v1380
      %v1382 = vpop.f32.mrb[0].mxu0
      %1383 = vmatprep.mubr.f32.mxu0 0.0
      %1384 = vmatmul.mubr.f32.gmra.mrb[0].mxu0 %v690
      %v1385 = vpop.f32.mrb[0].mxu0
      %v1386 = vadd.f32 %v317, %v1385
      %v1387 = vpop.f32.mrb[0].mxu0
      %1388 = vmatprep.mubr.f32.mxu0 0.0
      %1389 = vmatmul.mubr.f32.gmra.mrb[0].mxu0 %v693
      %v1390 = vpop.f32.mrb[0].mxu0
      %v1391 = vadd.f32 %v317, %v1390
      %v1392 = vpop.f32.mrb[0].mxu0
      %1393 = vmatprep.mubr.f32.mxu0 0.0
      %1394 = vmatmul.mubr.f32.gmra.mrb[0].mxu0 %v696
      %v1395 = vpop.f32.mrb[0].mxu0
      %v1396 = vadd.f32 %v317, %v1395
      %v1397 = vpop.f32.mrb[0].mxu0
      %1398 = vmatprep.mubr.f32.mxu0 0.0
      %1399 = vmatmul.mubr.f32.gmra.mrb[0].mxu0 %v699
      %v1400 = vpop.f32.mrb[0].mxu0
      %v1401 = vadd.f32 %v317, %v1400
      %v1402 = vpop.f32.mrb[0].mxu0
      %1403 = vmatprep.mubr.f32.mxu0 0.0
      %1404 = vmatmul.mubr.f32.gmra.mrb[0].mxu0 %v702
      %v1405 = vpop.f32.mrb[0].mxu0
      %v1406 = vadd.f32 %v317, %v1405
      %v1407 = vpop.f32.mrb[0].mxu0
      %1408 = vdwg.mxu0
      %v1409 = vmax.f32 %v771, 0.0
      %v1410 = vmax.f32 %v776, 0.0
      %v1411 = vmax.f32 %v781, 0.0
      %v1412 = vmax.f32 %v786, 0.0
      %v1413 = vmax.f32 %v791, 0.0
      %v1414 = vmax.f32 %v796, 0.0
      %v1415 = vmax.f32 %v801, 0.0
      %v1416 = vmax.f32 %v806, 0.0
      %v1417 = vmax.f32 %v811, 0.0
      %v1418 = vmax.f32 %v816, 0.0
      %v1419 = vmax.f32 %v821, 0.0
      %v1420 = vmax.f32 %v826, 0.0
      %v1421 = vmax.f32 %v831, 0.0
      %v1422 = vmax.f32 %v836, 0.0
      %v1423 = vmax.f32 %v841, 0.0
      %v1424 = vmax.f32 %v846, 0.0
      %v1425 = vmax.f32 %v851, 0.0
      %v1426 = vmax.f32 %v856, 0.0
      %v1427 = vmax.f32 %v861, 0.0
      %v1428 = vmax.f32 %v866, 0.0
      %v1429 = vmax.f32 %v871, 0.0
      %v1430 = vmax.f32 %v876, 0.0
      %v1431 = vmax.f32 %v881, 0.0
      %v1432 = vmax.f32 %v886, 0.0
      %v1433 = vmax.f32 %v891, 0.0
      %v1434 = vmax.f32 %v896, 0.0
      %v1435 = vmax.f32 %v901, 0.0
      %v1436 = vmax.f32 %v906, 0.0
      %v1437 = vmax.f32 %v911, 0.0
      %v1438 = vmax.f32 %v916, 0.0
      %v1439 = vmax.f32 %v921, 0.0
      %v1440 = vmax.f32 %v926, 0.0
      %v1441 = vmax.f32 %v931, 0.0
      %v1442 = vmax.f32 %v936, 0.0
      %v1443 = vmax.f32 %v941, 0.0
      %v1444 = vmax.f32 %v946, 0.0
      %v1445 = vmax.f32 %v951, 0.0
      %v1446 = vmax.f32 %v956, 0.0
      %v1447 = vmax.f32 %v961, 0.0
      %v1448 = vmax.f32 %v966, 0.0
      %v1449 = vmax.f32 %v971, 0.0
      %v1450 = vmax.f32 %v976, 0.0
      %v1451 = vmax.f32 %v981, 0.0
      %v1452 = vmax.f32 %v986, 0.0
      %v1453 = vmax.f32 %v991, 0.0
      %v1454 = vmax.f32 %v996, 0.0
      %v1455 = vmax.f32 %v1001, 0.0
      %v1456 = vmax.f32 %v1006, 0.0
      %v1457 = vmax.f32 %v1011, 0.0
      %v1458 = vmax.f32 %v1016, 0.0
      %v1459 = vmax.f32 %v1021, 0.0
      %v1460 = vmax.f32 %v1026, 0.0
      %v1461 = vmax.f32 %v1031, 0.0
      %v1462 = vmax.f32 %v1036, 0.0
      %v1463 = vmax.f32 %v1041, 0.0
      %v1464 = vmax.f32 %v1046, 0.0
      %v1465 = vmax.f32 %v1051, 0.0
      %v1466 = vmax.f32 %v1056, 0.0
      %v1467 = vmax.f32 %v1061, 0.0
      %v1468 = vmax.f32 %v1066, 0.0
      %v1469 = vmax.f32 %v1071, 0.0
      %v1470 = vmax.f32 %v1076, 0.0
      %v1471 = vmax.f32 %v1081, 0.0
      %v1472 = vmax.f32 %v1086, 0.0
      %v1473 = vmax.f32 %v1091, 0.0
      %v1474 = vmax.f32 %v1096, 0.0
      %v1475 = vmax.f32 %v1101, 0.0
      %v1476 = vmax.f32 %v1106, 0.0
      %v1477 = vmax.f32 %v1111, 0.0
      %v1478 = vmax.f32 %v1116, 0.0
      %v1479 = vmax.f32 %v1121, 0.0
      %v1480 = vmax.f32 %v1126, 0.0
      %v1481 = vmax.f32 %v1131, 0.0
      %v1482 = vmax.f32 %v1136, 0.0
      %v1483 = vmax.f32 %v1141, 0.0
      %v1484 = vmax.f32 %v1146, 0.0
      %v1485 = vmax.f32 %v1151, 0.0
      %v1486 = vmax.f32 %v1156, 0.0
      %v1487 = vmax.f32 %v1161, 0.0
      %v1488 = vmax.f32 %v1166, 0.0
      %v1489 = vmax.f32 %v1171, 0.0
      %v1490 = vmax.f32 %v1176, 0.0
      %v1491 = vmax.f32 %v1181, 0.0
      %v1492 = vmax.f32 %v1186, 0.0
      %v1493 = vmax.f32 %v1191, 0.0
      %v1494 = vmax.f32 %v1196, 0.0
      %v1495 = vmax.f32 %v1201, 0.0
      %v1496 = vmax.f32 %v1206, 0.0
      %v1497 = vmax.f32 %v1211, 0.0
      %v1498 = vmax.f32 %v1216, 0.0
      %v1499 = vmax.f32 %v1221, 0.0
      %v1500 = vmax.f32 %v1226, 0.0
      %v1501 = vmax.f32 %v1231, 0.0
      %v1502 = vmax.f32 %v1236, 0.0
      %v1503 = vmax.f32 %v1241, 0.0
      %v1504 = vmax.f32 %v1246, 0.0
      %v1505 = vmax.f32 %v1251, 0.0
      %v1506 = vmax.f32 %v1256, 0.0
      %v1507 = vmax.f32 %v1261, 0.0
      %v1508 = vmax.f32 %v1266, 0.0
      %v1509 = vmax.f32 %v1271, 0.0
      %v1510 = vmax.f32 %v1276, 0.0
      %v1511 = vmax.f32 %v1281, 0.0
      %v1512 = vmax.f32 %v1286, 0.0
      %v1513 = vmax.f32 %v1291, 0.0
      %v1514 = vmax.f32 %v1296, 0.0
      %v1515 = vmax.f32 %v1301, 0.0
      %v1516 = vmax.f32 %v1306, 0.0
      %v1517 = vmax.f32 %v1311, 0.0
      %v1518 = vmax.f32 %v1316, 0.0
      %v1519 = vmax.f32 %v1321, 0.0
      %v1520 = vmax.f32 %v1326, 0.0
      %v1521 = vmax.f32 %v1331, 0.0
      %v1522 = vmax.f32 %v1336, 0.0
      %v1523 = vmax.f32 %v1341, 0.0
      %v1524 = vmax.f32 %v1346, 0.0
      %v1525 = vmax.f32 %v1351, 0.0
      %v1526 = vmax.f32 %v1356, 0.0
      %v1527 = vmax.f32 %v1361, 0.0
      %v1528 = vmax.f32 %v1366, 0.0
      %v1529 = vmax.f32 %v1371, 0.0
      %v1530 = vmax.f32 %v1376, 0.0
      %v1531 = vmax.f32 %v1381, 0.0
      %v1532 = vmax.f32 %v1386, 0.0
      %v1533 = vmax.f32 %v1391, 0.0
      %v1534 = vmax.f32 %v1396, 0.0
      %v1535 = vmax.f32 %v1401, 0.0
      %v1536 = vmax.f32 %v1406, 0.0
      %1537 = vst [vmem:[%s172] sm:$0xff] %v1409
      %1538 = vst [vmem:[%s172 + $0x8] sm:$0xff] %v1410
      %1539 = vst [vmem:[%s172 + $0x10] sm:$0xff] %v1411
      %1540 = vst [vmem:[%s172 + $0x18] sm:$0xff] %v1412
      %1541 = vst [vmem:[%s172 + $0x20] sm:$0xff] %v1413
      %1542 = vst [vmem:[%s172 + $0x28] sm:$0xff] %v1414
      %1543 = vst [vmem:[%s172 + $0x30] sm:$0xff] %v1415
      %1544 = vst [vmem:[%s172 + $0x38] sm:$0xff] %v1416
      %1545 = vst [vmem:[%s172 + $0x40] sm:$0xff] %v1417
      %1546 = vst [vmem:[%s172 + $0x48] sm:$0xff] %v1418
      %1547 = vst [vmem:[%s172 + $0x50] sm:$0xff] %v1419
      %1548 = vst [vmem:[%s172 + $0x58] sm:$0xff] %v1420
      %1549 = vst [vmem:[%s172 + $0x60] sm:$0xff] %v1421
      %1550 = vst [vmem:[%s172 + $0x68] sm:$0xff] %v1422
      %1551 = vst [vmem:[%s172 + $0x70] sm:$0xff] %v1423
      %1552 = vst [vmem:[%s172 + $0x78] sm:$0xff] %v1424
      %1553 = vst [vmem:[%s172 + $0x80] sm:$0xff] %v1425
      %1554 = vst [vmem:[%s172 + $0x88] sm:$0xff] %v1426
      %1555 = vst [vmem:[%s172 + $0x90] sm:$0xff] %v1427
      %1556 = vst [vmem:[%s172 + $0x98] sm:$0xff] %v1428
      %1557 = vst [vmem:[%s172 + $0xa0] sm:$0xff] %v1429
      %1558 = vst [vmem:[%s172 + $0xa8] sm:$0xff] %v1430
      %1559 = vst [vmem:[%s172 + $0xb0] sm:$0xff] %v1431
      %1560 = vst [vmem:[%s172 + $0xb8] sm:$0xff] %v1432
      %1561 = vst [vmem:[%s172 + $0xc0] sm:$0xff] %v1433
      %1562 = vst [vmem:[%s172 + $0xc8] sm:$0xff] %v1434
      %1563 = vst [vmem:[%s172 + $0xd0] sm:$0xff] %v1435
      %1564 = vst [vmem:[%s172 + $0xd8] sm:$0xff] %v1436
      %1565 = vst [vmem:[%s172 + $0xe0] sm:$0xff] %v1437
      %1566 = vst [vmem:[%s172 + $0xe8] sm:$0xff] %v1438
      %1567 = vst [vmem:[%s172 + $0xf0] sm:$0xff] %v1439
      %1568 = vst [vmem:[%s172 + $0xf8] sm:$0xff] %v1440
      %1569 = vst [vmem:[%s172 + $0x100] sm:$0xff] %v1441
      %1570 = vst [vmem:[%s172 + $0x108] sm:$0xff] %v1442
      %1571 = vst [vmem:[%s172 + $0x110] sm:$0xff] %v1443
      %1572 = vst [vmem:[%s172 + $0x118] sm:$0xff] %v1444
      %1573 = vst [vmem:[%s172 + $0x120] sm:$0xff] %v1445
      %1574 = vst [vmem:[%s172 + $0x128] sm:$0xff] %v1446
      %1575 = vst [vmem:[%s172 + $0x130] sm:$0xff] %v1447
      %1576 = vst [vmem:[%s172 + $0x138] sm:$0xff] %v1448
      %1577 = vst [vmem:[%s172 + $0x140] sm:$0xff] %v1449
      %1578 = vst [vmem:[%s172 + $0x148] sm:$0xff] %v1450
      %1579 = vst [vmem:[%s172 + $0x150] sm:$0xff] %v1451
      %1580 = vst [vmem:[%s172 + $0x158] sm:$0xff] %v1452
      %1581 = vst [vmem:[%s172 + $0x160] sm:$0xff] %v1453
      %1582 = vst [vmem:[%s172 + $0x168] sm:$0xff] %v1454
      %1583 = vst [vmem:[%s172 + $0x170] sm:$0xff] %v1455
      %1584 = vst [vmem:[%s172 + $0x178] sm:$0xff] %v1456
      %1585 = vst [vmem:[%s172 + $0x180] sm:$0xff] %v1457
      %1586 = vst [vmem:[%s172 + $0x188] sm:$0xff] %v1458
      %1587 = vst [vmem:[%s172 + $0x190] sm:$0xff] %v1459
      %1588 = vst [vmem:[%s172 + $0x198] sm:$0xff] %v1460
      %1589 = vst [vmem:[%s172 + $0x1a0] sm:$0xff] %v1461
      %1590 = vst [vmem:[%s172 + $0x1a8] sm:$0xff] %v1462
      %1591 = vst [vmem:[%s172 + $0x1b0] sm:$0xff] %v1463
      %1592 = vst [vmem:[%s172 + $0x1b8] sm:$0xff] %v1464
      %1593 = vst [vmem:[%s172 + $0x1c0] sm:$0xff] %v1465
      %1594 = vst [vmem:[%s172 + $0x1c8] sm:$0xff] %v1466
      %1595 = vst [vmem:[%s172 + $0x1d0] sm:$0xff] %v1467
      %1596 = vst [vmem:[%s172 + $0x1d8] sm:$0xff] %v1468
      %1597 = vst [vmem:[%s172 + $0x1e0] sm:$0xff] %v1469
      %1598 = vst [vmem:[%s172 + $0x1e8] sm:$0xff] %v1470
      %1599 = vst [vmem:[%s172 + $0x1f0] sm:$0xff] %v1471
      %1600 = vst [vmem:[%s172 + $0x1f8] sm:$0xff] %v1472
      %1601 = vst [vmem:[%s172 + $0x200] sm:$0xff] %v1473
      %1602 = vst [vmem:[%s172 + $0x208] sm:$0xff] %v1474
      %1603 = vst [vmem:[%s172 + $0x210] sm:$0xff] %v1475
      %1604 = vst [vmem:[%s172 + $0x218] sm:$0xff] %v1476
      %1605 = vst [vmem:[%s172 + $0x220] sm:$0xff] %v1477
      %1606 = vst [vmem:[%s172 + $0x228] sm:$0xff] %v1478
      %1607 = vst [vmem:[%s172 + $0x230] sm:$0xff] %v1479
      %1608 = vst [vmem:[%s172 + $0x238] sm:$0xff] %v1480
      %1609 = vst [vmem:[%s172 + $0x240] sm:$0xff] %v1481
      %1610 = vst [vmem:[%s172 + $0x248] sm:$0xff] %v1482
      %1611 = vst [vmem:[%s172 + $0x250] sm:$0xff] %v1483
      %1612 = vst [vmem:[%s172 + $0x258] sm:$0xff] %v1484
      %1613 = vst [vmem:[%s172 + $0x260] sm:$0xff] %v1485
      %1614 = vst [vmem:[%s172 + $0x268] sm:$0xff] %v1486
      %1615 = vst [vmem:[%s172 + $0x270] sm:$0xff] %v1487
      %1616 = vst [vmem:[%s172 + $0x278] sm:$0xff] %v1488
      %1617 = vst [vmem:[%s172 + $0x280] sm:$0xff] %v1489
      %1618 = vst [vmem:[%s172 + $0x288] sm:$0xff] %v1490
      %1619 = vst [vmem:[%s172 + $0x290] sm:$0xff] %v1491
      %1620 = vst [vmem:[%s172 + $0x298] sm:$0xff] %v1492
      %1621 = vst [vmem:[%s172 + $0x2a0] sm:$0xff] %v1493
      %1622 = vst [vmem:[%s172 + $0x2a8] sm:$0xff] %v1494
      %1623 = vst [vmem:[%s172 + $0x2b0] sm:$0xff] %v1495
      %1624 = vst [vmem:[%s172 + $0x2b8] sm:$0xff] %v1496
      %1625 = vst [vmem:[%s172 + $0x2c0] sm:$0xff] %v1497
      %1626 = vst [vmem:[%s172 + $0x2c8] sm:$0xff] %v1498
      %1627 = vst [vmem:[%s172 + $0x2d0] sm:$0xff] %v1499
      %1628 = vst [vmem:[%s172 + $0x2d8] sm:$0xff] %v1500
      %1629 = vst [vmem:[%s172 + $0x2e0] sm:$0xff] %v1501
      %1630 = vst [vmem:[%s172 + $0x2e8] sm:$0xff] %v1502
      %1631 = vst [vmem:[%s172 + $0x2f0] sm:$0xff] %v1503
      %1632 = vst [vmem:[%s172 + $0x2f8] sm:$0xff] %v1504
      %1633 = vst [vmem:[%s172 + $0x300] sm:$0xff] %v1505
      %1634 = vst [vmem:[%s172 + $0x308] sm:$0xff] %v1506
      %1635 = vst [vmem:[%s172 + $0x310] sm:$0xff] %v1507
      %1636 = vst [vmem:[%s172 + $0x318] sm:$0xff] %v1508
      %1637 = vst [vmem:[%s172 + $0x320] sm:$0xff] %v1509
      %1638 = vst [vmem:[%s172 + $0x328] sm:$0xff] %v1510
      %1639 = vst [vmem:[%s172 + $0x330] sm:$0xff] %v1511
      %1640 = vst [vmem:[%s172 + $0x338] sm:$0xff] %v1512
      %1641 = vst [vmem:[%s172 + $0x340] sm:$0xff] %v1513
      %1642 = vst [vmem:[%s172 + $0x348] sm:$0xff] %v1514
      %1643 = vst [vmem:[%s172 + $0x350] sm:$0xff] %v1515
      %1644 = vst [vmem:[%s172 + $0x358] sm:$0xff] %v1516
      %1645 = vst [vmem:[%s172 + $0x360] sm:$0xff] %v1517
      %1646 = vst [vmem:[%s172 + $0x368] sm:$0xff] %v1518
      %1647 = vst [vmem:[%s172 + $0x370] sm:$0xff] %v1519
      %1648 = vst [vmem:[%s172 + $0x378] sm:$0xff] %v1520
      %1649 = vst [vmem:[%s172 + $0x380] sm:$0xff] %v1521
      %1650 = vst [vmem:[%s172 + $0x388] sm:$0xff] %v1522
      %1651 = vst [vmem:[%s172 + $0x390] sm:$0xff] %v1523
      %1652 = vst [vmem:[%s172 + $0x398] sm:$0xff] %v1524
      %1653 = vst [vmem:[%s172 + $0x3a0] sm:$0xff] %v1525
      %1654 = vst [vmem:[%s172 + $0x3a8] sm:$0xff] %v1526
      %1655 = vst [vmem:[%s172 + $0x3b0] sm:$0xff] %v1527
      %1656 = vst [vmem:[%s172 + $0x3b8] sm:$0xff] %v1528
      %1657 = vst [vmem:[%s172 + $0x3c0] sm:$0xff] %v1529
      %1658 = vst [vmem:[%s172 + $0x3c8] sm:$0xff] %v1530
      %1659 = vst [vmem:[%s172 + $0x3d0] sm:$0xff] %v1531
      %1660 = vst [vmem:[%s172 + $0x3d8] sm:$0xff] %v1532
      %1661 = vst [vmem:[%s172 + $0x3e0] sm:$0xff] %v1533
      %1662 = vst [vmem:[%s172 + $0x3e8] sm:$0xff] %v1534
      %1663 = vst [vmem:[%s172 + $0x3f0] sm:$0xff] %v1535
      %1664 = vst [vmem:[%s172 + $0x3f8] sm:$0xff] %v1536
      %s1665 = smul.u32 128, %s14
      %p1666 = scmp.lt.s32.totalorder %s1665, 255
      %s1667 = scalar_select %p1666, %s1665, 255
      %s1668 = smul.addr %s1667, 8
      %s1669 = scalar_lea.vmem %s3, %s1668
      // Predicated region
      $region33: #{cnn_forward.5} parent=31 // pred_check
        %p1670 = pneg %p100
      $region34: #{cnn_forward.5} parent=31 // pred_check_branch
        %1672 = sbr.rel (%p1670) target = $region36
      $region35: #{cnn_forward.5} parent=31 // pred_region
        %s1673 = smul.u32 128, %s14
      $region36: #{cnn_forward.5} parent=31 // pred_fallthru
        _
    $region32: #{cnn_forward.5} parent=5 // pred_fallthru
      _
    %p1674 = scmp.le.s32.totalorder 2, %s9
    // Predicated region
    $region37: #{cnn_forward.5} parent=5 // pred_check
      %p1675 = pneg %p1674
    $region38: #{cnn_forward.5} parent=5 // pred_check_branch
      %1677 = sbr.rel (%p1675) target = $region40
    $region39: #{cnn_forward.5} parent=5 // pred_region
      %s1678 = ssub.s32 %s9, 2
      // Predicated region
      $region41: #{cnn_forward.5} parent=39 // pred_check
        %p1679 = pneg %p106
      $region42: #{cnn_forward.5} parent=39 // pred_check_branch
        %1681 = sbr.rel (%p1679) target = $region44
      $region43: #{cnn_forward.5} parent=39 // pred_region
        %s1682 = smul.u32 128, %s15
        %p1683 = scmp.lt.s32.totalorder %s1682, 255
        %s1684 = scalar_select %p1683, %s1682, 255
        %s1685 = smul.addr %s1684, 8
        %s1686 = scalar_lea.vmem %s3, %s1685
      $region44: #{cnn_forward.5} parent=39 // pred_fallthru
        _
    $region40: #{cnn_forward.5} parent=5 // pred_fallthru
      _
  $region6: #{cnn_forward.5} parent=0 // loop_footer
    %s13 = sadd.s32 1, %s9
  $region7: #{cnn_forward.5} parent=0 // loop_footer_branch
    %8 = sbr.rel target = $region3
  $region8: #{cnn_forward.5} parent=0 // loop_exit
    _

// kernel: cnn_forward.7
$region0: #{cnn_forward.7}
  #allocation0 [shape = 'u32[]', space=smem, size = 0x4, offset = 0x4, fixed_abs, tag = 'smem constant byte address 0x4 - core index']
  #allocation1 [shape = 'u32[144,128]{1,0:T(1,128)}', space=vmem, size = 0x12000, scoped, tag = 'internal scratch']
  %s0 = inlined_call_operand.vmem [shape: f32[200,152], index: 0, kind: input, shape index: {}]
  %s1 = inlined_call_operand.vmem [shape: f32[152,128], index: 1, kind: input, shape index: {}]
  %s2 = inlined_call_operand.vmem [shape: f32[1,128], index: 2, kind: input, shape index: {}]
  %s3 = inlined_call_operand.vmem [shape: f32[200,128], index: 3, kind: output, shape index: {}]
  %s4 = sld [smem:[#allocation0]]
  $region22: #{cnn_forward.7} parent=0
    _
  %s6 = ssub.s32 1, %s4
  %s7 = scalar_select 0, %s6, %s4
  // Predicated region
  $region2: #{cnn_forward.7} parent=0 // pred_check
    _
  $region3: #{cnn_forward.7} parent=0 // pred_check_branch
    %9 = sbr.rel (0) target = $region5
  $region4: #{cnn_forward.7} parent=0 // pred_region
    _
  $region5: #{cnn_forward.7} parent=0 // pred_fallthru
    _
  // Predicated region
  $region6: #{cnn_forward.7} parent=0 // pred_check
    _
  $region7: #{cnn_forward.7} parent=0 // pred_check_branch
    %11 = sbr.rel (0) target = $region9
  $region8: #{cnn_forward.7} parent=0 // pred_region
    _
  $region9: #{cnn_forward.7} parent=0 // pred_fallthru
    _
  // Predicated region
  $region10: #{cnn_forward.7} parent=0 // pred_check
    _
  $region11: #{cnn_forward.7} parent=0 // pred_check_branch
    %13 = sbr.rel (0) target = $region13
  $region12: #{cnn_forward.7} parent=0 // pred_region
    _
  $region13: #{cnn_forward.7} parent=0 // pred_fallthru
    _
  %v14 = vld [vmem:[%s0] sm:$0xff]
  %v15 = vld [vmem:[%s0 + $0x8] sm:$0xff]
  %v16 = vld [vmem:[%s0 + $0x10] sm:$0xff]
  %v17 = vld [vmem:[%s0 + $0x18] sm:$0xff]
  %v18 = vld [vmem:[%s0 + $0x20] sm:$0xff]
  %v19 = vld [vmem:[%s0 + $0x28] sm:$0xff]
  %v20 = vld [vmem:[%s0 + $0x30] sm:$0xff]
  %v21 = vld [vmem:[%s0 + $0x38] sm:$0xff]
  %v22 = vld [vmem:[%s0 + $0x40] sm:$0xff]
  %v23 = vld [vmem:[%s0 + $0x48] sm:$0xff]
  %v24 = vld [vmem:[%s0 + $0x50] sm:$0xff]
  %v25 = vld [vmem:[%s0 + $0x58] sm:$0xff]
  %v26 = vld [vmem:[%s0 + $0x60] sm:$0xff]
  %v27 = vld [vmem:[%s0 + $0x68] sm:$0xff]
  %v28 = vld [vmem:[%s0 + $0x70] sm:$0xff]
  %v29 = vld [vmem:[%s0 + $0x78] sm:$0xff]
  %v30 = vld [vmem:[%s0 + $0x80] sm:$0xff]
  %v31 = vld [vmem:[%s0 + $0x88] sm:$0xff]
  %v32 = vld [vmem:[%s0 + $0x90] sm:$0xff]
  %v33 = vld [vmem:[%s0 + $0x98] sm:$0xff]
  %v34 = vld [vmem:[%s0 + $0xa0] sm:$0xff]
  %v35 = vld [vmem:[%s0 + $0xa8] sm:$0xff]
  %v36 = vld [vmem:[%s0 + $0xb0] sm:$0xff]
  %v37 = vld [vmem:[%s0 + $0xb8] sm:$0xff]
  %v38 = vld [vmem:[%s0 + $0xc0] sm:$0xff]
  %v39 = vld [vmem:[%s0 + $0xc8] sm:$0xff]
  %v40 = vld [vmem:[%s0 + $0xd0] sm:$0xff]
  %v41 = vld [vmem:[%s0 + $0xd8] sm:$0xff]
  %v42 = vld [vmem:[%s0 + $0xe0] sm:$0xff]
  %v43 = vld [vmem:[%s0 + $0xe8] sm:$0xff]
  %v44 = vld [vmem:[%s0 + $0xf0] sm:$0xff]
  %v45 = vld [vmem:[%s0 + $0xf8] sm:$0xff]
  %v46 = vld [vmem:[%s0 + $0x100] sm:$0xff]
  %v47 = vld [vmem:[%s0 + $0x108] sm:$0xff]
  %v48 = vld [vmem:[%s0 + $0x110] sm:$0xff]
  %v49 = vld [vmem:[%s0 + $0x118] sm:$0xff]
  %v50 = vld [vmem:[%s0 + $0x120] sm:$0xff]
  %v51 = vld [vmem:[%s0 + $0x128] sm:$0xff]
  %v52 = vld [vmem:[%s0 + $0x130] sm:$0xff]
  %v53 = vld [vmem:[%s0 + $0x138] sm:$0xff]
  %v54 = vld [vmem:[%s0 + $0x140] sm:$0xff]
  %v55 = vld [vmem:[%s0 + $0x148] sm:$0xff]
  %v56 = vld [vmem:[%s0 + $0x150] sm:$0xff]
  %v57 = vld [vmem:[%s0 + $0x158] sm:$0xff]
  %v58 = vld [vmem:[%s0 + $0x160] sm:$0xff]
  %v59 = vld [vmem:[%s0 + $0x168] sm:$0xff]
  %v60 = vld [vmem:[%s0 + $0x170] sm:$0xff]
  %v61 = vld [vmem:[%s0 + $0x178] sm:$0xff]
  %v62 = vld [vmem:[%s0 + $0x180] sm:$0xff]
  %v63 = vld [vmem:[%s0 + $0x188] sm:$0xff]
  %v64 = vld [vmem:[%s1] sm:$0xff]
  %v65 = vld [vmem:[%s1 + $0x8] sm:$0xff]
  %v66 = vld [vmem:[%s1 + $0x10] sm:$0xff]
  %v67 = vld [vmem:[%s1 + $0x18] sm:$0xff]
  %v68 = vld [vmem:[%s1 + $0x20] sm:$0xff]
  %v69 = vld [vmem:[%s1 + $0x28] sm:$0xff]
  %v70 = vld [vmem:[%s1 + $0x30] sm:$0xff]
  %v71 = vld [vmem:[%s1 + $0x38] sm:$0xff]
  %v72 = vld [vmem:[%s1 + $0x40] sm:$0xff]
  %v73 = vld [vmem:[%s1 + $0x48] sm:$0xff]
  %v74 = vld [vmem:[%s1 + $0x50] sm:$0xff]
  %v75 = vld [vmem:[%s1 + $0x58] sm:$0xff]
  %v76 = vld [vmem:[%s1 + $0x60] sm:$0xff]
  %v77 = vld [vmem:[%s1 + $0x68] sm:$0xff]
  %v78 = vld [vmem:[%s1 + $0x70] sm:$0xff]
  %v79 = vld [vmem:[%s1 + $0x78] sm:$0xff]
  %v80 = vld [vmem:[%s1 + $0x80] sm:$0xff]
  %v81 = vld [vmem:[%s1 + $0x88] sm:$0xff]
  %v82 = vld [vmem:[%s1 + $0x90] sm:$0xff]
  %v83 = vld [vmem:[%s2] sm:$0x1]
  %v85 = vlaneseq
  %v86 = vshrl.u32 %v85, 7
  %v87 = vsub.s32 0, %v86
  %v88 = vrot.slane %v83, %v87
  %vm90 = vcmask 195584
  %v92 = vsel %vm90, %v15, 0
  %v95 = vsel %vm90, %v17, 0
  %v98 = vsel %vm90, %v19, 0
  %v101 = vsel %vm90, %v21, 0
  %v104 = vsel %vm90, %v23, 0
  %v107 = vsel %vm90, %v25, 0
  %v110 = vsel %vm90, %v27, 0
  %v113 = vsel %vm90, %v29, 0
  %v116 = vsel %vm90, %v31, 0
  %v119 = vsel %vm90, %v33, 0
  %v122 = vsel %vm90, %v35, 0
  %v125 = vsel %vm90, %v37, 0
  %v128 = vsel %vm90, %v39, 0
  %v131 = vsel %vm90, %v41, 0
  %v134 = vsel %vm90, %v43, 0
  %v137 = vsel %vm90, %v45, 0
  %v140 = vsel %vm90, %v47, 0
  %v143 = vsel %vm90, %v49, 0
  %v146 = vsel %vm90, %v51, 0
  %v149 = vsel %vm90, %v53, 0
  %v152 = vsel %vm90, %v55, 0
  %v155 = vsel %vm90, %v57, 0
  %v158 = vsel %vm90, %v59, 0
  %v161 = vsel %vm90, %v61, 0
  %v164 = vsel %vm90, %v63, 0
  %166 = vmatprep.subr.mxu0 0.0
  %167 = vmatpush1.msra.mxu0 %v64
  %168 = vmatprep.subr.mxu0 0.0
  %169 = vmatpush1.msra.mxu0 %v65
  %170 = vmatprep.subr.mxu0 0.0
  %171 = vmatpush1.msra.mxu0 %v66
  %172 = vmatprep.subr.mxu0 0.0
  %173 = vmatpush1.msra.mxu0 %v67
  %174 = vmatprep.subr.mxu0 0.0
  %175 = vmatpush1.msra.mxu0 %v68
  %176 = vmatprep.subr.mxu0 0.0
  %177 = vmatpush1.msra.mxu0 %v69
  %178 = vmatprep.subr.mxu0 0.0
  %179 = vmatpush1.msra.mxu0 %v70
  %180 = vmatprep.subr.mxu0 0.0
  %181 = vmatpush1.msra.mxu0 %v71
  %182 = vmatprep.subr.mxu0 0.0
  %183 = vmatpush1.msra.mxu0 %v72
  %184 = vmatprep.subr.mxu0 0.0
  %185 = vmatpush1.msra.mxu0 %v73
  %186 = vmatprep.subr.mxu0 0.0
  %187 = vmatpush1.msra.mxu0 %v74
  %188 = vmatprep.subr.mxu0 0.0
  %189 = vmatpush1.msra.mxu0 %v75
  %190 = vmatprep.subr.mxu0 0.0
  %191 = vmatpush1.msra.mxu0 %v76
  %192 = vmatprep.subr.mxu0 0.0
  %193 = vmatpush1.msra.mxu0 %v77
  %194 = vmatprep.subr.mxu0 0.0
  %195 = vmatpush1.msra.mxu0 %v78
  %196 = vmatprep.subr.mxu0 0.0
  %197 = vmatpush1.msra.mxu0 %v79
  %198 = vmatprep.subr.mxu0 0.0
  %199 = vmatpush1.msra.mxu0 %v80
  %200 = vmatprep.subr.mxu0 0.0
  %201 = vmatpush1.msra.mxu0 %v81
  %202 = vmatprep.subr.mxu0 0.0
  %203 = vmatpush1.msra.mxu0 %v82
  %204 = vmatprep.subr.mxu0 0.0
  %205 = vmatpush1.msra.mxu0 0.0
  %206 = vmatprep.subr.mxu0 0.0
  %207 = vmatpush1.msra.mxu0 0.0
  %208 = vmatprep.subr.mxu0 0.0
  %209 = vmatpush1.msra.mxu0 0.0
  %210 = vmatprep.subr.mxu0 0.0
  %211 = vmatpush1.msra.mxu0 0.0
  %212 = vmatprep.subr.mxu0 0.0
  %213 = vmatpush1.msra.mxu0 0.0
  %214 = vmatprep.subr.mxu0 0.0
  %215 = vmatpush1.msra.mxu0 0.0
  %216 = vmatprep.subr.mxu0 0.0
  %217 = vmatpush1.msra.mxu0 0.0
  %218 = vmatprep.subr.mxu0 0.0
  %219 = vmatpush1.msra.mxu0 0.0
  %220 = vmatprep.subr.mxu0 0.0
  %221 = vmatpush1.msra.mxu0 0.0
  %222 = vmatprep.subr.mxu0 0.0
  %223 = vmatpush1.msra.mxu0 0.0
  %224 = vmatprep.subr.mxu0 0.0
  %225 = vmatpush1.msra.mxu0 0.0
  %226 = vmatprep.subr.mxu0 0.0
  %227 = vmatpush1.msra.mxu0 0.0
  %228 = vmatprep.subr.mxu0 0.0
  %229 = vmatpush1.msra.mxu0 0.0
  %230 = vmatprep.mubr.f32.mxu0 %v92
  %231 = vmatmul.mubr.f32.gmra.mrb[0].mxu0 %v14
  %v232 = vpop.f32.mrb[0].mxu0
  %v233 = vadd.f32 %v88, %v232
  %v234 = vpop.f32.mrb[0].mxu0
  %235 = vmatprep.mubr.f32.mxu0 %v95
  %236 = vmatmul.mubr.f32.gmra.mrb[0].mxu0 %v16
  %v237 = vpop.f32.mrb[0].mxu0
  %v238 = vadd.f32 %v88, %v237
  %v239 = vpop.f32.mrb[0].mxu0
  %240 = vmatprep.mubr.f32.mxu0 %v98
  %241 = vmatmul.mubr.f32.gmra.mrb[0].mxu0 %v18
  %v242 = vpop.f32.mrb[0].mxu0
  %v243 = vadd.f32 %v88, %v242
  %v244 = vpop.f32.mrb[0].mxu0
  %245 = vmatprep.mubr.f32.mxu0 %v101
  %246 = vmatmul.mubr.f32.gmra.mrb[0].mxu0 %v20
  %v247 = vpop.f32.mrb[0].mxu0
  %v248 = vadd.f32 %v88, %v247
  %v249 = vpop.f32.mrb[0].mxu0
  %250 = vmatprep.mubr.f32.mxu0 %v104
  %251 = vmatmul.mubr.f32.gmra.mrb[0].mxu0 %v22
  %v252 = vpop.f32.mrb[0].mxu0
  %v253 = vadd.f32 %v88, %v252
  %v254 = vpop.f32.mrb[0].mxu0
  %255 = vmatprep.mubr.f32.mxu0 %v107
  %256 = vmatmul.mubr.f32.gmra.mrb[0].mxu0 %v24
  %v257 = vpop.f32.mrb[0].mxu0
  %v258 = vadd.f32 %v88, %v257
  %v259 = vpop.f32.mrb[0].mxu0
  %260 = vmatprep.mubr.f32.mxu0 %v110
  %261 = vmatmul.mubr.f32.gmra.mrb[0].mxu0 %v26
  %v262 = vpop.f32.mrb[0].mxu0
  %v263 = vadd.f32 %v88, %v262
  %v264 = vpop.f32.mrb[0].mxu0
  %265 = vmatprep.mubr.f32.mxu0 %v113
  %266 = vmatmul.mubr.f32.gmra.mrb[0].mxu0 %v28
  %v267 = vpop.f32.mrb[0].mxu0
  %v268 = vadd.f32 %v88, %v267
  %v269 = vpop.f32.mrb[0].mxu0
  %270 = vmatprep.mubr.f32.mxu0 %v116
  %271 = vmatmul.mubr.f32.gmra.mrb[0].mxu0 %v30
  %v272 = vpop.f32.mrb[0].mxu0
  %v273 = vadd.f32 %v88, %v272
  %v274 = vpop.f32.mrb[0].mxu0
  %275 = vmatprep.mubr.f32.mxu0 %v119
  %276 = vmatmul.mubr.f32.gmra.mrb[0].mxu0 %v32
  %v277 = vpop.f32.mrb[0].mxu0
  %v278 = vadd.f32 %v88, %v277
  %v279 = vpop.f32.mrb[0].mxu0
  %280 = vmatprep.mubr.f32.mxu0 %v122
  %281 = vmatmul.mubr.f32.gmra.mrb[0].mxu0 %v34
  %v282 = vpop.f32.mrb[0].mxu0
  %v283 = vadd.f32 %v88, %v282
  %v284 = vpop.f32.mrb[0].mxu0
  %285 = vmatprep.mubr.f32.mxu0 %v125
  %286 = vmatmul.mubr.f32.gmra.mrb[0].mxu0 %v36
  %v287 = vpop.f32.mrb[0].mxu0
  %v288 = vadd.f32 %v88, %v287
  %v289 = vpop.f32.mrb[0].mxu0
  %290 = vmatprep.mubr.f32.mxu0 %v128
  %291 = vmatmul.mubr.f32.gmra.mrb[0].mxu0 %v38
  %v292 = vpop.f32.mrb[0].mxu0
  %v293 = vadd.f32 %v88, %v292
  %v294 = vpop.f32.mrb[0].mxu0
  %295 = vmatprep.mubr.f32.mxu0 %v131
  %296 = vmatmul.mubr.f32.gmra.mrb[0].mxu0 %v40
  %v297 = vpop.f32.mrb[0].mxu0
  %v298 = vadd.f32 %v88, %v297
  %v299 = vpop.f32.mrb[0].mxu0
  %300 = vmatprep.mubr.f32.mxu0 %v134
  %301 = vmatmul.mubr.f32.gmra.mrb[0].mxu0 %v42
  %v302 = vpop.f32.mrb[0].mxu0
  %v303 = vadd.f32 %v88, %v302
  %v304 = vpop.f32.mrb[0].mxu0
  %305 = vmatprep.mubr.f32.mxu0 %v137
  %306 = vmatmul.mubr.f32.gmra.mrb[0].mxu0 %v44
  %v307 = vpop.f32.mrb[0].mxu0
  %v308 = vadd.f32 %v88, %v307
  %v309 = vpop.f32.mrb[0].mxu0
  %310 = vmatprep.mubr.f32.mxu0 %v140
  %311 = vmatmul.mubr.f32.gmra.mrb[0].mxu0 %v46
  %v312 = vpop.f32.mrb[0].mxu0
  %v313 = vadd.f32 %v88, %v312
  %v314 = vpop.f32.mrb[0].mxu0
  %315 = vmatprep.mubr.f32.mxu0 %v143
  %316 = vmatmul.mubr.f32.gmra.mrb[0].mxu0 %v48
  %v317 = vpop.f32.mrb[0].mxu0
  %v318 = vadd.f32 %v88, %v317
  %v319 = vpop.f32.mrb[0].mxu0
  %320 = vmatprep.mubr.f32.mxu0 %v146
  %321 = vmatmul.mubr.f32.gmra.mrb[0].mxu0 %v50
  %v322 = vpop.f32.mrb[0].mxu0
  %v323 = vadd.f32 %v88, %v322
  %v324 = vpop.f32.mrb[0].mxu0
  %325 = vmatprep.mubr.f32.mxu0 %v149
  %326 = vmatmul.mubr.f32.gmra.mrb[0].mxu0 %v52
  %v327 = vpop.f32.mrb[0].mxu0
  %v328 = vadd.f32 %v88, %v327
  %v329 = vpop.f32.mrb[0].mxu0
  %330 = vmatprep.mubr.f32.mxu0 %v152
  %331 = vmatmul.mubr.f32.gmra.mrb[0].mxu0 %v54
  %v332 = vpop.f32.mrb[0].mxu0
  %v333 = vadd.f32 %v88, %v332
  %v334 = vpop.f32.mrb[0].mxu0
  %335 = vmatprep.mubr.f32.mxu0 %v155
  %336 = vmatmul.mubr.f32.gmra.mrb[0].mxu0 %v56
  %v337 = vpop.f32.mrb[0].mxu0
  %v338 = vadd.f32 %v88, %v337
  %v339 = vpop.f32.mrb[0].mxu0
  %340 = vmatprep.mubr.f32.mxu0 %v158
  %341 = vmatmul.mubr.f32.gmra.mrb[0].mxu0 %v58
  %v342 = vpop.f32.mrb[0].mxu0
  %v343 = vadd.f32 %v88, %v342
  %v344 = vpop.f32.mrb[0].mxu0
  %345 = vmatprep.mubr.f32.mxu0 %v161
  %346 = vmatmul.mubr.f32.gmra.mrb[0].mxu0 %v60
  %v347 = vpop.f32.mrb[0].mxu0
  %v348 = vadd.f32 %v88, %v347
  %v349 = vpop.f32.mrb[0].mxu0
  %350 = vmatprep.mubr.f32.mxu0 %v164
  %351 = vmatmul.mubr.f32.gmra.mrb[0].mxu0 %v62
  %v352 = vpop.f32.mrb[0].mxu0
  %v353 = vadd.f32 %v88, %v352
  %v354 = vpop.f32.mrb[0].mxu0
  %355 = vdwg.mxu0
  %v356 = vmax.f32 %v233, 0.0
  %v357 = vmax.f32 %v238, 0.0
  %v358 = vmax.f32 %v243, 0.0
  %v359 = vmax.f32 %v248, 0.0
  %v360 = vmax.f32 %v253, 0.0
  %v361 = vmax.f32 %v258, 0.0
  %v362 = vmax.f32 %v263, 0.0
  %v363 = vmax.f32 %v268, 0.0
  %v364 = vmax.f32 %v273, 0.0
  %v365 = vmax.f32 %v278, 0.0
  %v366 = vmax.f32 %v283, 0.0
  %v367 = vmax.f32 %v288, 0.0
  %v368 = vmax.f32 %v293, 0.0
  %v369 = vmax.f32 %v298, 0.0
  %v370 = vmax.f32 %v303, 0.0
  %v371 = vmax.f32 %v308, 0.0
  %v372 = vmax.f32 %v313, 0.0
  %v373 = vmax.f32 %v318, 0.0
  %v374 = vmax.f32 %v323, 0.0
  %v375 = vmax.f32 %v328, 0.0
  %v376 = vmax.f32 %v333, 0.0
  %v377 = vmax.f32 %v338, 0.0
  %v378 = vmax.f32 %v343, 0.0
  %v379 = vmax.f32 %v348, 0.0
  %v380 = vmax.f32 %v353, 0.0
  %381 = vst [vmem:[%s3] sm:$0xff] %v356
  %382 = vst [vmem:[%s3 + $0x8] sm:$0xff] %v357
  %383 = vst [vmem:[%s3 + $0x10] sm:$0xff] %v358
  %384 = vst [vmem:[%s3 + $0x18] sm:$0xff] %v359
  %385 = vst [vmem:[%s3 + $0x20] sm:$0xff] %v360
  %386 = vst [vmem:[%s3 + $0x28] sm:$0xff] %v361
  %387 = vst [vmem:[%s3 + $0x30] sm:$0xff] %v362
  %388 = vst [vmem:[%s3 + $0x38] sm:$0xff] %v363
  %389 = vst [vmem:[%s3 + $0x40] sm:$0xff] %v364
  %390 = vst [vmem:[%s3 + $0x48] sm:$0xff] %v365
  %391 = vst [vmem:[%s3 + $0x50] sm:$0xff] %v366
  %392 = vst [vmem:[%s3 + $0x58] sm:$0xff] %v367
  %393 = vst [vmem:[%s3 + $0x60] sm:$0xff] %v368
  %394 = vst [vmem:[%s3 + $0x68] sm:$0xff] %v369
  %395 = vst [vmem:[%s3 + $0x70] sm:$0xff] %v370
  %396 = vst [vmem:[%s3 + $0x78] sm:$0xff] %v371
  %397 = vst [vmem:[%s3 + $0x80] sm:$0xff] %v372
  %398 = vst [vmem:[%s3 + $0x88] sm:$0xff] %v373
  %399 = vst [vmem:[%s3 + $0x90] sm:$0xff] %v374
  %400 = vst [vmem:[%s3 + $0x98] sm:$0xff] %v375
  %401 = vst [vmem:[%s3 + $0xa0] sm:$0xff] %v376
  %402 = vst [vmem:[%s3 + $0xa8] sm:$0xff] %v377
  %403 = vst [vmem:[%s3 + $0xb0] sm:$0xff] %v378
  %404 = vst [vmem:[%s3 + $0xb8] sm:$0xff] %v379
  %405 = vst [vmem:[%s3 + $0xc0] sm:$0xff] %v380
  // Predicated region
  $region14: #{cnn_forward.7} parent=0 // pred_check
    _
  $region15: #{cnn_forward.7} parent=0 // pred_check_branch
    %407 = sbr.rel (0) target = $region17
  $region16: #{cnn_forward.7} parent=0 // pred_region
    _
  $region17: #{cnn_forward.7} parent=0 // pred_fallthru
    _
  // Predicated region
  $region18: #{cnn_forward.7} parent=0 // pred_check
    _
  $region19: #{cnn_forward.7} parent=0 // pred_check_branch
    %409 = sbr.rel (0) target = $region21
  $region20: #{cnn_forward.7} parent=0 // pred_region
    _
  $region21: #{cnn_forward.7} parent=0 // pred_fallthru
    _

// kernel: cnn_forward.8
$region0: #{cnn_forward.8}
  #allocation0 [shape = 'u32[]', space=smem, size = 0x4, offset = 0x4, fixed_abs, tag = 'smem constant byte address 0x4 - core index']
  #allocation1 [shape = 'u32[144,128]{1,0:T(1,128)}', space=vmem, size = 0x12000, scoped, tag = 'internal scratch']
  %s0 = inlined_call_operand.vmem [shape: f32[50,128], index: 0, kind: input, shape index: {}]
  %s1 = inlined_call_operand.vmem [shape: f32[50,128], index: 1, kind: input, shape index: {}]
  %s2 = inlined_call_operand.vmem [shape: f32[50,128], index: 2, kind: input, shape index: {}]
  %s3 = inlined_call_operand.vmem [shape: f32[50,128], index: 3, kind: input, shape index: {}]
  %s4 = inlined_call_operand.vmem [shape: f32[50,128], index: 4, kind: output, shape index: {}]
  %s5 = sld [smem:[#allocation0]]
  $region26: #{cnn_forward.8} parent=0
    _
  %s7 = ssub.s32 1, %s5
  %s8 = scalar_select 0, %s7, %s5
  // Predicated region
  $region2: #{cnn_forward.8} parent=0 // pred_check
    _
  $region3: #{cnn_forward.8} parent=0 // pred_check_branch
    %10 = sbr.rel (0) target = $region5
  $region4: #{cnn_forward.8} parent=0 // pred_region
    _
  $region5: #{cnn_forward.8} parent=0 // pred_fallthru
    _
  // Predicated region
  $region6: #{cnn_forward.8} parent=0 // pred_check
    _
  $region7: #{cnn_forward.8} parent=0 // pred_check_branch
    %12 = sbr.rel (0) target = $region9
  $region8: #{cnn_forward.8} parent=0 // pred_region
    _
  $region9: #{cnn_forward.8} parent=0 // pred_fallthru
    _
  // Predicated region
  $region10: #{cnn_forward.8} parent=0 // pred_check
    _
  $region11: #{cnn_forward.8} parent=0 // pred_check_branch
    %14 = sbr.rel (0) target = $region13
  $region12: #{cnn_forward.8} parent=0 // pred_region
    _
  $region13: #{cnn_forward.8} parent=0 // pred_fallthru
    _
  // Predicated region
  $region14: #{cnn_forward.8} parent=0 // pred_check
    _
  $region15: #{cnn_forward.8} parent=0 // pred_check_branch
    %16 = sbr.rel (0) target = $region17
  $region16: #{cnn_forward.8} parent=0 // pred_region
    _
  $region17: #{cnn_forward.8} parent=0 // pred_fallthru
    _
  %v17 = vld [vmem:[%s0] sm:$0xff]
  %v18 = vld [vmem:[%s0 + $0x8] sm:$0xff]
  %v19 = vld [vmem:[%s0 + $0x10] sm:$0xff]
  %v20 = vld [vmem:[%s0 + $0x18] sm:$0xff]
  %v21 = vld [vmem:[%s0 + $0x20] sm:$0xff]
  %v22 = vld [vmem:[%s0 + $0x28] sm:$0xff]
  %v23 = vld [vmem:[%s0 + $0x30] sm:$0x3]
  %v24 = vld [vmem:[%s1] sm:$0xff]
  %v25 = vld [vmem:[%s1 + $0x8] sm:$0xff]
  %v26 = vld [vmem:[%s1 + $0x10] sm:$0xff]
  %v27 = vld [vmem:[%s1 + $0x18] sm:$0xff]
  %v28 = vld [vmem:[%s1 + $0x20] sm:$0xff]
  %v29 = vld [vmem:[%s1 + $0x28] sm:$0xff]
  %v30 = vld [vmem:[%s1 + $0x30] sm:$0x3]
  %v31 = vmax.f32 %v17, %v24
  %v32 = vmax.f32 %v18, %v25
  %v33 = vmax.f32 %v19, %v26
  %v34 = vmax.f32 %v20, %v27
  %v35 = vmax.f32 %v21, %v28
  %v36 = vmax.f32 %v22, %v29
  %v37 = vmax.f32 %v23, %v30
  %v38 = vld [vmem:[%s2] sm:$0xff]
  %v39 = vld [vmem:[%s2 + $0x8] sm:$0xff]
  %v40 = vld [vmem:[%s2 + $0x10] sm:$0xff]
  %v41 = vld [vmem:[%s2 + $0x18] sm:$0xff]
  %v42 = vld [vmem:[%s2 + $0x20] sm:$0xff]
  %v43 = vld [vmem:[%s2 + $0x28] sm:$0xff]
  %v44 = vld [vmem:[%s2 + $0x30] sm:$0x3]
  %v45 = vld [vmem:[%s3] sm:$0xff]
  %v46 = vld [vmem:[%s3 + $0x8] sm:$0xff]
  %v47 = vld [vmem:[%s3 + $0x10] sm:$0xff]
  %v48 = vld [vmem:[%s3 + $0x18] sm:$0xff]
  %v49 = vld [vmem:[%s3 + $0x20] sm:$0xff]
  %v50 = vld [vmem:[%s3 + $0x28] sm:$0xff]
  %v51 = vld [vmem:[%s3 + $0x30] sm:$0x3]
  %v52 = vmax.f32 %v38, %v45
  %v53 = vmax.f32 %v39, %v46
  %v54 = vmax.f32 %v40, %v47
  %v55 = vmax.f32 %v41, %v48
  %v56 = vmax.f32 %v42, %v49
  %v57 = vmax.f32 %v43, %v50
  %v58 = vmax.f32 %v44, %v51
  %v59 = vmax.f32 %v31, %v52
  %v60 = vmax.f32 %v32, %v53
  %v61 = vmax.f32 %v33, %v54
  %v62 = vmax.f32 %v34, %v55
  %v63 = vmax.f32 %v35, %v56
  %v64 = vmax.f32 %v36, %v57
  %v65 = vmax.f32 %v37, %v58
  %66 = vst [vmem:[%s4] sm:$0xff] %v59
  %67 = vst [vmem:[%s4 + $0x8] sm:$0xff] %v60
  %68 = vst [vmem:[%s4 + $0x10] sm:$0xff] %v61
  %69 = vst [vmem:[%s4 + $0x18] sm:$0xff] %v62
  %70 = vst [vmem:[%s4 + $0x20] sm:$0xff] %v63
  %71 = vst [vmem:[%s4 + $0x28] sm:$0xff] %v64
  %72 = vst [vmem:[%s4 + $0x30] sm:$0x3] %v65
  // Predicated region
  $region18: #{cnn_forward.8} parent=0 // pred_check
    _
  $region19: #{cnn_forward.8} parent=0 // pred_check_branch
    %74 = sbr.rel (0) target = $region21
  $region20: #{cnn_forward.8} parent=0 // pred_region
    _
  $region21: #{cnn_forward.8} parent=0 // pred_fallthru
    _
  // Predicated region
  $region22: #{cnn_forward.8} parent=0 // pred_check
    _
  $region23: #{cnn_forward.8} parent=0 // pred_check_branch
    %76 = sbr.rel (0) target = $region25
  $region24: #{cnn_forward.8} parent=0 // pred_region
    _
  $region25: #{cnn_forward.8} parent=0 // pred_fallthru
    _

// kernel: cnn_forward.9
$region0: #{cnn_forward.9}
  #allocation0 [shape = 'u32[]', space=smem, size = 0x4, offset = 0x4, fixed_abs, tag = 'smem constant byte address 0x4 - core index']
  #allocation1 [shape = 'u32[144,128]{1,0:T(1,128)}', space=vmem, size = 0x12000, scoped, tag = 'internal scratch']
  %s0 = inlined_call_operand.vmem [shape: f32[2,400], index: 0, kind: input, shape index: {}]
  %s1 = inlined_call_operand.vmem [shape: f32[400,128], index: 1, kind: input, shape index: {}]
  %s2 = inlined_call_operand.vmem [shape: f32[1,128], index: 2, kind: input, shape index: {}]
  %s3 = inlined_call_operand.vmem [shape: f32[128,128], index: 3, kind: input, shape index: {}]
  %s4 = inlined_call_operand.vmem [shape: f32[1,128], index: 4, kind: input, shape index: {}]
  %s5 = inlined_call_operand.vmem [shape: f32[128,128], index: 5, kind: input, shape index: {}]
  %s6 = inlined_call_operand.vmem [shape: f32[1,128], index: 6, kind: input, shape index: {}]
  %s7 = inlined_call_operand.hbm [shape: f32[2,128], index: 7, kind: output, shape index: {}]
  %s8 = sld [smem:[#allocation0]]
  $region38: #{cnn_forward.9} parent=0
    _
  %s10 = ssub.s32 1, %s8
  %s11 = scalar_select 0, %s10, %s8
  $region1: #{cnn_forward.9} parent=0
    #allocation2 [shape = 'u8[1024]{0}', space=vmem, size = 0x400, scoped, tag = 'output window, operand 0, single buffered']
    #allocation3 [shape = 's32[1]{0}', space=sflag, size = 0x4, scoped, tag = 'scoped memory for cnn_forward.9']
    %12 = vsyncpa [#allocation3], 0
    // Predicated region
    $region2: #{cnn_forward.9} parent=1 // pred_check
      _
    $region3: #{cnn_forward.9} parent=1 // pred_check_branch
      %14 = sbr.rel (0) target = $region5
    $region4: #{cnn_forward.9} parent=1 // pred_region
      _
    $region5: #{cnn_forward.9} parent=1 // pred_fallthru
      _
    // Predicated region
    $region6: #{cnn_forward.9} parent=1 // pred_check
      _
    $region7: #{cnn_forward.9} parent=1 // pred_check_branch
      %16 = sbr.rel (0) target = $region9
    $region8: #{cnn_forward.9} parent=1 // pred_region
      _
    $region9: #{cnn_forward.9} parent=1 // pred_fallthru
      _
    // Predicated region
    $region10: #{cnn_forward.9} parent=1 // pred_check
      _
    $region11: #{cnn_forward.9} parent=1 // pred_check_branch
      %18 = sbr.rel (0) target = $region13
    $region12: #{cnn_forward.9} parent=1 // pred_region
      _
    $region13: #{cnn_forward.9} parent=1 // pred_fallthru
      _
    // Predicated region
    $region14: #{cnn_forward.9} parent=1 // pred_check
      _
    $region15: #{cnn_forward.9} parent=1 // pred_check_branch
      %20 = sbr.rel (0) target = $region17
    $region16: #{cnn_forward.9} parent=1 // pred_region
      _
    $region17: #{cnn_forward.9} parent=1 // pred_fallthru
      _
    // Predicated region
    $region18: #{cnn_forward.9} parent=1 // pred_check
      _
    $region19: #{cnn_forward.9} parent=1 // pred_check_branch
      %22 = sbr.rel (0) target = $region21
    $region20: #{cnn_forward.9} parent=1 // pred_region
      _
    $region21: #{cnn_forward.9} parent=1 // pred_fallthru
      _
    // Predicated region
    $region22: #{cnn_forward.9} parent=1 // pred_check
      _
    $region23: #{cnn_forward.9} parent=1 // pred_check_branch
      %24 = sbr.rel (0) target = $region25
    $region24: #{cnn_forward.9} parent=1 // pred_region
      _
    $region25: #{cnn_forward.9} parent=1 // pred_fallthru
      _
    // Predicated region
    $region26: #{cnn_forward.9} parent=1 // pred_check
      _
    $region27: #{cnn_forward.9} parent=1 // pred_check_branch
      %26 = sbr.rel (0) target = $region29
    $region28: #{cnn_forward.9} parent=1 // pred_region
      _
    $region29: #{cnn_forward.9} parent=1 // pred_fallthru
      _
    %v27 = vld [vmem:[%s0] sm:$0xff]
    %v28 = vld [vmem:[%s1] sm:$0xff]
    %v29 = vld [vmem:[%s1 + $0x8] sm:$0xff]
    %v30 = vld [vmem:[%s1 + $0x10] sm:$0xff]
    %v31 = vld [vmem:[%s1 + $0x18] sm:$0xff]
    %v32 = vld [vmem:[%s1 + $0x20] sm:$0xff]
    %v33 = vld [vmem:[%s1 + $0x28] sm:$0xff]
    %v34 = vld [vmem:[%s1 + $0x30] sm:$0xff]
    %v35 = vld [vmem:[%s1 + $0x38] sm:$0xff]
    %v36 = vld [vmem:[%s1 + $0x40] sm:$0xff]
    %v37 = vld [vmem:[%s1 + $0x48] sm:$0xff]
    %v38 = vld [vmem:[%s1 + $0x50] sm:$0xff]
    %v39 = vld [vmem:[%s1 + $0x58] sm:$0xff]
    %v40 = vld [vmem:[%s1 + $0x60] sm:$0xff]
    %v41 = vld [vmem:[%s1 + $0x68] sm:$0xff]
    %v42 = vld [vmem:[%s1 + $0x70] sm:$0xff]
    %v43 = vld [vmem:[%s1 + $0x78] sm:$0xff]
    %v44 = vld [vmem:[%s1 + $0x80] sm:$0xff]
    %v45 = vld [vmem:[%s1 + $0x88] sm:$0xff]
    %v46 = vld [vmem:[%s1 + $0x90] sm:$0xff]
    %v47 = vld [vmem:[%s1 + $0x98] sm:$0xff]
    %v48 = vld [vmem:[%s1 + $0xa0] sm:$0xff]
    %v49 = vld [vmem:[%s1 + $0xa8] sm:$0xff]
    %v50 = vld [vmem:[%s1 + $0xb0] sm:$0xff]
    %v51 = vld [vmem:[%s1 + $0xb8] sm:$0xff]
    %v52 = vld [vmem:[%s1 + $0xc0] sm:$0xff]
    %v53 = vld [vmem:[%s1 + $0xc8] sm:$0xff]
    %v54 = vld [vmem:[%s1 + $0xd0] sm:$0xff]
    %v55 = vld [vmem:[%s1 + $0xd8] sm:$0xff]
    %v56 = vld [vmem:[%s1 + $0xe0] sm:$0xff]
    %v57 = vld [vmem:[%s1 + $0xe8] sm:$0xff]
    %v58 = vld [vmem:[%s1 + $0xf0] sm:$0xff]
    %v59 = vld [vmem:[%s1 + $0xf8] sm:$0xff]
    %v60 = vld [vmem:[%s1 + $0x100] sm:$0xff]
    %v61 = vld [vmem:[%s1 + $0x108] sm:$0xff]
    %v62 = vld [vmem:[%s1 + $0x110] sm:$0xff]
    %v63 = vld [vmem:[%s1 + $0x118] sm:$0xff]
    %v64 = vld [vmem:[%s1 + $0x120] sm:$0xff]
    %v65 = vld [vmem:[%s1 + $0x128] sm:$0xff]
    %v66 = vld [vmem:[%s1 + $0x130] sm:$0xff]
    %v67 = vld [vmem:[%s1 + $0x138] sm:$0xff]
    %v68 = vld [vmem:[%s1 + $0x140] sm:$0xff]
    %v69 = vld [vmem:[%s1 + $0x148] sm:$0xff]
    %v70 = vld [vmem:[%s1 + $0x150] sm:$0xff]
    %v71 = vld [vmem:[%s1 + $0x158] sm:$0xff]
    %v72 = vld [vmem:[%s1 + $0x160] sm:$0xff]
    %v73 = vld [vmem:[%s1 + $0x168] sm:$0xff]
    %v74 = vld [vmem:[%s1 + $0x170] sm:$0xff]
    %v75 = vld [vmem:[%s1 + $0x178] sm:$0xff]
    %v76 = vld [vmem:[%s1 + $0x180] sm:$0xff]
    %v77 = vld [vmem:[%s1 + $0x188] sm:$0xff]
    %v78 = vld [vmem:[%s2] sm:$0x1]
    %v80 = vlaneseq
    %v81 = vshrl.u32 %v80, 7
    %v82 = vsub.s32 0, %v81
    %v83 = vrot.slane %v78, %v82
    %v86 = vcombine.high %v27, %v27
    %v88 = vunpack.c.l.s4 1983009808
    %v89 = vunpack.c.0.s8 %v88
    %v90 = vlaneseq
    %v91 = vshrl.u32 %v90, 7
    %v92 = vsub.s32 %v89, %v91
    %v93 = vrot.slane %v27, %v92
    %v95 = vunpack.c.l.s4 1983009808
    %v96 = vunpack.c.0.s8 %v95
    %v97 = vlaneseq
    %v98 = vshrl.u32 %v97, 7
    %v99 = vsub.s32 %v96, %v98
    %v100 = vrot.slane %v86, %v99
    %v101 = vcombine.high %v93, %v93
    %v102 = vcombine.high %v100, %v100
    %vm106 = vcmask 130048
    %v107 = vsel %vm106, %v102, 0
    %109 = vmatprep.subr.mxu0 0.0
    %110 = vmatpush1.msra.mxu0 %v28
    %111 = vmatprep.subr.mxu0 0.0
    %112 = vmatpush1.msra.mxu0 %v29
    %113 = vmatprep.subr.mxu0 0.0
    %114 = vmatpush1.msra.mxu0 %v30
    %115 = vmatprep.subr.mxu0 0.0
    %116 = vmatpush1.msra.mxu0 %v31
    %117 = vmatprep.subr.mxu0 0.0
    %118 = vmatpush1.msra.mxu0 %v32
    %119 = vmatprep.subr.mxu0 0.0
    %120 = vmatpush1.msra.mxu0 %v33
    %121 = vmatprep.subr.mxu0 0.0
    %122 = vmatpush1.msra.mxu0 %v34
    %123 = vmatprep.subr.mxu0 0.0
    %124 = vmatpush1.msra.mxu0 %v35
    %125 = vmatprep.subr.mxu0 0.0
    %126 = vmatpush1.msra.mxu0 %v36
    %127 = vmatprep.subr.mxu0 0.0
    %128 = vmatpush1.msra.mxu0 %v37
    %129 = vmatprep.subr.mxu0 0.0
    %130 = vmatpush1.msra.mxu0 %v38
    %131 = vmatprep.subr.mxu0 0.0
    %132 = vmatpush1.msra.mxu0 %v39
    %133 = vmatprep.subr.mxu0 0.0
    %134 = vmatpush1.msra.mxu0 %v40
    %135 = vmatprep.subr.mxu0 0.0
    %136 = vmatpush1.msra.mxu0 %v41
    %137 = vmatprep.subr.mxu0 0.0
    %138 = vmatpush1.msra.mxu0 %v42
    %139 = vmatprep.subr.mxu0 0.0
    %140 = vmatpush1.msra.mxu0 %v43
    %141 = vmatprep.subr.mxu0 0.0
    %142 = vmatpush1.msra.mxu0 %v44
    %143 = vmatprep.subr.mxu0 0.0
    %144 = vmatpush1.msra.mxu0 %v45
    %145 = vmatprep.subr.mxu0 0.0
    %146 = vmatpush1.msra.mxu0 %v46
    %147 = vmatprep.subr.mxu0 0.0
    %148 = vmatpush1.msra.mxu0 %v47
    %149 = vmatprep.subr.mxu0 0.0
    %150 = vmatpush1.msra.mxu0 %v48
    %151 = vmatprep.subr.mxu0 0.0
    %152 = vmatpush1.msra.mxu0 %v49
    %153 = vmatprep.subr.mxu0 0.0
    %154 = vmatpush1.msra.mxu0 %v50
    %155 = vmatprep.subr.mxu0 0.0
    %156 = vmatpush1.msra.mxu0 %v51
    %157 = vmatprep.subr.mxu0 0.0
    %158 = vmatpush1.msra.mxu0 %v52
    %159 = vmatprep.subr.mxu0 0.0
    %160 = vmatpush1.msra.mxu0 %v53
    %161 = vmatprep.subr.mxu0 0.0
    %162 = vmatpush1.msra.mxu0 %v54
    %163 = vmatprep.subr.mxu0 0.0
    %164 = vmatpush1.msra.mxu0 %v55
    %165 = vmatprep.subr.mxu0 0.0
    %166 = vmatpush1.msra.mxu0 %v56
    %167 = vmatprep.subr.mxu0 0.0
    %168 = vmatpush1.msra.mxu0 %v57
    %169 = vmatprep.subr.mxu0 0.0
    %170 = vmatpush1.msra.mxu0 %v58
    %171 = vmatprep.subr.mxu0 0.0
    %172 = vmatpush1.msra.mxu0 %v59
    %173 = vmatprep.mubr.f32.mxu0 %v101
    %174 = vmatmul.mubr.f32.gmra.mrb[0].mxu0 %v93
    %v175 = vpop.f32.mrb[0].mxu0
    %v176 = vadd.f32 %v83, %v175
    %v177 = vpop.f32.mrb[0].mxu0
    %178 = vdwg.mxu0
    %179 = vmatprep.subr.mxu0 0.0
    %180 = vmatpush1.msra.mxu0 %v60
    %181 = vmatprep.subr.mxu0 0.0
    %182 = vmatpush1.msra.mxu0 %v61
    %183 = vmatprep.subr.mxu0 0.0
    %184 = vmatpush1.msra.mxu0 %v62
    %185 = vmatprep.subr.mxu0 0.0
    %186 = vmatpush1.msra.mxu0 %v63
    %187 = vmatprep.subr.mxu0 0.0
    %188 = vmatpush1.msra.mxu0 %v64
    %189 = vmatprep.subr.mxu0 0.0
    %190 = vmatpush1.msra.mxu0 %v65
    %191 = vmatprep.subr.mxu0 0.0
    %192 = vmatpush1.msra.mxu0 %v66
    %193 = vmatprep.subr.mxu0 0.0
    %194 = vmatpush1.msra.mxu0 %v67
    %195 = vmatprep.subr.mxu0 0.0
    %196 = vmatpush1.msra.mxu0 %v68
    %197 = vmatprep.subr.mxu0 0.0
    %198 = vmatpush1.msra.mxu0 %v69
    %199 = vmatprep.subr.mxu0 0.0
    %200 = vmatpush1.msra.mxu0 %v70
    %201 = vmatprep.subr.mxu0 0.0
    %202 = vmatpush1.msra.mxu0 %v71
    %203 = vmatprep.subr.mxu0 0.0
    %204 = vmatpush1.msra.mxu0 %v72
    %205 = vmatprep.subr.mxu0 0.0
    %206 = vmatpush1.msra.mxu0 %v73
    %207 = vmatprep.subr.mxu0 0.0
    %208 = vmatpush1.msra.mxu0 %v74
    %209 = vmatprep.subr.mxu0 0.0
    %210 = vmatpush1.msra.mxu0 %v75
    %211 = vmatprep.subr.mxu0 0.0
    %212 = vmatpush1.msra.mxu0 %v76
    %213 = vmatprep.subr.mxu0 0.0
    %214 = vmatpush1.msra.mxu0 %v77
    %215 = vmatprep.subr.mxu0 0.0
    %216 = vmatpush1.msra.mxu0 0.0
    %217 = vmatprep.subr.mxu0 0.0
    %218 = vmatpush1.msra.mxu0 0.0
    %219 = vmatprep.subr.mxu0 0.0
    %220 = vmatpush1.msra.mxu0 0.0
    %221 = vmatprep.subr.mxu0 0.0
    %222 = vmatpush1.msra.mxu0 0.0
    %223 = vmatprep.subr.mxu0 0.0
    %224 = vmatpush1.msra.mxu0 0.0
    %225 = vmatprep.subr.mxu0 0.0
    %226 = vmatpush1.msra.mxu0 0.0
    %227 = vmatprep.subr.mxu0 0.0
    %228 = vmatpush1.msra.mxu0 0.0
    %229 = vmatprep.subr.mxu0 0.0
    %230 = vmatpush1.msra.mxu0 0.0
    %231 = vmatprep.subr.mxu0 0.0
    %232 = vmatpush1.msra.mxu0 0.0
    %233 = vmatprep.subr.mxu0 0.0
    %234 = vmatpush1.msra.mxu0 0.0
    %235 = vmatprep.subr.mxu0 0.0
    %236 = vmatpush1.msra.mxu0 0.0
    %237 = vmatprep.subr.mxu0 0.0
    %238 = vmatpush1.msra.mxu0 0.0
    %239 = vmatprep.subr.mxu0 0.0
    %240 = vmatpush1.msra.mxu0 0.0
    %241 = vmatprep.subr.mxu0 0.0
    %242 = vmatpush1.msra.mxu0 0.0
    %243 = vmatprep.mubr.f32.mxu0 %v107
    %244 = vmatmul.mubr.f32.gmra.mrb[0].mxu0 %v100
    %v245 = vpop.f32.mrb[0].mxu0
    %v246 = vadd.f32 %v176, %v245
    %v247 = vpop.f32.mrb[0].mxu0
    %248 = vdwg.mxu0
    %v249 = vmax.f32 %v246, 0.0
    %v250 = vld [vmem:[%s3] sm:$0xff]
    %v251 = vld [vmem:[%s3 + $0x8] sm:$0xff]
    %v252 = vld [vmem:[%s3 + $0x10] sm:$0xff]
    %v253 = vld [vmem:[%s3 + $0x18] sm:$0xff]
    %v254 = vld [vmem:[%s3 + $0x20] sm:$0xff]
    %v255 = vld [vmem:[%s3 + $0x28] sm:$0xff]
    %v256 = vld [vmem:[%s3 + $0x30] sm:$0xff]
    %v257 = vld [vmem:[%s3 + $0x38] sm:$0xff]
    %v258 = vld [vmem:[%s3 + $0x40] sm:$0xff]
    %v259 = vld [vmem:[%s3 + $0x48] sm:$0xff]
    %v260 = vld [vmem:[%s3 + $0x50] sm:$0xff]
    %v261 = vld [vmem:[%s3 + $0x58] sm:$0xff]
    %v262 = vld [vmem:[%s3 + $0x60] sm:$0xff]
    %v263 = vld [vmem:[%s3 + $0x68] sm:$0xff]
    %v264 = vld [vmem:[%s3 + $0x70] sm:$0xff]
    %v265 = vld [vmem:[%s3 + $0x78] sm:$0xff]
    %v266 = vld [vmem:[%s4] sm:$0x1]
    %v268 = vlaneseq
    %v269 = vshrl.u32 %v268, 7
    %v270 = vsub.s32 0, %v269
    %v271 = vrot.slane %v266, %v270
    %273 = vmatprep.subr.mxu0 0.0
    %274 = vmatpush1.msra.mxu0 %v250
    %275 = vmatprep.subr.mxu0 0.0
    %276 = vmatpush1.msra.mxu0 %v251
    %277 = vmatprep.subr.mxu0 0.0
    %278 = vmatpush1.msra.mxu0 %v252
    %279 = vmatprep.subr.mxu0 0.0
    %280 = vmatpush1.msra.mxu0 %v253
    %281 = vmatprep.subr.mxu0 0.0
    %282 = vmatpush1.msra.mxu0 %v254
    %283 = vmatprep.subr.mxu0 0.0
    %284 = vmatpush1.msra.mxu0 %v255
    %285 = vmatprep.subr.mxu0 0.0
    %286 = vmatpush1.msra.mxu0 %v256
    %287 = vmatprep.subr.mxu0 0.0
    %288 = vmatpush1.msra.mxu0 %v257
    %289 = vmatprep.subr.mxu0 0.0
    %290 = vmatpush1.msra.mxu0 %v258
    %291 = vmatprep.subr.mxu0 0.0
    %292 = vmatpush1.msra.mxu0 %v259
    %293 = vmatprep.subr.mxu0 0.0
    %294 = vmatpush1.msra.mxu0 %v260
    %295 = vmatprep.subr.mxu0 0.0
    %296 = vmatpush1.msra.mxu0 %v261
    %297 = vmatprep.subr.mxu0 0.0
    %298 = vmatpush1.msra.mxu0 %v262
    %299 = vmatprep.subr.mxu0 0.0
    %300 = vmatpush1.msra.mxu0 %v263
    %301 = vmatprep.subr.mxu0 0.0
    %302 = vmatpush1.msra.mxu0 %v264
    %303 = vmatprep.subr.mxu0 0.0
    %304 = vmatpush1.msra.mxu0 %v265
    %305 = vmatprep.subr.mxu0 0.0
    %306 = vmatpush1.msra.mxu0 0.0
    %307 = vmatprep.subr.mxu0 0.0
    %308 = vmatpush1.msra.mxu0 0.0
    %309 = vmatprep.subr.mxu0 0.0
    %310 = vmatpush1.msra.mxu0 0.0
    %311 = vmatprep.subr.mxu0 0.0
    %312 = vmatpush1.msra.mxu0 0.0
    %313 = vmatprep.subr.mxu0 0.0
    %314 = vmatpush1.msra.mxu0 0.0
    %315 = vmatprep.subr.mxu0 0.0
    %316 = vmatpush1.msra.mxu0 0.0
    %317 = vmatprep.subr.mxu0 0.0
    %318 = vmatpush1.msra.mxu0 0.0
    %319 = vmatprep.subr.mxu0 0.0
    %320 = vmatpush1.msra.mxu0 0.0
    %321 = vmatprep.subr.mxu0 0.0
    %322 = vmatpush1.msra.mxu0 0.0
    %323 = vmatprep.subr.mxu0 0.0
    %324 = vmatpush1.msra.mxu0 0.0
    %325 = vmatprep.subr.mxu0 0.0
    %326 = vmatpush1.msra.mxu0 0.0
    %327 = vmatprep.subr.mxu0 0.0
    %328 = vmatpush1.msra.mxu0 0.0
    %329 = vmatprep.subr.mxu0 0.0
    %330 = vmatpush1.msra.mxu0 0.0
    %331 = vmatprep.subr.mxu0 0.0
    %332 = vmatpush1.msra.mxu0 0.0
    %333 = vmatprep.subr.mxu0 0.0
    %334 = vmatpush1.msra.mxu0 0.0
    %335 = vmatprep.subr.mxu0 0.0
    %336 = vmatpush1.msra.mxu0 0.0
    %337 = vmatprep.mubr.f32.mxu0 0.0
    %338 = vmatmul.mubr.f32.gmra.mrb[0].mxu0 %v249
    %v339 = vpop.f32.mrb[0].mxu0
    %v340 = vadd.f32 %v271, %v339
    %v341 = vpop.f32.mrb[0].mxu0
    %342 = vdwg.mxu0
    %v343 = vmax.f32 %v340, 0.0
    %v344 = vld [vmem:[%s5] sm:$0xff]
    %v345 = vld [vmem:[%s5 + $0x8] sm:$0xff]
    %v346 = vld [vmem:[%s5 + $0x10] sm:$0xff]
    %v347 = vld [vmem:[%s5 + $0x18] sm:$0xff]
    %v348 = vld [vmem:[%s5 + $0x20] sm:$0xff]
    %v349 = vld [vmem:[%s5 + $0x28] sm:$0xff]
    %v350 = vld [vmem:[%s5 + $0x30] sm:$0xff]
    %v351 = vld [vmem:[%s5 + $0x38] sm:$0xff]
    %v352 = vld [vmem:[%s5 + $0x40] sm:$0xff]
    %v353 = vld [vmem:[%s5 + $0x48] sm:$0xff]
    %v354 = vld [vmem:[%s5 + $0x50] sm:$0xff]
    %v355 = vld [vmem:[%s5 + $0x58] sm:$0xff]
    %v356 = vld [vmem:[%s5 + $0x60] sm:$0xff]
    %v357 = vld [vmem:[%s5 + $0x68] sm:$0xff]
    %v358 = vld [vmem:[%s5 + $0x70] sm:$0xff]
    %v359 = vld [vmem:[%s5 + $0x78] sm:$0xff]
    %v360 = vld [vmem:[%s6] sm:$0x1]
    %v362 = vlaneseq
    %v363 = vshrl.u32 %v362, 7
    %v364 = vsub.s32 0, %v363
    %v365 = vrot.slane %v360, %v364
    %367 = vmatprep.subr.mxu0 0.0
    %368 = vmatpush1.msra.mxu0 %v344
    %369 = vmatprep.subr.mxu0 0.0
    %370 = vmatpush1.msra.mxu0 %v345
    %371 = vmatprep.subr.mxu0 0.0
    %372 = vmatpush1.msra.mxu0 %v346
    %373 = vmatprep.subr.mxu0 0.0
    %374 = vmatpush1.msra.mxu0 %v347
    %375 = vmatprep.subr.mxu0 0.0
    %376 = vmatpush1.msra.mxu0 %v348
    %377 = vmatprep.subr.mxu0 0.0
    %378 = vmatpush1.msra.mxu0 %v349
    %379 = vmatprep.subr.mxu0 0.0
    %380 = vmatpush1.msra.mxu0 %v350
    %381 = vmatprep.subr.mxu0 0.0
    %382 = vmatpush1.msra.mxu0 %v351
    %383 = vmatprep.subr.mxu0 0.0
    %384 = vmatpush1.msra.mxu0 %v352
    %385 = vmatprep.subr.mxu0 0.0
    %386 = vmatpush1.msra.mxu0 %v353
    %387 = vmatprep.subr.mxu0 0.0
    %388 = vmatpush1.msra.mxu0 %v354
    %389 = vmatprep.subr.mxu0 0.0
    %390 = vmatpush1.msra.mxu0 %v355
    %391 = vmatprep.subr.mxu0 0.0
    %392 = vmatpush1.msra.mxu0 %v356
    %393 = vmatprep.subr.mxu0 0.0
    %394 = vmatpush1.msra.mxu0 %v357
    %395 = vmatprep.subr.mxu0 0.0
    %396 = vmatpush1.msra.mxu0 %v358
    %397 = vmatprep.subr.mxu0 0.0
    %398 = vmatpush1.msra.mxu0 %v359
    %399 = vmatprep.subr.mxu0 0.0
    %400 = vmatpush1.msra.mxu0 0.0
    %401 = vmatprep.subr.mxu0 0.0
    %402 = vmatpush1.msra.mxu0 0.0
    %403 = vmatprep.subr.mxu0 0.0
    %404 = vmatpush1.msra.mxu0 0.0
    %405 = vmatprep.subr.mxu0 0.0
    %406 = vmatpush1.msra.mxu0 0.0
    %407 = vmatprep.subr.mxu0 0.0
    %408 = vmatpush1.msra.mxu0 0.0
    %409 = vmatprep.subr.mxu0 0.0
    %410 = vmatpush1.msra.mxu0 0.0
    %411 = vmatprep.subr.mxu0 0.0
    %412 = vmatpush1.msra.mxu0 0.0
    %413 = vmatprep.subr.mxu0 0.0
    %414 = vmatpush1.msra.mxu0 0.0
    %415 = vmatprep.subr.mxu0 0.0
    %416 = vmatpush1.msra.mxu0 0.0
    %417 = vmatprep.subr.mxu0 0.0
    %418 = vmatpush1.msra.mxu0 0.0
    %419 = vmatprep.subr.mxu0 0.0
    %420 = vmatpush1.msra.mxu0 0.0
    %421 = vmatprep.subr.mxu0 0.0
    %422 = vmatpush1.msra.mxu0 0.0
    %423 = vmatprep.subr.mxu0 0.0
    %424 = vmatpush1.msra.mxu0 0.0
    %425 = vmatprep.subr.mxu0 0.0
    %426 = vmatpush1.msra.mxu0 0.0
    %427 = vmatprep.subr.mxu0 0.0
    %428 = vmatpush1.msra.mxu0 0.0
    %429 = vmatprep.subr.mxu0 0.0
    %430 = vmatpush1.msra.mxu0 0.0
    %431 = vmatprep.mubr.f32.mxu0 0.0
    %432 = vmatmul.mubr.f32.gmra.mrb[0].mxu0 %v343
    %v433 = vpop.f32.mrb[0].mxu0
    %v434 = vadd.f32 %v365, %v433
    %v435 = vpop.f32.mrb[0].mxu0
    %436 = vdwg.mxu0
    %437 = vst [vmem:[#allocation2] sm:$0x3] %v434
    // Predicated region
    $region30: #{cnn_forward.9} parent=1 // pred_check
      _
    $region31: #{cnn_forward.9} parent=1 // pred_check_branch
      %439 = sbr.rel (0) target = $region33
    $region32: #{cnn_forward.9} parent=1 // pred_region
      %s441 = ssub.s32 32, 32
      %442 = vsyncadd [#allocation3], %s441
      %s444 = sshll.u32 [#allocation2], 4
      %s445 = int_to_ptr.vmem [resolvable:$true] %s444
      %447 = dma.vmem_to_hbm [thread:$0]  %s445, 32, %s7, [#allocation3]
    $region33: #{cnn_forward.9} parent=1 // pred_fallthru
      _
    // Predicated region
    $region34: #{cnn_forward.9} parent=1 // pred_check
      _
    $region35: #{cnn_forward.9} parent=1 // pred_check_branch
      %449 = sbr.rel (0) target = $region37
    $region36: #{cnn_forward.9} parent=1 // pred_region
      %450 = dma.done [#allocation3], 32
    $region37: #{cnn_forward.9} parent=1 // pred_fallthru
      _
    %451 = vsyncpa [#allocation3], 1

</llo_original>
